<compile_context>
chip_gen: v7x
topology: tpu7x:2x2x1
jax: 0.10.0
libtpu: 0.0.40
codegen_flags: <defaults>
</compile_context>

<pallas_src>
import functools

import jax
import jax.numpy as jnp
import numpy as np
from jax.experimental import pallas as pl
from jax.experimental.pallas import tpu as pltpu


def _round_up(x, m):
    return ((x + m - 1) // m) * m


# ----------------------------------------------------------------------------
# Fused forward kernel.
# In-kernel activation layout: (spatial_row, spatial_col, batch, channels):
# batch on sublanes, channels on lanes, all patch accesses are leading-dim slices.
# ----------------------------------------------------------------------------
def _fused_ddqn_kernel(xs_ref, w1_ref, b1_ref, w2_ref, b2_ref,
                       wh_ref, bh_ref, wva_ref, bva_ref, out_ref):
    TB = out_ref.shape[0]

    xs = xs_ref[...]                                        # (7, 7, TB, 16) bf16

    # ---- conv1 (k6, s2) as ONE (36*TB, 64) x (64, 64) MXU matmul -------------
    # cols1[r, c, b, (du*2+dv)*16 + (u*4+v)] = x[b, 4r+4du+u, 4c+4dv+v]
    cols1 = jnp.concatenate(
        [xs[du:du + 6, dv:dv + 6] for du in range(2) for dv in range(2)],
        axis=-1)                                            # (6, 6, TB, 64)
    cols1 = cols1.reshape(36 * TB, 64)
    y1 = jnp.dot(cols1, w1_ref[...], preferred_element_type=jnp.float32)
    y1 = jnp.maximum(y1 + b1_ref[...], 0.0)                 # (36*TB, 64) f32
    y1 = y1.astype(jnp.bfloat16).reshape(6, 6, TB, 64)
    # y1[r, c, b, (p*2+q)*16 + o] = relu(conv1)[b, o, 2r+p, 2c+q]

    # ---- conv2 (k4, s2): 4 accumulating full-lane (25*TB,64)x(64,32) matmuls --
    # (group-split over the 2x2 block offsets -> no lane sub-slices / concats)
    y2 = jnp.zeros((25 * TB, 32), jnp.float32)
    for g in range(4):
        dr, dc = divmod(g, 2)
        lhs = y1[dr:dr + 5, dc:dc + 5].reshape(25 * TB, 64)
        y2 = y2 + jnp.dot(lhs, w2_ref[g * 64:(g + 1) * 64, :],
                          preferred_element_type=jnp.float32)
    y2 = jnp.maximum(y2 + b2_ref[...], 0.0)                 # (25*TB, 32) f32
    y2 = y2.astype(jnp.bfloat16)
    # y2[(a*5+c)*TB + b, o] = relu(conv2)[b, o, a, c]

    # ---- hidden Linear(800,256): 25 accumulating (TB,32)x(32,256) matmuls -----
    # (the torch NCHW flatten order is folded into the row order of wh at init)
    h = jnp.zeros((TB, 256), jnp.float32)
    for p in range(25):
        h = h + jnp.dot(y2[p * TB:(p + 1) * TB, :],
                        wh_ref[p * 32:(p + 1) * 32, :],
                        preferred_element_type=jnp.float32)
    h = jnp.maximum(h + bh_ref[...], 0.0).astype(jnp.bfloat16)   # (TB, 256)

    # ---- fused, zero-padded [value | advantage | 0...] head (lane-dense) ------
    z = jnp.dot(h, wva_ref[...], preferred_element_type=jnp.float32)
    out_ref[...] = z + bva_ref[...]                         # (TB, 128) f32


def cnn_ddqn_forward(packed, x_nchw, num_actions):
    """Fused forward.  x_nchw: (B, 1, 28, 28) f32 -> (B, num_actions) f32."""
    B = x_nchw.shape[0]
    assert x_nchw.shape[1:] == (1, 28, 28)
    A = num_actions

    # Batch tile: multiple of 16 (bf16 sublane tile); 128 per block at large batch
    # (saturates v5e MXU rows; bump to 256 on v6e/v7x if desired).
    TB = 128 if B >= 128 else _round_up(B, 16)
    Bp = _round_up(B, TB)
    nblk = Bp // TB

    if Bp != B:
        x_nchw = jnp.pad(x_nchw, ((0, Bp - B), (0, 0), (0, 0), (0, 0)))

    # Space-to-depth(4) relayout: xs[R, C, b, u*4+v] = x[b, 4R+u, 4C+v]
    # TODO(synk): store frames upstream in this s2d/bf16 layout (or use input
    # fusion) to avoid the extra HBM round trip of this relayout.
    xs = x_nchw.reshape(Bp, 7, 4, 7, 4)
    xs = jnp.transpose(xs, (1, 3, 0, 2, 4)).reshape(7, 7, Bp, 16)
    xs = xs.astype(jnp.bfloat16)

    weight_keys = ("w1", "b1", "w2", "b2", "wh", "bh", "wva", "bva")
    operands = (xs,) + tuple(packed[k] for k in weight_keys)

    def _weight_spec(shape):
        n = len(shape)
        return pl.BlockSpec(shape, lambda i, _n=n: (0,) * _n)   # VMEM-resident

    in_specs = [pl.BlockSpec((7, 7, TB, 16), lambda i: (0, 0, i, 0))]
    in_specs += [_weight_spec(packed[k].shape) for k in weight_keys]

    flops = 1_179_648 * Bp          # conv1 + conv2 + hidden + head (padded)
    bytes_accessed = 2_080 * Bp + 510_000

    z = pl.pallas_call(
        _fused_ddqn_kernel,
        out_shape=jax.ShapeDtypeStruct((Bp, 128), jnp.float32),
        grid=(nblk,),
        in_specs=in_specs,
        out_specs=pl.BlockSpec((TB, 128), lambda i: (i, 0)),
        compiler_params=pltpu.CompilerParams(
            dimension_semantics=("parallel",),
            vmem_limit_bytes=48 * 1024 * 1024),
        cost_estimate=pl.CostEstimate(flops=flops, transcendentals=0,
                                      bytes_accessed=bytes_accessed),
    )(*operands)

    value = z[:B, 0:1]
    adv = z[:B, 1:1 + A]
    # torch semantics: advantage.mean() is a GLOBAL mean over batch AND actions;
    # done here on the un-padded slice so it stays exact under batch blocking.
    return value + adv - jnp.mean(adv)


# ----------------------------------------------------------------------------
# One-time weight repacking (init-time permutations; zero runtime cost)
# ----------------------------------------------------------------------------
def pack_params(p, num_actions):
    A = num_actions
    w_c1 = np.asarray(p["w_c1"], np.float32)   # (16, 1, 6, 6)
    w_c2 = np.asarray(p["w_c2"], np.float32)   # (32, 16, 4, 4)
    w_h = np.asarray(p["w_h"], np.float32)     # (256, 800)
    w_v = np.asarray(p["w_v"], np.float32)     # (1, 256)
    w_a = np.asarray(p["w_a"], np.float32)     # (A, 256)

    # conv1: stride-2/k6 folded into a (64, 64) matrix over s2d(4) input blocks.
    # rows = (du*2+dv)*16 + (u*4+v), cols = (pp*2+qq)*16 + o.
    w1 = np.zeros((64, 64), np.float32)
    for pp in range(2):
        for qq in range(2):
            for o in range(16):
                col = (pp * 2 + qq) * 16 + o
                for i in range(6):
                    for j in range(6):
                        du, u = divmod(2 * pp + i, 4)
                        dv, v = divmod(2 * qq + j, 4)
                        row = (du * 2 + dv) * 16 + (u * 4 + v)
                        w1[row, col] = w_c1[o, 0, i, j]
    b1 = np.tile(np.asarray(p["b_c1"], np.float32), 4).reshape(1, 64)

    # conv2: grouped by block offset (dr, dc) so each group is a full-lane
    # (64, 32) block; rows = (dr*2+dc)*64 + (pr*2+qc)*16 + cin.
    w2 = np.zeros((256, 32), np.float32)
    for dr in range(2):
        for dc in range(2):
            for pr in range(2):
                for qc in range(2):
                    for cin in range(16):
                        row = (dr * 2 + dc) * 64 + (pr * 2 + qc) * 16 + cin
                        w2[row, :] = w_c2[:, cin, 2 * dr + pr, 2 * dc + qc]
    b2 = np.asarray(p["b_c2"], np.float32).reshape(1, 32)

    # hidden: fold PyTorch's NCHW flatten (f = cin*25 + a*5 + c) into a row
    # permutation; kernel feature order is m = (a*5+c)*32 + cin.
    perm = np.array([cin * 25 + s for s in range(25) for cin in range(32)],
                    np.int32)
    wh = w_h.T[perm]                                        # (800, 256)
    bh = np.asarray(p["b_h"], np.float32).reshape(1, 256)

    # fused value|advantage head, zero-padded to 128 output lanes (lane-dense).
    wva = np.zeros((256, 128), np.float32)
    wva[:, 0:1] = w_v.T
    wva[:, 1:1 + A] = w_a.T
    bva = np.zeros((1, 128), np.float32)
    bva[0, 0] = float(np.asarray(p["b_v"], np.float32).reshape(-1)[0])
    bva[0, 1:1 + A] = np.asarray(p["b_a"], np.float32)

    bf = lambda a: jnp.asarray(a, jnp.bfloat16)
    f32 = lambda a: jnp.asarray(a, jnp.float32)
    return dict(w1=bf(w1), b1=f32(b1), w2=bf(w2), b2=f32(b2),
                wh=bf(wh), bh=f32(bh), wva=bf(wva), bva=f32(bva))


# ----------------------------------------------------------------------------
# Deterministic synthetic params (PyTorch-style layout + init) and f32 reference
# ----------------------------------------------------------------------------
def init_params(num_actions, key):
    ks = jax.random.split(key, 10)

    def uni(k, shape, fan_in):
        bound = 1.0 / jnp.sqrt(jnp.float32(fan_in))
        return jax.random.uniform(k, shape, jnp.float32, -bound, bound)

    p = {}
    p["w_c1"] = uni(ks[0], (16, 1, 6, 6), 1 * 6 * 6)
    p["b_c1"] = uni(ks[1], (16,), 1 * 6 * 6)
    p["w_c2"] = uni(ks[2], (32, 16, 4, 4), 16 * 4 * 4)
    p["b_c2"] = uni(ks[3], (32,), 16 * 4 * 4)
    p["w_h"] = uni(ks[4], (256, 800), 800)
    p["b_h"] = uni(ks[5], (256,), 800)
    p["w_v"] = uni(ks[6], (1, 256), 256)
    p["b_v"] = uni(ks[7], (1,), 256)
    p["w_a"] = uni(ks[8], (num_actions, 256), 256)
    p["b_a"] = uni(ks[9], (num_actions,), 256)
    return p


def reference_forward(params, x):
    """Pure-JAX (XLA) float32 reference with PyTorch semantics."""
    y = jax.lax.conv_general_dilated(
        x, params["w_c1"], window_strides=(2, 2), padding="VALID",
        dimension_numbers=("NCHW", "OIHW", "NCHW"))
    y = jnp.maximum(y + params["b_c1"].reshape(1, -1, 1, 1), 0.0)
    y = jax.lax.conv_general_dilated(
        y, params["w_c2"], window_strides=(2, 2), padding="VALID",
        dimension_numbers=("NCHW", "OIHW", "NCHW"))
    y = jnp.maximum(y + params["b_c2"].reshape(1, -1, 1, 1), 0.0)
    f = y.reshape(x.shape[0], -1)
    h = jnp.maximum(f @ params["w_h"].T + params["b_h"], 0.0)
    v = h @ params["w_v"].T + params["b_v"]
    a = h @ params["w_a"].T + params["b_a"]
    return v + a - jnp.mean(a)


if __name__ == "__main__":
    num_actions = 4
    batch = 2

    key = jax.random.PRNGKey(0)
    k_param, k_x = jax.random.split(key)
    params = init_params(num_actions, k_param)
    packed = pack_params(params, num_actions)

    # Conv arithmetic: 28 -> (28-6)/2+1 = 12 -> (12-4)/2+1 = 5; 32*5*5 = 800.
    x = jax.random.normal(k_x, (batch, 1, 28, 28), dtype=jnp.float32)

    fwd = jax.jit(functools.partial(cnn_ddqn_forward, num_actions=num_actions))
    out = jax.block_until_ready(fwd(packed, x))

    assert out.shape == (batch, num_actions)
    assert bool(jnp.all(jnp.isfinite(out)))

    # Correctness self-check against an f32 XLA reference (bf16 matmul tolerance).
    ref = reference_forward(params, x)
    max_err = float(jnp.max(jnp.abs(out - ref)))
    assert max_err < 2e-2, f"kernel deviates from reference by {max_err}"

    print("KERNEL_OK")
</pallas_src>

<mosaic_0001>
module attributes {stable_mosaic.version = 11 : i64} {
  func.func @_fused_ddqn_kernel(%arg0: i32, %arg1: memref<7x7x16x16xbf16, #tpu.memory_space<vmem>>, %arg2: memref<64x64xbf16, #tpu.memory_space<vmem>>, %arg3: memref<1x64xf32, #tpu.memory_space<vmem>>, %arg4: memref<256x32xbf16, #tpu.memory_space<vmem>>, %arg5: memref<1x32xf32, #tpu.memory_space<vmem>>, %arg6: memref<800x256xbf16, #tpu.memory_space<vmem>>, %arg7: memref<1x256xf32, #tpu.memory_space<vmem>>, %arg8: memref<256x128xbf16, #tpu.memory_space<vmem>>, %arg9: memref<1x128xf32, #tpu.memory_space<vmem>>, %arg10: memref<16x128xf32, #tpu.memory_space<vmem>>) attributes {dimension_semantics = [#tpu.dimension_semantics<parallel>], iteration_bounds = array<i64: 1>, scalar_prefetch = 0 : i64, scratch_operands = 0 : i64, tpu.core_type = #tpu.core_type<tc>, window_params = [{transform_indices = @transform_0, window_bounds = array<i64: 7, 7, 16, 16>}, {pipeline_mode = #tpu.pipeline_mode<synchronous>, transform_indices = @transform_1, window_bounds = array<i64: 64, 64>}, {pipeline_mode = #tpu.pipeline_mode<synchronous>, transform_indices = @transform_2, window_bounds = array<i64: 1, 64>}, {pipeline_mode = #tpu.pipeline_mode<synchronous>, transform_indices = @transform_3, window_bounds = array<i64: 256, 32>}, {pipeline_mode = #tpu.pipeline_mode<synchronous>, transform_indices = @transform_4, window_bounds = array<i64: 1, 32>}, {pipeline_mode = #tpu.pipeline_mode<synchronous>, transform_indices = @transform_5, window_bounds = array<i64: 800, 256>}, {pipeline_mode = #tpu.pipeline_mode<synchronous>, transform_indices = @transform_6, window_bounds = array<i64: 1, 256>}, {pipeline_mode = #tpu.pipeline_mode<synchronous>, transform_indices = @transform_7, window_bounds = array<i64: 256, 128>}, {pipeline_mode = #tpu.pipeline_mode<synchronous>, transform_indices = @transform_8, window_bounds = array<i64: 1, 128>}, {transform_indices = @transform_9, window_bounds = array<i64: 16, 128>}]} {
    %c0 = arith.constant 0 : index
    %c0_0 = arith.constant 0 : index
    %c0_1 = arith.constant 0 : index
    %c0_2 = arith.constant 0 : index
    %0 = vector.load %arg1[%c0, %c0_0, %c0_1, %c0_2] : memref<7x7x16x16xbf16, #tpu.memory_space<vmem>>, vector<7x7x16x16xbf16>
    %1 = vector.extract_strided_slice %0 {offsets = [0, 0, 0, 0], sizes = [6, 6, 16, 16], strides = [1, 1, 1, 1]} : vector<7x7x16x16xbf16> to vector<6x6x16x16xbf16>
    %2 = vector.extract_strided_slice %0 {offsets = [0, 1, 0, 0], sizes = [6, 6, 16, 16], strides = [1, 1, 1, 1]} : vector<7x7x16x16xbf16> to vector<6x6x16x16xbf16>
    %3 = vector.extract_strided_slice %0 {offsets = [1, 0, 0, 0], sizes = [6, 6, 16, 16], strides = [1, 1, 1, 1]} : vector<7x7x16x16xbf16> to vector<6x6x16x16xbf16>
    %4 = vector.extract_strided_slice %0 {offsets = [1, 1, 0, 0], sizes = [6, 6, 16, 16], strides = [1, 1, 1, 1]} : vector<7x7x16x16xbf16> to vector<6x6x16x16xbf16>
    %5 = tpu.concatenate %1, %2, %3, %4 in 3 : vector<6x6x16x16xbf16>, vector<6x6x16x16xbf16>, vector<6x6x16x16xbf16>, vector<6x6x16x16xbf16> -> vector<6x6x16x64xbf16>
    %6 = vector.shape_cast %5 : vector<6x6x16x64xbf16> to vector<576x64xbf16>
    %c0_3 = arith.constant 0 : index
    %c0_4 = arith.constant 0 : index
    %7 = vector.load %arg2[%c0_3, %c0_4] : memref<64x64xbf16, #tpu.memory_space<vmem>>, vector<64x64xbf16>
    %cst = arith.constant dense<0.000000e+00> : vector<576x64xf32>
    %8 = tpu.matmul %6, %7, %cst {dimension_numbers = #tpu.dot_dimension_numbers<[1], [0], [0], [1], [0, 0, 1, 1], [], []>} : vector<576x64xbf16>, vector<64x64xbf16>, vector<576x64xf32> -> vector<576x64xf32>
    %c0_5 = arith.constant 0 : index
    %c0_6 = arith.constant 0 : index
    %9 = vector.load %arg3[%c0_5, %c0_6] : memref<1x64xf32, #tpu.memory_space<vmem>>, vector<1x64xf32>
    %10 = vector.broadcast %9 : vector<1x64xf32> to vector<576x64xf32>
    %11 = arith.addf %8, %10 : vector<576x64xf32>
    %cst_7 = arith.constant 0.000000e+00 : f32
    %12 = vector.broadcast %cst_7 : f32 to vector<576x64xf32>
    %13 = arith.maximumf %11, %12 : vector<576x64xf32>
    %14 = arith.truncf %13 : vector<576x64xf32> to vector<576x64xbf16>
    %15 = vector.shape_cast %14 : vector<576x64xbf16> to vector<6x6x16x64xbf16>
    %cst_8 = arith.constant 0.000000e+00 : f32
    %16 = vector.broadcast %cst_8 : f32 to vector<400x32xf32>
    %17 = vector.extract_strided_slice %15 {offsets = [0, 0, 0, 0], sizes = [5, 5, 16, 64], strides = [1, 1, 1, 1]} : vector<6x6x16x64xbf16> to vector<5x5x16x64xbf16>
    %18 = vector.shape_cast %17 : vector<5x5x16x64xbf16> to vector<400x64xbf16>
    %c0_9 = arith.constant 0 : index
    %c0_10 = arith.constant 0 : index
    %19 = vector.load %arg4[%c0_9, %c0_10] : memref<256x32xbf16, #tpu.memory_space<vmem>>, vector<64x32xbf16>
    %cst_11 = arith.constant dense<0.000000e+00> : vector<400x32xf32>
    %20 = tpu.matmul %18, %19, %cst_11 {dimension_numbers = #tpu.dot_dimension_numbers<[1], [0], [0], [1], [0, 0, 1, 1], [], []>} : vector<400x64xbf16>, vector<64x32xbf16>, vector<400x32xf32> -> vector<400x32xf32>
    %21 = arith.addf %16, %20 : vector<400x32xf32>
    %22 = vector.extract_strided_slice %15 {offsets = [0, 1, 0, 0], sizes = [5, 5, 16, 64], strides = [1, 1, 1, 1]} : vector<6x6x16x64xbf16> to vector<5x5x16x64xbf16>
    %23 = vector.shape_cast %22 : vector<5x5x16x64xbf16> to vector<400x64xbf16>
    %c64 = arith.constant 64 : index
    %c0_12 = arith.constant 0 : index
    %24 = vector.load %arg4[%c64, %c0_12] : memref<256x32xbf16, #tpu.memory_space<vmem>>, vector<64x32xbf16>
    %cst_13 = arith.constant dense<0.000000e+00> : vector<400x32xf32>
    %25 = tpu.matmul %23, %24, %cst_13 {dimension_numbers = #tpu.dot_dimension_numbers<[1], [0], [0], [1], [0, 0, 1, 1], [], []>} : vector<400x64xbf16>, vector<64x32xbf16>, vector<400x32xf32> -> vector<400x32xf32>
    %26 = arith.addf %21, %25 : vector<400x32xf32>
    %27 = vector.extract_strided_slice %15 {offsets = [1, 0, 0, 0], sizes = [5, 5, 16, 64], strides = [1, 1, 1, 1]} : vector<6x6x16x64xbf16> to vector<5x5x16x64xbf16>
    %28 = vector.shape_cast %27 : vector<5x5x16x64xbf16> to vector<400x64xbf16>
    %c128 = arith.constant 128 : index
    %c0_14 = arith.constant 0 : index
    %29 = vector.load %arg4[%c128, %c0_14] : memref<256x32xbf16, #tpu.memory_space<vmem>>, vector<64x32xbf16>
    %cst_15 = arith.constant dense<0.000000e+00> : vector<400x32xf32>
    %30 = tpu.matmul %28, %29, %cst_15 {dimension_numbers = #tpu.dot_dimension_numbers<[1], [0], [0], [1], [0, 0, 1, 1], [], []>} : vector<400x64xbf16>, vector<64x32xbf16>, vector<400x32xf32> -> vector<400x32xf32>
    %31 = arith.addf %26, %30 : vector<400x32xf32>
    %32 = vector.extract_strided_slice %15 {offsets = [1, 1, 0, 0], sizes = [5, 5, 16, 64], strides = [1, 1, 1, 1]} : vector<6x6x16x64xbf16> to vector<5x5x16x64xbf16>
    %33 = vector.shape_cast %32 : vector<5x5x16x64xbf16> to vector<400x64xbf16>
    %c192 = arith.constant 192 : index
    %c0_16 = arith.constant 0 : index
    %34 = vector.load %arg4[%c192, %c0_16] : memref<256x32xbf16, #tpu.memory_space<vmem>>, vector<64x32xbf16>
    %cst_17 = arith.constant dense<0.000000e+00> : vector<400x32xf32>
    %35 = tpu.matmul %33, %34, %cst_17 {dimension_numbers = #tpu.dot_dimension_numbers<[1], [0], [0], [1], [0, 0, 1, 1], [], []>} : vector<400x64xbf16>, vector<64x32xbf16>, vector<400x32xf32> -> vector<400x32xf32>
    %36 = arith.addf %31, %35 : vector<400x32xf32>
    %c0_18 = arith.constant 0 : index
    %c0_19 = arith.constant 0 : index
    %37 = vector.load %arg5[%c0_18, %c0_19] : memref<1x32xf32, #tpu.memory_space<vmem>>, vector<1x32xf32>
    %38 = vector.broadcast %37 : vector<1x32xf32> to vector<400x32xf32>
    %39 = arith.addf %36, %38 : vector<400x32xf32>
    %cst_20 = arith.constant 0.000000e+00 : f32
    %40 = vector.broadcast %cst_20 : f32 to vector<400x32xf32>
    %41 = arith.maximumf %39, %40 : vector<400x32xf32>
    %42 = arith.truncf %41 : vector<400x32xf32> to vector<400x32xbf16>
    %cst_21 = arith.constant 0.000000e+00 : f32
    %43 = vector.broadcast %cst_21 : f32 to vector<16x256xf32>
    %44 = vector.extract_strided_slice %42 {offsets = [0, 0], sizes = [16, 32], strides = [1, 1]} : vector<400x32xbf16> to vector<16x32xbf16>
    %c0_22 = arith.constant 0 : index
    %c0_23 = arith.constant 0 : index
    %45 = vector.load %arg6[%c0_22, %c0_23] : memref<800x256xbf16, #tpu.memory_space<vmem>>, vector<32x256xbf16>
    %cst_24 = arith.constant dense<0.000000e+00> : vector<16x256xf32>
    %46 = tpu.matmul %44, %45, %cst_24 {dimension_numbers = #tpu.dot_dimension_numbers<[1], [0], [0], [1], [0, 0, 1, 1], [], []>} : vector<16x32xbf16>, vector<32x256xbf16>, vector<16x256xf32> -> vector<16x256xf32>
    %47 = arith.addf %43, %46 : vector<16x256xf32>
    %48 = vector.extract_strided_slice %42 {offsets = [16, 0], sizes = [16, 32], strides = [1, 1]} : vector<400x32xbf16> to vector<16x32xbf16>
    %c32 = arith.constant 32 : index
    %c0_25 = arith.constant 0 : index
    %49 = vector.load %arg6[%c32, %c0_25] : memref<800x256xbf16, #tpu.memory_space<vmem>>, vector<32x256xbf16>
    %cst_26 = arith.constant dense<0.000000e+00> : vector<16x256xf32>
    %50 = tpu.matmul %48, %49, %cst_26 {dimension_numbers = #tpu.dot_dimension_numbers<[1], [0], [0], [1], [0, 0, 1, 1], [], []>} : vector<16x32xbf16>, vector<32x256xbf16>, vector<16x256xf32> -> vector<16x256xf32>
    %51 = arith.addf %47, %50 : vector<16x256xf32>
    %52 = vector.extract_strided_slice %42 {offsets = [32, 0], sizes = [16, 32], strides = [1, 1]} : vector<400x32xbf16> to vector<16x32xbf16>
    %c64_27 = arith.constant 64 : index
    %c0_28 = arith.constant 0 : index
    %53 = vector.load %arg6[%c64_27, %c0_28] : memref<800x256xbf16, #tpu.memory_space<vmem>>, vector<32x256xbf16>
    %cst_29 = arith.constant dense<0.000000e+00> : vector<16x256xf32>
    %54 = tpu.matmul %52, %53, %cst_29 {dimension_numbers = #tpu.dot_dimension_numbers<[1], [0], [0], [1], [0, 0, 1, 1], [], []>} : vector<16x32xbf16>, vector<32x256xbf16>, vector<16x256xf32> -> vector<16x256xf32>
    %55 = arith.addf %51, %54 : vector<16x256xf32>
    %56 = vector.extract_strided_slice %42 {offsets = [48, 0], sizes = [16, 32], strides = [1, 1]} : vector<400x32xbf16> to vector<16x32xbf16>
    %c96 = arith.constant 96 : index
    %c0_30 = arith.constant 0 : index
    %57 = vector.load %arg6[%c96, %c0_30] : memref<800x256xbf16, #tpu.memory_space<vmem>>, vector<32x256xbf16>
    %cst_31 = arith.constant dense<0.000000e+00> : vector<16x256xf32>
    %58 = tpu.matmul %56, %57, %cst_31 {dimension_numbers = #tpu.dot_dimension_numbers<[1], [0], [0], [1], [0, 0, 1, 1], [], []>} : vector<16x32xbf16>, vector<32x256xbf16>, vector<16x256xf32> -> vector<16x256xf32>
    %59 = arith.addf %55, %58 : vector<16x256xf32>
    %60 = vector.extract_strided_slice %42 {offsets = [64, 0], sizes = [16, 32], strides = [1, 1]} : vector<400x32xbf16> to vector<16x32xbf16>
    %c128_32 = arith.constant 128 : index
    %c0_33 = arith.constant 0 : index
    %61 = vector.load %arg6[%c128_32, %c0_33] : memref<800x256xbf16, #tpu.memory_space<vmem>>, vector<32x256xbf16>
    %cst_34 = arith.constant dense<0.000000e+00> : vector<16x256xf32>
    %62 = tpu.matmul %60, %61, %cst_34 {dimension_numbers = #tpu.dot_dimension_numbers<[1], [0], [0], [1], [0, 0, 1, 1], [], []>} : vector<16x32xbf16>, vector<32x256xbf16>, vector<16x256xf32> -> vector<16x256xf32>
    %63 = arith.addf %59, %62 : vector<16x256xf32>
    %64 = vector.extract_strided_slice %42 {offsets = [80, 0], sizes = [16, 32], strides = [1, 1]} : vector<400x32xbf16> to vector<16x32xbf16>
    %c160 = arith.constant 160 : index
    %c0_35 = arith.constant 0 : index
    %65 = vector.load %arg6[%c160, %c0_35] : memref<800x256xbf16, #tpu.memory_space<vmem>>, vector<32x256xbf16>
    %cst_36 = arith.constant dense<0.000000e+00> : vector<16x256xf32>
    %66 = tpu.matmul %64, %65, %cst_36 {dimension_numbers = #tpu.dot_dimension_numbers<[1], [0], [0], [1], [0, 0, 1, 1], [], []>} : vector<16x32xbf16>, vector<32x256xbf16>, vector<16x256xf32> -> vector<16x256xf32>
    %67 = arith.addf %63, %66 : vector<16x256xf32>
    %68 = vector.extract_strided_slice %42 {offsets = [96, 0], sizes = [16, 32], strides = [1, 1]} : vector<400x32xbf16> to vector<16x32xbf16>
    %c192_37 = arith.constant 192 : index
    %c0_38 = arith.constant 0 : index
    %69 = vector.load %arg6[%c192_37, %c0_38] : memref<800x256xbf16, #tpu.memory_space<vmem>>, vector<32x256xbf16>
    %cst_39 = arith.constant dense<0.000000e+00> : vector<16x256xf32>
    %70 = tpu.matmul %68, %69, %cst_39 {dimension_numbers = #tpu.dot_dimension_numbers<[1], [0], [0], [1], [0, 0, 1, 1], [], []>} : vector<16x32xbf16>, vector<32x256xbf16>, vector<16x256xf32> -> vector<16x256xf32>
    %71 = arith.addf %67, %70 : vector<16x256xf32>
    %72 = vector.extract_strided_slice %42 {offsets = [112, 0], sizes = [16, 32], strides = [1, 1]} : vector<400x32xbf16> to vector<16x32xbf16>
    %c224 = arith.constant 224 : index
    %c0_40 = arith.constant 0 : index
    %73 = vector.load %arg6[%c224, %c0_40] : memref<800x256xbf16, #tpu.memory_space<vmem>>, vector<32x256xbf16>
    %cst_41 = arith.constant dense<0.000000e+00> : vector<16x256xf32>
    %74 = tpu.matmul %72, %73, %cst_41 {dimension_numbers = #tpu.dot_dimension_numbers<[1], [0], [0], [1], [0, 0, 1, 1], [], []>} : vector<16x32xbf16>, vector<32x256xbf16>, vector<16x256xf32> -> vector<16x256xf32>
    %75 = arith.addf %71, %74 : vector<16x256xf32>
    %76 = vector.extract_strided_slice %42 {offsets = [128, 0], sizes = [16, 32], strides = [1, 1]} : vector<400x32xbf16> to vector<16x32xbf16>
    %c256 = arith.constant 256 : index
    %c0_42 = arith.constant 0 : index
    %77 = vector.load %arg6[%c256, %c0_42] : memref<800x256xbf16, #tpu.memory_space<vmem>>, vector<32x256xbf16>
    %cst_43 = arith.constant dense<0.000000e+00> : vector<16x256xf32>
    %78 = tpu.matmul %76, %77, %cst_43 {dimension_numbers = #tpu.dot_dimension_numbers<[1], [0], [0], [1], [0, 0, 1, 1], [], []>} : vector<16x32xbf16>, vector<32x256xbf16>, vector<16x256xf32> -> vector<16x256xf32>
    %79 = arith.addf %75, %78 : vector<16x256xf32>
    %80 = vector.extract_strided_slice %42 {offsets = [144, 0], sizes = [16, 32], strides = [1, 1]} : vector<400x32xbf16> to vector<16x32xbf16>
    %c288 = arith.constant 288 : index
    %c0_44 = arith.constant 0 : index
    %81 = vector.load %arg6[%c288, %c0_44] : memref<800x256xbf16, #tpu.memory_space<vmem>>, vector<32x256xbf16>
    %cst_45 = arith.constant dense<0.000000e+00> : vector<16x256xf32>
    %82 = tpu.matmul %80, %81, %cst_45 {dimension_numbers = #tpu.dot_dimension_numbers<[1], [0], [0], [1], [0, 0, 1, 1], [], []>} : vector<16x32xbf16>, vector<32x256xbf16>, vector<16x256xf32> -> vector<16x256xf32>
    %83 = arith.addf %79, %82 : vector<16x256xf32>
    %84 = vector.extract_strided_slice %42 {offsets = [160, 0], sizes = [16, 32], strides = [1, 1]} : vector<400x32xbf16> to vector<16x32xbf16>
    %c320 = arith.constant 320 : index
    %c0_46 = arith.constant 0 : index
    %85 = vector.load %arg6[%c320, %c0_46] : memref<800x256xbf16, #tpu.memory_space<vmem>>, vector<32x256xbf16>
    %cst_47 = arith.constant dense<0.000000e+00> : vector<16x256xf32>
    %86 = tpu.matmul %84, %85, %cst_47 {dimension_numbers = #tpu.dot_dimension_numbers<[1], [0], [0], [1], [0, 0, 1, 1], [], []>} : vector<16x32xbf16>, vector<32x256xbf16>, vector<16x256xf32> -> vector<16x256xf32>
    %87 = arith.addf %83, %86 : vector<16x256xf32>
    %88 = vector.extract_strided_slice %42 {offsets = [176, 0], sizes = [16, 32], strides = [1, 1]} : vector<400x32xbf16> to vector<16x32xbf16>
    %c352 = arith.constant 352 : index
    %c0_48 = arith.constant 0 : index
    %89 = vector.load %arg6[%c352, %c0_48] : memref<800x256xbf16, #tpu.memory_space<vmem>>, vector<32x256xbf16>
    %cst_49 = arith.constant dense<0.000000e+00> : vector<16x256xf32>
    %90 = tpu.matmul %88, %89, %cst_49 {dimension_numbers = #tpu.dot_dimension_numbers<[1], [0], [0], [1], [0, 0, 1, 1], [], []>} : vector<16x32xbf16>, vector<32x256xbf16>, vector<16x256xf32> -> vector<16x256xf32>
    %91 = arith.addf %87, %90 : vector<16x256xf32>
    %92 = vector.extract_strided_slice %42 {offsets = [192, 0], sizes = [16, 32], strides = [1, 1]} : vector<400x32xbf16> to vector<16x32xbf16>
    %c384 = arith.constant 384 : index
    %c0_50 = arith.constant 0 : index
    %93 = vector.load %arg6[%c384, %c0_50] : memref<800x256xbf16, #tpu.memory_space<vmem>>, vector<32x256xbf16>
    %cst_51 = arith.constant dense<0.000000e+00> : vector<16x256xf32>
    %94 = tpu.matmul %92, %93, %cst_51 {dimension_numbers = #tpu.dot_dimension_numbers<[1], [0], [0], [1], [0, 0, 1, 1], [], []>} : vector<16x32xbf16>, vector<32x256xbf16>, vector<16x256xf32> -> vector<16x256xf32>
    %95 = arith.addf %91, %94 : vector<16x256xf32>
    %96 = vector.extract_strided_slice %42 {offsets = [208, 0], sizes = [16, 32], strides = [1, 1]} : vector<400x32xbf16> to vector<16x32xbf16>
    %c416 = arith.constant 416 : index
    %c0_52 = arith.constant 0 : index
    %97 = vector.load %arg6[%c416, %c0_52] : memref<800x256xbf16, #tpu.memory_space<vmem>>, vector<32x256xbf16>
    %cst_53 = arith.constant dense<0.000000e+00> : vector<16x256xf32>
    %98 = tpu.matmul %96, %97, %cst_53 {dimension_numbers = #tpu.dot_dimension_numbers<[1], [0], [0], [1], [0, 0, 1, 1], [], []>} : vector<16x32xbf16>, vector<32x256xbf16>, vector<16x256xf32> -> vector<16x256xf32>
    %99 = arith.addf %95, %98 : vector<16x256xf32>
    %100 = vector.extract_strided_slice %42 {offsets = [224, 0], sizes = [16, 32], strides = [1, 1]} : vector<400x32xbf16> to vector<16x32xbf16>
    %c448 = arith.constant 448 : index
    %c0_54 = arith.constant 0 : index
    %101 = vector.load %arg6[%c448, %c0_54] : memref<800x256xbf16, #tpu.memory_space<vmem>>, vector<32x256xbf16>
    %cst_55 = arith.constant dense<0.000000e+00> : vector<16x256xf32>
    %102 = tpu.matmul %100, %101, %cst_55 {dimension_numbers = #tpu.dot_dimension_numbers<[1], [0], [0], [1], [0, 0, 1, 1], [], []>} : vector<16x32xbf16>, vector<32x256xbf16>, vector<16x256xf32> -> vector<16x256xf32>
    %103 = arith.addf %99, %102 : vector<16x256xf32>
    %104 = vector.extract_strided_slice %42 {offsets = [240, 0], sizes = [16, 32], strides = [1, 1]} : vector<400x32xbf16> to vector<16x32xbf16>
    %c480 = arith.constant 480 : index
    %c0_56 = arith.constant 0 : index
    %105 = vector.load %arg6[%c480, %c0_56] : memref<800x256xbf16, #tpu.memory_space<vmem>>, vector<32x256xbf16>
    %cst_57 = arith.constant dense<0.000000e+00> : vector<16x256xf32>
    %106 = tpu.matmul %104, %105, %cst_57 {dimension_numbers = #tpu.dot_dimension_numbers<[1], [0], [0], [1], [0, 0, 1, 1], [], []>} : vector<16x32xbf16>, vector<32x256xbf16>, vector<16x256xf32> -> vector<16x256xf32>
    %107 = arith.addf %103, %106 : vector<16x256xf32>
    %108 = vector.extract_strided_slice %42 {offsets = [256, 0], sizes = [16, 32], strides = [1, 1]} : vector<400x32xbf16> to vector<16x32xbf16>
    %c512 = arith.constant 512 : index
    %c0_58 = arith.constant 0 : index
    %109 = vector.load %arg6[%c512, %c0_58] : memref<800x256xbf16, #tpu.memory_space<vmem>>, vector<32x256xbf16>
    %cst_59 = arith.constant dense<0.000000e+00> : vector<16x256xf32>
    %110 = tpu.matmul %108, %109, %cst_59 {dimension_numbers = #tpu.dot_dimension_numbers<[1], [0], [0], [1], [0, 0, 1, 1], [], []>} : vector<16x32xbf16>, vector<32x256xbf16>, vector<16x256xf32> -> vector<16x256xf32>
    %111 = arith.addf %107, %110 : vector<16x256xf32>
    %112 = vector.extract_strided_slice %42 {offsets = [272, 0], sizes = [16, 32], strides = [1, 1]} : vector<400x32xbf16> to vector<16x32xbf16>
    %c544 = arith.constant 544 : index
    %c0_60 = arith.constant 0 : index
    %113 = vector.load %arg6[%c544, %c0_60] : memref<800x256xbf16, #tpu.memory_space<vmem>>, vector<32x256xbf16>
    %cst_61 = arith.constant dense<0.000000e+00> : vector<16x256xf32>
    %114 = tpu.matmul %112, %113, %cst_61 {dimension_numbers = #tpu.dot_dimension_numbers<[1], [0], [0], [1], [0, 0, 1, 1], [], []>} : vector<16x32xbf16>, vector<32x256xbf16>, vector<16x256xf32> -> vector<16x256xf32>
    %115 = arith.addf %111, %114 : vector<16x256xf32>
    %116 = vector.extract_strided_slice %42 {offsets = [288, 0], sizes = [16, 32], strides = [1, 1]} : vector<400x32xbf16> to vector<16x32xbf16>
    %c576 = arith.constant 576 : index
    %c0_62 = arith.constant 0 : index
    %117 = vector.load %arg6[%c576, %c0_62] : memref<800x256xbf16, #tpu.memory_space<vmem>>, vector<32x256xbf16>
    %cst_63 = arith.constant dense<0.000000e+00> : vector<16x256xf32>
    %118 = tpu.matmul %116, %117, %cst_63 {dimension_numbers = #tpu.dot_dimension_numbers<[1], [0], [0], [1], [0, 0, 1, 1], [], []>} : vector<16x32xbf16>, vector<32x256xbf16>, vector<16x256xf32> -> vector<16x256xf32>
    %119 = arith.addf %115, %118 : vector<16x256xf32>
    %120 = vector.extract_strided_slice %42 {offsets = [304, 0], sizes = [16, 32], strides = [1, 1]} : vector<400x32xbf16> to vector<16x32xbf16>
    %c608 = arith.constant 608 : index
    %c0_64 = arith.constant 0 : index
    %121 = vector.load %arg6[%c608, %c0_64] : memref<800x256xbf16, #tpu.memory_space<vmem>>, vector<32x256xbf16>
    %cst_65 = arith.constant dense<0.000000e+00> : vector<16x256xf32>
    %122 = tpu.matmul %120, %121, %cst_65 {dimension_numbers = #tpu.dot_dimension_numbers<[1], [0], [0], [1], [0, 0, 1, 1], [], []>} : vector<16x32xbf16>, vector<32x256xbf16>, vector<16x256xf32> -> vector<16x256xf32>
    %123 = arith.addf %119, %122 : vector<16x256xf32>
    %124 = vector.extract_strided_slice %42 {offsets = [320, 0], sizes = [16, 32], strides = [1, 1]} : vector<400x32xbf16> to vector<16x32xbf16>
    %c640 = arith.constant 640 : index
    %c0_66 = arith.constant 0 : index
    %125 = vector.load %arg6[%c640, %c0_66] : memref<800x256xbf16, #tpu.memory_space<vmem>>, vector<32x256xbf16>
    %cst_67 = arith.constant dense<0.000000e+00> : vector<16x256xf32>
    %126 = tpu.matmul %124, %125, %cst_67 {dimension_numbers = #tpu.dot_dimension_numbers<[1], [0], [0], [1], [0, 0, 1, 1], [], []>} : vector<16x32xbf16>, vector<32x256xbf16>, vector<16x256xf32> -> vector<16x256xf32>
    %127 = arith.addf %123, %126 : vector<16x256xf32>
    %128 = vector.extract_strided_slice %42 {offsets = [336, 0], sizes = [16, 32], strides = [1, 1]} : vector<400x32xbf16> to vector<16x32xbf16>
    %c672 = arith.constant 672 : index
    %c0_68 = arith.constant 0 : index
    %129 = vector.load %arg6[%c672, %c0_68] : memref<800x256xbf16, #tpu.memory_space<vmem>>, vector<32x256xbf16>
    %cst_69 = arith.constant dense<0.000000e+00> : vector<16x256xf32>
    %130 = tpu.matmul %128, %129, %cst_69 {dimension_numbers = #tpu.dot_dimension_numbers<[1], [0], [0], [1], [0, 0, 1, 1], [], []>} : vector<16x32xbf16>, vector<32x256xbf16>, vector<16x256xf32> -> vector<16x256xf32>
    %131 = arith.addf %127, %130 : vector<16x256xf32>
    %132 = vector.extract_strided_slice %42 {offsets = [352, 0], sizes = [16, 32], strides = [1, 1]} : vector<400x32xbf16> to vector<16x32xbf16>
    %c704 = arith.constant 704 : index
    %c0_70 = arith.constant 0 : index
    %133 = vector.load %arg6[%c704, %c0_70] : memref<800x256xbf16, #tpu.memory_space<vmem>>, vector<32x256xbf16>
    %cst_71 = arith.constant dense<0.000000e+00> : vector<16x256xf32>
    %134 = tpu.matmul %132, %133, %cst_71 {dimension_numbers = #tpu.dot_dimension_numbers<[1], [0], [0], [1], [0, 0, 1, 1], [], []>} : vector<16x32xbf16>, vector<32x256xbf16>, vector<16x256xf32> -> vector<16x256xf32>
    %135 = arith.addf %131, %134 : vector<16x256xf32>
    %136 = vector.extract_strided_slice %42 {offsets = [368, 0], sizes = [16, 32], strides = [1, 1]} : vector<400x32xbf16> to vector<16x32xbf16>
    %c736 = arith.constant 736 : index
    %c0_72 = arith.constant 0 : index
    %137 = vector.load %arg6[%c736, %c0_72] : memref<800x256xbf16, #tpu.memory_space<vmem>>, vector<32x256xbf16>
    %cst_73 = arith.constant dense<0.000000e+00> : vector<16x256xf32>
    %138 = tpu.matmul %136, %137, %cst_73 {dimension_numbers = #tpu.dot_dimension_numbers<[1], [0], [0], [1], [0, 0, 1, 1], [], []>} : vector<16x32xbf16>, vector<32x256xbf16>, vector<16x256xf32> -> vector<16x256xf32>
    %139 = arith.addf %135, %138 : vector<16x256xf32>
    %140 = vector.extract_strided_slice %42 {offsets = [384, 0], sizes = [16, 32], strides = [1, 1]} : vector<400x32xbf16> to vector<16x32xbf16>
    %c768 = arith.constant 768 : index
    %c0_74 = arith.constant 0 : index
    %141 = vector.load %arg6[%c768, %c0_74] : memref<800x256xbf16, #tpu.memory_space<vmem>>, vector<32x256xbf16>
    %cst_75 = arith.constant dense<0.000000e+00> : vector<16x256xf32>
    %142 = tpu.matmul %140, %141, %cst_75 {dimension_numbers = #tpu.dot_dimension_numbers<[1], [0], [0], [1], [0, 0, 1, 1], [], []>} : vector<16x32xbf16>, vector<32x256xbf16>, vector<16x256xf32> -> vector<16x256xf32>
    %143 = arith.addf %139, %142 : vector<16x256xf32>
    %c0_76 = arith.constant 0 : index
    %c0_77 = arith.constant 0 : index
    %144 = vector.load %arg7[%c0_76, %c0_77] : memref<1x256xf32, #tpu.memory_space<vmem>>, vector<1x256xf32>
    %145 = vector.broadcast %144 : vector<1x256xf32> to vector<16x256xf32>
    %146 = arith.addf %143, %145 : vector<16x256xf32>
    %cst_78 = arith.constant 0.000000e+00 : f32
    %147 = vector.broadcast %cst_78 : f32 to vector<16x256xf32>
    %148 = arith.maximumf %146, %147 : vector<16x256xf32>
    %149 = arith.truncf %148 : vector<16x256xf32> to vector<16x256xbf16>
    %c0_79 = arith.constant 0 : index
    %c0_80 = arith.constant 0 : index
    %150 = vector.load %arg8[%c0_79, %c0_80] : memref<256x128xbf16, #tpu.memory_space<vmem>>, vector<256x128xbf16>
    %cst_81 = arith.constant dense<0.000000e+00> : vector<16x128xf32>
    %151 = tpu.matmul %149, %150, %cst_81 {dimension_numbers = #tpu.dot_dimension_numbers<[1], [0], [0], [1], [0, 0, 1, 1], [], []>} : vector<16x256xbf16>, vector<256x128xbf16>, vector<16x128xf32> -> vector<16x128xf32>
    %c0_82 = arith.constant 0 : index
    %c0_83 = arith.constant 0 : index
    %152 = vector.load %arg9[%c0_82, %c0_83] : memref<1x128xf32, #tpu.memory_space<vmem>>, vector<1x128xf32>
    %153 = vector.broadcast %152 : vector<1x128xf32> to vector<16x128xf32>
    %154 = arith.addf %151, %153 : vector<16x128xf32>
    %c0_84 = arith.constant 0 : index
    %c0_85 = arith.constant 0 : index
    %155 = vector.load %arg10[%c0_84, %c0_85] : memref<16x128xf32, #tpu.memory_space<vmem>>, vector<16x128xf32>
    tpu.vector_store %arg10[%c0_84, %c0_85], %154 {strides = array<i32>} : memref<16x128xf32, #tpu.memory_space<vmem>>, vector<16x128xf32>,
    return
  }
  func.func @transform_0(%arg0: i32) -> (i32, i32, i32, i32) {
    %c0_i32 = arith.constant 0 : i32
    %c0_i32_0 = arith.constant 0 : i32
    %c0_i32_1 = arith.constant 0 : i32
    %c0_i32_2 = arith.constant 0 : i32
    return %c0_i32, %c0_i32_0, %arg0, %c0_i32_1 : i32, i32, i32, i32
  }
  func.func @transform_1(%arg0: i32) -> (i32, i32) {
    %c0_i32 = arith.constant 0 : i32
    %c0_i32_0 = arith.constant 0 : i32
    %c0_i32_1 = arith.constant 0 : i32
    return %c0_i32, %c0_i32_0 : i32, i32
  }
  func.func @transform_2(%arg0: i32) -> (i32, i32) {
    %c0_i32 = arith.constant 0 : i32
    %c0_i32_0 = arith.constant 0 : i32
    %c0_i32_1 = arith.constant 0 : i32
    return %c0_i32, %c0_i32_0 : i32, i32
  }
  func.func @transform_3(%arg0: i32) -> (i32, i32) {
    %c0_i32 = arith.constant 0 : i32
    %c0_i32_0 = arith.constant 0 : i32
    %c0_i32_1 = arith.constant 0 : i32
    return %c0_i32, %c0_i32_0 : i32, i32
  }
  func.func @transform_4(%arg0: i32) -> (i32, i32) {
    %c0_i32 = arith.constant 0 : i32
    %c0_i32_0 = arith.constant 0 : i32
    %c0_i32_1 = arith.constant 0 : i32
    return %c0_i32, %c0_i32_0 : i32, i32
  }
  func.func @transform_5(%arg0: i32) -> (i32, i32) {
    %c0_i32 = arith.constant 0 : i32
    %c0_i32_0 = arith.constant 0 : i32
    %c0_i32_1 = arith.constant 0 : i32
    return %c0_i32, %c0_i32_0 : i32, i32
  }
  func.func @transform_6(%arg0: i32) -> (i32, i32) {
    %c0_i32 = arith.constant 0 : i32
    %c0_i32_0 = arith.constant 0 : i32
    %c0_i32_1 = arith.constant 0 : i32
    return %c0_i32, %c0_i32_0 : i32, i32
  }
  func.func @transform_7(%arg0: i32) -> (i32, i32) {
    %c0_i32 = arith.constant 0 : i32
    %c0_i32_0 = arith.constant 0 : i32
    %c0_i32_1 = arith.constant 0 : i32
    return %c0_i32, %c0_i32_0 : i32, i32
  }
  func.func @transform_8(%arg0: i32) -> (i32, i32) {
    %c0_i32 = arith.constant 0 : i32
    %c0_i32_0 = arith.constant 0 : i32
    %c0_i32_1 = arith.constant 0 : i32
    return %c0_i32, %c0_i32_0 : i32, i32
  }
  func.func @transform_9(%arg0: i32) -> (i32, i32) {
    %c0_i32 = arith.constant 0 : i32
    %c0_i32_0 = arith.constant 0 : i32
    return %arg0, %c0_i32 : i32, i32
  }
}

</mosaic_0001>

<llo_original>
// kernel: cnn_ddqn_forward.1
$region0: #{cnn_ddqn_forward.1}
  #allocation0 [shape = 'u32[]', space=smem, size = 0x4, offset = 0x4, fixed_abs, tag = 'smem constant byte address 0x4 - core index']
  #allocation1 [shape = 'u32[144,128]{1,0:T(1,128)}', space=vmem, size = 0x12000, scoped, tag = 'internal scratch']
  %s0 = inlined_call_operand.vmem [shape: bf16[7,7,16,16], index: 0, kind: input, shape index: {}]
  %s1 = inlined_call_operand.vmem [shape: bf16[64,64], index: 1, kind: input, shape index: {}]
  %s2 = inlined_call_operand.vmem [shape: f32[1,64], index: 2, kind: input, shape index: {}]
  %s3 = inlined_call_operand.vmem [shape: bf16[256,32], index: 3, kind: input, shape index: {}]
  %s4 = inlined_call_operand.vmem [shape: f32[1,32], index: 4, kind: input, shape index: {}]
  %s5 = inlined_call_operand.vmem [shape: bf16[800,256], index: 5, kind: input, shape index: {}]
  %s6 = inlined_call_operand.vmem [shape: f32[1,256], index: 6, kind: input, shape index: {}]
  %s7 = inlined_call_operand.vmem [shape: bf16[256,128], index: 7, kind: input, shape index: {}]
  %s8 = inlined_call_operand.vmem [shape: f32[1,128], index: 8, kind: input, shape index: {}]
  %s9 = inlined_call_operand.vmem [shape: f32[16,128], index: 9, kind: output, shape index: {}]
  %s10 = sld [smem:[#allocation0]]
  $region46: #{cnn_ddqn_forward.1} parent=0
    _
  %s12 = ssub.s32 1, %s10
  %s13 = scalar_select 0, %s12, %s10
  // Predicated region
  $region2: #{cnn_ddqn_forward.1} parent=0 // pred_check
    _
  $region3: #{cnn_ddqn_forward.1} parent=0 // pred_check_branch
    %15 = sbr.rel (0) target = $region5
  $region4: #{cnn_ddqn_forward.1} parent=0 // pred_region
    _
  $region5: #{cnn_ddqn_forward.1} parent=0 // pred_fallthru
    _
  // Predicated region
  $region6: #{cnn_ddqn_forward.1} parent=0 // pred_check
    _
  $region7: #{cnn_ddqn_forward.1} parent=0 // pred_check_branch
    %17 = sbr.rel (0) target = $region9
  $region8: #{cnn_ddqn_forward.1} parent=0 // pred_region
    _
  $region9: #{cnn_ddqn_forward.1} parent=0 // pred_fallthru
    _
  // Predicated region
  $region10: #{cnn_ddqn_forward.1} parent=0 // pred_check
    _
  $region11: #{cnn_ddqn_forward.1} parent=0 // pred_check_branch
    %19 = sbr.rel (0) target = $region13
  $region12: #{cnn_ddqn_forward.1} parent=0 // pred_region
    _
  $region13: #{cnn_ddqn_forward.1} parent=0 // pred_fallthru
    _
  // Predicated region
  $region14: #{cnn_ddqn_forward.1} parent=0 // pred_check
    _
  $region15: #{cnn_ddqn_forward.1} parent=0 // pred_check_branch
    %21 = sbr.rel (0) target = $region17
  $region16: #{cnn_ddqn_forward.1} parent=0 // pred_region
    _
  $region17: #{cnn_ddqn_forward.1} parent=0 // pred_fallthru
    _
  // Predicated region
  $region18: #{cnn_ddqn_forward.1} parent=0 // pred_check
    _
  $region19: #{cnn_ddqn_forward.1} parent=0 // pred_check_branch
    %23 = sbr.rel (0) target = $region21
  $region20: #{cnn_ddqn_forward.1} parent=0 // pred_region
    _
  $region21: #{cnn_ddqn_forward.1} parent=0 // pred_fallthru
    _
  // Predicated region
  $region22: #{cnn_ddqn_forward.1} parent=0 // pred_check
    _
  $region23: #{cnn_ddqn_forward.1} parent=0 // pred_check_branch
    %25 = sbr.rel (0) target = $region25
  $region24: #{cnn_ddqn_forward.1} parent=0 // pred_region
    _
  $region25: #{cnn_ddqn_forward.1} parent=0 // pred_fallthru
    _
  // Predicated region
  $region26: #{cnn_ddqn_forward.1} parent=0 // pred_check
    _
  $region27: #{cnn_ddqn_forward.1} parent=0 // pred_check_branch
    %27 = sbr.rel (0) target = $region29
  $region28: #{cnn_ddqn_forward.1} parent=0 // pred_region
    _
  $region29: #{cnn_ddqn_forward.1} parent=0 // pred_fallthru
    _
  // Predicated region
  $region30: #{cnn_ddqn_forward.1} parent=0 // pred_check
    _
  $region31: #{cnn_ddqn_forward.1} parent=0 // pred_check_branch
    %29 = sbr.rel (0) target = $region33
  $region32: #{cnn_ddqn_forward.1} parent=0 // pred_region
    _
  $region33: #{cnn_ddqn_forward.1} parent=0 // pred_fallthru
    _
  // Predicated region
  $region34: #{cnn_ddqn_forward.1} parent=0 // pred_check
    _
  $region35: #{cnn_ddqn_forward.1} parent=0 // pred_check_branch
    %31 = sbr.rel (0) target = $region37
  $region36: #{cnn_ddqn_forward.1} parent=0 // pred_region
    _
  $region37: #{cnn_ddqn_forward.1} parent=0 // pred_fallthru
    _
  %v33 = vld [vmem:[%s0] sm:$0xf]
  %v34 = vld [vmem:[%s0 + $0x4] sm:$0xf]
  %v35 = vld [vmem:[%s0 + $0x8] sm:$0xf]
  %v36 = vld [vmem:[%s0 + $0xc] sm:$0xf]
  %v37 = vld [vmem:[%s0 + $0x10] sm:$0xf]
  %v38 = vld [vmem:[%s0 + $0x14] sm:$0xf]
  %v39 = vld [vmem:[%s0 + $0x18] sm:$0xf]
  %v40 = vld [vmem:[%s0 + $0x1c] sm:$0xf]
  %v41 = vld [vmem:[%s0 + $0x20] sm:$0xf]
  %v42 = vld [vmem:[%s0 + $0x24] sm:$0xf]
  %v43 = vld [vmem:[%s0 + $0x28] sm:$0xf]
  %v44 = vld [vmem:[%s0 + $0x2c] sm:$0xf]
  %v45 = vld [vmem:[%s0 + $0x30] sm:$0xf]
  %v46 = vld [vmem:[%s0 + $0x34] sm:$0xf]
  %v47 = vld [vmem:[%s0 + $0x38] sm:$0xf]
  %v48 = vld [vmem:[%s0 + $0x3c] sm:$0xf]
  %v49 = vld [vmem:[%s0 + $0x40] sm:$0xf]
  %v50 = vld [vmem:[%s0 + $0x44] sm:$0xf]
  %v51 = vld [vmem:[%s0 + $0x48] sm:$0xf]
  %v52 = vld [vmem:[%s0 + $0x4c] sm:$0xf]
  %v53 = vld [vmem:[%s0 + $0x50] sm:$0xf]
  %v54 = vld [vmem:[%s0 + $0x54] sm:$0xf]
  %v55 = vld [vmem:[%s0 + $0x58] sm:$0xf]
  %v56 = vld [vmem:[%s0 + $0x5c] sm:$0xf]
  %v57 = vld [vmem:[%s0 + $0x60] sm:$0xf]
  %v58 = vld [vmem:[%s0 + $0x64] sm:$0xf]
  %v59 = vld [vmem:[%s0 + $0x68] sm:$0xf]
  %v60 = vld [vmem:[%s0 + $0x6c] sm:$0xf]
  %v61 = vld [vmem:[%s0 + $0x70] sm:$0xf]
  %v62 = vld [vmem:[%s0 + $0x74] sm:$0xf]
  %v63 = vld [vmem:[%s0 + $0x78] sm:$0xf]
  %v64 = vld [vmem:[%s0 + $0x7c] sm:$0xf]
  %v65 = vld [vmem:[%s0 + $0x80] sm:$0xf]
  %v66 = vld [vmem:[%s0 + $0x84] sm:$0xf]
  %v67 = vld [vmem:[%s0 + $0x88] sm:$0xf]
  %v68 = vld [vmem:[%s0 + $0x8c] sm:$0xf]
  %v69 = vld [vmem:[%s0 + $0x90] sm:$0xf]
  %v70 = vld [vmem:[%s0 + $0x94] sm:$0xf]
  %v71 = vld [vmem:[%s0 + $0x98] sm:$0xf]
  %v72 = vld [vmem:[%s0 + $0x9c] sm:$0xf]
  %v73 = vld [vmem:[%s0 + $0xa0] sm:$0xf]
  %v74 = vld [vmem:[%s0 + $0xa4] sm:$0xf]
  %v75 = vld [vmem:[%s0 + $0xa8] sm:$0xf]
  %v76 = vld [vmem:[%s0 + $0xac] sm:$0xf]
  %v77 = vld [vmem:[%s0 + $0xb0] sm:$0xf]
  %v78 = vld [vmem:[%s0 + $0xb4] sm:$0xf]
  %v79 = vld [vmem:[%s0 + $0xb8] sm:$0xf]
  %v80 = vld [vmem:[%s0 + $0xbc] sm:$0xf]
  %v81 = vld [vmem:[%s0 + $0xc0] sm:$0xf]
  %v82 = vld [vmem:[%s0 + $0xc4] sm:$0xf]
  %v83 = vld [vmem:[%s0 + $0xc8] sm:$0xf]
  %v84 = vld [vmem:[%s0 + $0xcc] sm:$0xf]
  %v85 = vld [vmem:[%s0 + $0xd0] sm:$0xf]
  %v86 = vld [vmem:[%s0 + $0xd4] sm:$0xf]
  %v87 = vld [vmem:[%s0 + $0xd8] sm:$0xf]
  %v88 = vld [vmem:[%s0 + $0xdc] sm:$0xf]
  %v89 = vld [vmem:[%s0 + $0xe0] sm:$0xf]
  %v90 = vld [vmem:[%s0 + $0xe4] sm:$0xf]
  %v91 = vld [vmem:[%s0 + $0xe8] sm:$0xf]
  %v92 = vld [vmem:[%s0 + $0xec] sm:$0xf]
  %v93 = vld [vmem:[%s0 + $0xf0] sm:$0xf]
  %v94 = vld [vmem:[%s0 + $0xf4] sm:$0xf]
  %v95 = vld [vmem:[%s0 + $0xf8] sm:$0xf]
  %v96 = vld [vmem:[%s0 + $0xfc] sm:$0xf]
  %v97 = vld [vmem:[%s0 + $0x100] sm:$0xf]
  %v98 = vld [vmem:[%s0 + $0x104] sm:$0xf]
  %v99 = vld [vmem:[%s0 + $0x108] sm:$0xf]
  %v100 = vld [vmem:[%s0 + $0x10c] sm:$0xf]
  %v101 = vld [vmem:[%s0 + $0x110] sm:$0xf]
  %v102 = vld [vmem:[%s0 + $0x114] sm:$0xf]
  %v103 = vld [vmem:[%s0 + $0x118] sm:$0xf]
  %v104 = vld [vmem:[%s0 + $0x11c] sm:$0xf]
  %v105 = vld [vmem:[%s0 + $0x120] sm:$0xf]
  %v106 = vld [vmem:[%s0 + $0x124] sm:$0xf]
  %v107 = vld [vmem:[%s0 + $0x128] sm:$0xf]
  %v108 = vld [vmem:[%s0 + $0x12c] sm:$0xf]
  %v109 = vld [vmem:[%s0 + $0x130] sm:$0xf]
  %v110 = vld [vmem:[%s0 + $0x134] sm:$0xf]
  %v111 = vld [vmem:[%s0 + $0x138] sm:$0xf]
  %v112 = vld [vmem:[%s0 + $0x13c] sm:$0xf]
  %v113 = vld [vmem:[%s0 + $0x140] sm:$0xf]
  %v114 = vld [vmem:[%s0 + $0x144] sm:$0xf]
  %v115 = vld [vmem:[%s0 + $0x148] sm:$0xf]
  %v116 = vld [vmem:[%s0 + $0x14c] sm:$0xf]
  %v117 = vld [vmem:[%s0 + $0x150] sm:$0xf]
  %v118 = vld [vmem:[%s0 + $0x154] sm:$0xf]
  %v119 = vld [vmem:[%s0 + $0x158] sm:$0xf]
  %v120 = vld [vmem:[%s0 + $0x15c] sm:$0xf]
  %v121 = vld [vmem:[%s0 + $0x160] sm:$0xf]
  %v122 = vld [vmem:[%s0 + $0x164] sm:$0xf]
  %v123 = vld [vmem:[%s0 + $0x168] sm:$0xf]
  %v124 = vld [vmem:[%s0 + $0x16c] sm:$0xf]
  %v125 = vld [vmem:[%s0 + $0x170] sm:$0xf]
  %v126 = vld [vmem:[%s0 + $0x174] sm:$0xf]
  %v127 = vld [vmem:[%s0 + $0x178] sm:$0xf]
  %v128 = vld [vmem:[%s0 + $0x17c] sm:$0xf]
  %v129 = vld [vmem:[%s0 + $0x180] sm:$0xf]
  %v130 = vld [vmem:[%s0 + $0x184] sm:$0xf]
  %v203 = vunpack.c.l.b16 %v33
  %v204 = vunpack.c.l.b16 %v34
  %v205 = vunpack.c.l.b16 %v35
  %v206 = vunpack.c.l.b16 %v36
  %v207 = vunpack.c.l.b16 %v37
  %v208 = vunpack.c.l.b16 %v38
  %v209 = vunpack.c.l.b16 %v39
  %v210 = vunpack.c.l.b16 %v40
  %v211 = vunpack.c.l.b16 %v41
  %v212 = vunpack.c.l.b16 %v42
  %v213 = vunpack.c.l.b16 %v43
  %v214 = vunpack.c.l.b16 %v44
  %v215 = vunpack.c.l.b16 %v47
  %v216 = vunpack.c.l.b16 %v48
  %v217 = vunpack.c.l.b16 %v49
  %v218 = vunpack.c.l.b16 %v50
  %v219 = vunpack.c.l.b16 %v51
  %v220 = vunpack.c.l.b16 %v52
  %v221 = vunpack.c.l.b16 %v53
  %v222 = vunpack.c.l.b16 %v54
  %v223 = vunpack.c.l.b16 %v55
  %v224 = vunpack.c.l.b16 %v56
  %v225 = vunpack.c.l.b16 %v57
  %v226 = vunpack.c.l.b16 %v58
  %v227 = vunpack.c.l.b16 %v61
  %v228 = vunpack.c.l.b16 %v62
  %v229 = vunpack.c.l.b16 %v63
  %v230 = vunpack.c.l.b16 %v64
  %v231 = vunpack.c.l.b16 %v65
  %v232 = vunpack.c.l.b16 %v66
  %v233 = vunpack.c.l.b16 %v67
  %v234 = vunpack.c.l.b16 %v68
  %v235 = vunpack.c.l.b16 %v69
  %v236 = vunpack.c.l.b16 %v70
  %v237 = vunpack.c.l.b16 %v71
  %v238 = vunpack.c.l.b16 %v72
  %v239 = vunpack.c.l.b16 %v75
  %v240 = vunpack.c.l.b16 %v76
  %v241 = vunpack.c.l.b16 %v77
  %v242 = vunpack.c.l.b16 %v78
  %v243 = vunpack.c.l.b16 %v79
  %v244 = vunpack.c.l.b16 %v80
  %v245 = vunpack.c.l.b16 %v81
  %v246 = vunpack.c.l.b16 %v82
  %v247 = vunpack.c.l.b16 %v83
  %v248 = vunpack.c.l.b16 %v84
  %v249 = vunpack.c.l.b16 %v85
  %v250 = vunpack.c.l.b16 %v86
  %v251 = vunpack.c.l.b16 %v89
  %v252 = vunpack.c.l.b16 %v90
  %v253 = vunpack.c.l.b16 %v91
  %v254 = vunpack.c.l.b16 %v92
  %v255 = vunpack.c.l.b16 %v93
  %v256 = vunpack.c.l.b16 %v94
  %v257 = vunpack.c.l.b16 %v95
  %v258 = vunpack.c.l.b16 %v96
  %v259 = vunpack.c.l.b16 %v97
  %v260 = vunpack.c.l.b16 %v98
  %v261 = vunpack.c.l.b16 %v99
  %v262 = vunpack.c.l.b16 %v100
  %v263 = vunpack.c.l.b16 %v103
  %v264 = vunpack.c.l.b16 %v104
  %v265 = vunpack.c.l.b16 %v105
  %v266 = vunpack.c.l.b16 %v106
  %v267 = vunpack.c.l.b16 %v107
  %v268 = vunpack.c.l.b16 %v108
  %v269 = vunpack.c.l.b16 %v109
  %v270 = vunpack.c.l.b16 %v110
  %v271 = vunpack.c.l.b16 %v111
  %v272 = vunpack.c.l.b16 %v112
  %v273 = vunpack.c.l.b16 %v113
  %v274 = vunpack.c.l.b16 %v114
  %v275 = vpack.c.b16 %v204, %v203
  %v276 = vpack.c.b16 %v206, %v205
  %v277 = vpack.c.b16 %v208, %v207
  %v278 = vpack.c.b16 %v210, %v209
  %v279 = vpack.c.b16 %v212, %v211
  %v280 = vpack.c.b16 %v214, %v213
  %v281 = vpack.c.b16 %v216, %v215
  %v282 = vpack.c.b16 %v218, %v217
  %v283 = vpack.c.b16 %v220, %v219
  %v284 = vpack.c.b16 %v222, %v221
  %v285 = vpack.c.b16 %v224, %v223
  %v286 = vpack.c.b16 %v226, %v225
  %v287 = vpack.c.b16 %v228, %v227
  %v288 = vpack.c.b16 %v230, %v229
  %v289 = vpack.c.b16 %v232, %v231
  %v290 = vpack.c.b16 %v234, %v233
  %v291 = vpack.c.b16 %v236, %v235
  %v292 = vpack.c.b16 %v238, %v237
  %v293 = vpack.c.b16 %v240, %v239
  %v294 = vpack.c.b16 %v242, %v241
  %v295 = vpack.c.b16 %v244, %v243
  %v296 = vpack.c.b16 %v246, %v245
  %v297 = vpack.c.b16 %v248, %v247
  %v298 = vpack.c.b16 %v250, %v249
  %v299 = vpack.c.b16 %v252, %v251
  %v300 = vpack.c.b16 %v254, %v253
  %v301 = vpack.c.b16 %v256, %v255
  %v302 = vpack.c.b16 %v258, %v257
  %v303 = vpack.c.b16 %v260, %v259
  %v304 = vpack.c.b16 %v262, %v261
  %v305 = vpack.c.b16 %v264, %v263
  %v306 = vpack.c.b16 %v266, %v265
  %v307 = vpack.c.b16 %v268, %v267
  %v308 = vpack.c.b16 %v270, %v269
  %v309 = vpack.c.b16 %v272, %v271
  %v310 = vpack.c.b16 %v274, %v273
  %v323 = vunpack.c.l.b16 %v45
  %v324 = vunpack.c.l.b16 %v46
  %v325 = vunpack.c.l.b16 %v59
  %v326 = vunpack.c.l.b16 %v60
  %v327 = vunpack.c.l.b16 %v73
  %v328 = vunpack.c.l.b16 %v74
  %v329 = vunpack.c.l.b16 %v87
  %v330 = vunpack.c.l.b16 %v88
  %v331 = vunpack.c.l.b16 %v101
  %v332 = vunpack.c.l.b16 %v102
  %v333 = vunpack.c.l.b16 %v115
  %v334 = vunpack.c.l.b16 %v116
  %v335 = vpack.c.b16 %v324, %v323
  %v336 = vpack.c.b16 %v326, %v325
  %v337 = vpack.c.b16 %v328, %v327
  %v338 = vpack.c.b16 %v330, %v329
  %v339 = vpack.c.b16 %v332, %v331
  %v340 = vpack.c.b16 %v334, %v333
  %341 = vrot.lane.b32.xlu0 %v276, 16
  %v342 = vpop.permute.xlu0 %341
  %343 = vrot.lane.b32.xlu0 %v277, 16
  %v344 = vpop.permute.xlu0 %343
  %345 = vrot.lane.b32.xlu0 %v278, 16
  %v346 = vpop.permute.xlu0 %345
  %347 = vrot.lane.b32.xlu0 %v279, 16
  %v348 = vpop.permute.xlu0 %347
  %349 = vrot.lane.b32.xlu0 %v280, 16
  %v350 = vpop.permute.xlu0 %349
  %351 = vrot.lane.b32.xlu0 %v335, 16
  %v352 = vpop.permute.xlu0 %351
  %353 = vrot.lane.b32.xlu0 %v282, 16
  %v354 = vpop.permute.xlu0 %353
  %355 = vrot.lane.b32.xlu0 %v283, 16
  %v356 = vpop.permute.xlu0 %355
  %357 = vrot.lane.b32.xlu0 %v284, 16
  %v358 = vpop.permute.xlu0 %357
  %359 = vrot.lane.b32.xlu0 %v285, 16
  %v360 = vpop.permute.xlu0 %359
  %361 = vrot.lane.b32.xlu0 %v286, 16
  %v362 = vpop.permute.xlu0 %361
  %363 = vrot.lane.b32.xlu0 %v336, 16
  %v364 = vpop.permute.xlu0 %363
  %365 = vrot.lane.b32.xlu0 %v288, 16
  %v366 = vpop.permute.xlu0 %365
  %367 = vrot.lane.b32.xlu0 %v289, 16
  %v368 = vpop.permute.xlu0 %367
  %369 = vrot.lane.b32.xlu0 %v290, 16
  %v370 = vpop.permute.xlu0 %369
  %371 = vrot.lane.b32.xlu0 %v291, 16
  %v372 = vpop.permute.xlu0 %371
  %373 = vrot.lane.b32.xlu0 %v292, 16
  %v374 = vpop.permute.xlu0 %373
  %375 = vrot.lane.b32.xlu0 %v337, 16
  %v376 = vpop.permute.xlu0 %375
  %377 = vrot.lane.b32.xlu0 %v294, 16
  %v378 = vpop.permute.xlu0 %377
  %379 = vrot.lane.b32.xlu0 %v295, 16
  %v380 = vpop.permute.xlu0 %379
  %381 = vrot.lane.b32.xlu0 %v296, 16
  %v382 = vpop.permute.xlu0 %381
  %383 = vrot.lane.b32.xlu0 %v297, 16
  %v384 = vpop.permute.xlu0 %383
  %385 = vrot.lane.b32.xlu0 %v298, 16
  %v386 = vpop.permute.xlu0 %385
  %387 = vrot.lane.b32.xlu0 %v338, 16
  %v388 = vpop.permute.xlu0 %387
  %389 = vrot.lane.b32.xlu0 %v300, 16
  %v390 = vpop.permute.xlu0 %389
  %391 = vrot.lane.b32.xlu0 %v301, 16
  %v392 = vpop.permute.xlu0 %391
  %393 = vrot.lane.b32.xlu0 %v302, 16
  %v394 = vpop.permute.xlu0 %393
  %395 = vrot.lane.b32.xlu0 %v303, 16
  %v396 = vpop.permute.xlu0 %395
  %397 = vrot.lane.b32.xlu0 %v304, 16
  %v398 = vpop.permute.xlu0 %397
  %399 = vrot.lane.b32.xlu0 %v339, 16
  %v400 = vpop.permute.xlu0 %399
  %401 = vrot.lane.b32.xlu0 %v306, 16
  %v402 = vpop.permute.xlu0 %401
  %403 = vrot.lane.b32.xlu0 %v307, 16
  %v404 = vpop.permute.xlu0 %403
  %405 = vrot.lane.b32.xlu0 %v308, 16
  %v406 = vpop.permute.xlu0 %405
  %407 = vrot.lane.b32.xlu0 %v309, 16
  %v408 = vpop.permute.xlu0 %407
  %409 = vrot.lane.b32.xlu0 %v310, 16
  %v410 = vpop.permute.xlu0 %409
  %411 = vrot.lane.b32.xlu0 %v340, 16
  %v412 = vpop.permute.xlu0 %411
  %v425 = vunpack.c.l.b16 %v117
  %v426 = vunpack.c.l.b16 %v118
  %v427 = vunpack.c.l.b16 %v119
  %v428 = vunpack.c.l.b16 %v120
  %v429 = vunpack.c.l.b16 %v121
  %v430 = vunpack.c.l.b16 %v122
  %v431 = vunpack.c.l.b16 %v123
  %v432 = vunpack.c.l.b16 %v124
  %v433 = vunpack.c.l.b16 %v125
  %v434 = vunpack.c.l.b16 %v126
  %v435 = vunpack.c.l.b16 %v127
  %v436 = vunpack.c.l.b16 %v128
  %v437 = vpack.c.b16 %v426, %v425
  %v438 = vpack.c.b16 %v428, %v427
  %v439 = vpack.c.b16 %v430, %v429
  %v440 = vpack.c.b16 %v432, %v431
  %v441 = vpack.c.b16 %v434, %v433
  %v442 = vpack.c.b16 %v436, %v435
  %443 = vrot.lane.b32.xlu0 %v281, 32
  %v444 = vpop.permute.xlu0 %443
  %445 = vrot.lane.b32.xlu0 %v282, 32
  %v446 = vpop.permute.xlu0 %445
  %447 = vrot.lane.b32.xlu0 %v283, 32
  %v448 = vpop.permute.xlu0 %447
  %449 = vrot.lane.b32.xlu0 %v284, 32
  %v450 = vpop.permute.xlu0 %449
  %451 = vrot.lane.b32.xlu0 %v285, 32
  %v452 = vpop.permute.xlu0 %451
  %453 = vrot.lane.b32.xlu0 %v286, 32
  %v454 = vpop.permute.xlu0 %453
  %455 = vrot.lane.b32.xlu0 %v287, 32
  %v456 = vpop.permute.xlu0 %455
  %457 = vrot.lane.b32.xlu0 %v288, 32
  %v458 = vpop.permute.xlu0 %457
  %459 = vrot.lane.b32.xlu0 %v289, 32
  %v460 = vpop.permute.xlu0 %459
  %461 = vrot.lane.b32.xlu0 %v290, 32
  %v462 = vpop.permute.xlu0 %461
  %463 = vrot.lane.b32.xlu0 %v291, 32
  %v464 = vpop.permute.xlu0 %463
  %465 = vrot.lane.b32.xlu0 %v292, 32
  %v466 = vpop.permute.xlu0 %465
  %467 = vrot.lane.b32.xlu0 %v293, 32
  %v468 = vpop.permute.xlu0 %467
  %469 = vrot.lane.b32.xlu0 %v294, 32
  %v470 = vpop.permute.xlu0 %469
  %471 = vrot.lane.b32.xlu0 %v295, 32
  %v472 = vpop.permute.xlu0 %471
  %473 = vrot.lane.b32.xlu0 %v296, 32
  %v474 = vpop.permute.xlu0 %473
  %475 = vrot.lane.b32.xlu0 %v297, 32
  %v476 = vpop.permute.xlu0 %475
  %477 = vrot.lane.b32.xlu0 %v298, 32
  %v478 = vpop.permute.xlu0 %477
  %479 = vrot.lane.b32.xlu0 %v299, 32
  %v480 = vpop.permute.xlu0 %479
  %481 = vrot.lane.b32.xlu0 %v300, 32
  %v482 = vpop.permute.xlu0 %481
  %483 = vrot.lane.b32.xlu0 %v301, 32
  %v484 = vpop.permute.xlu0 %483
  %485 = vrot.lane.b32.xlu0 %v302, 32
  %v486 = vpop.permute.xlu0 %485
  %487 = vrot.lane.b32.xlu0 %v303, 32
  %v488 = vpop.permute.xlu0 %487
  %489 = vrot.lane.b32.xlu0 %v304, 32
  %v490 = vpop.permute.xlu0 %489
  %491 = vrot.lane.b32.xlu0 %v305, 32
  %v492 = vpop.permute.xlu0 %491
  %493 = vrot.lane.b32.xlu0 %v306, 32
  %v494 = vpop.permute.xlu0 %493
  %495 = vrot.lane.b32.xlu0 %v307, 32
  %v496 = vpop.permute.xlu0 %495
  %497 = vrot.lane.b32.xlu0 %v308, 32
  %v498 = vpop.permute.xlu0 %497
  %499 = vrot.lane.b32.xlu0 %v309, 32
  %v500 = vpop.permute.xlu0 %499
  %501 = vrot.lane.b32.xlu0 %v310, 32
  %v502 = vpop.permute.xlu0 %501
  %503 = vrot.lane.b32.xlu0 %v437, 32
  %v504 = vpop.permute.xlu0 %503
  %505 = vrot.lane.b32.xlu0 %v438, 32
  %v506 = vpop.permute.xlu0 %505
  %507 = vrot.lane.b32.xlu0 %v439, 32
  %v508 = vpop.permute.xlu0 %507
  %509 = vrot.lane.b32.xlu0 %v440, 32
  %v510 = vpop.permute.xlu0 %509
  %511 = vrot.lane.b32.xlu0 %v441, 32
  %v512 = vpop.permute.xlu0 %511
  %513 = vrot.lane.b32.xlu0 %v442, 32
  %v514 = vpop.permute.xlu0 %513
  %v517 = vunpack.c.l.b16 %v129
  %v518 = vunpack.c.l.b16 %v130
  %v519 = vpack.c.b16 %v518, %v517
  %520 = vrot.lane.b32.xlu0 %v282, 48
  %v521 = vpop.permute.xlu0 %520
  %522 = vrot.lane.b32.xlu0 %v283, 48
  %v523 = vpop.permute.xlu0 %522
  %524 = vrot.lane.b32.xlu0 %v284, 48
  %v525 = vpop.permute.xlu0 %524
  %526 = vrot.lane.b32.xlu0 %v285, 48
  %v527 = vpop.permute.xlu0 %526
  %528 = vrot.lane.b32.xlu0 %v286, 48
  %v529 = vpop.permute.xlu0 %528
  %530 = vrot.lane.b32.xlu0 %v336, 48
  %v531 = vpop.permute.xlu0 %530
  %532 = vrot.lane.b32.xlu0 %v288, 48
  %v533 = vpop.permute.xlu0 %532
  %534 = vrot.lane.b32.xlu0 %v289, 48
  %v535 = vpop.permute.xlu0 %534
  %536 = vrot.lane.b32.xlu0 %v290, 48
  %v537 = vpop.permute.xlu0 %536
  %538 = vrot.lane.b32.xlu0 %v291, 48
  %v539 = vpop.permute.xlu0 %538
  %540 = vrot.lane.b32.xlu0 %v292, 48
  %v541 = vpop.permute.xlu0 %540
  %542 = vrot.lane.b32.xlu0 %v337, 48
  %v543 = vpop.permute.xlu0 %542
  %544 = vrot.lane.b32.xlu0 %v294, 48
  %v545 = vpop.permute.xlu0 %544
  %546 = vrot.lane.b32.xlu0 %v295, 48
  %v547 = vpop.permute.xlu0 %546
  %548 = vrot.lane.b32.xlu0 %v296, 48
  %v549 = vpop.permute.xlu0 %548
  %550 = vrot.lane.b32.xlu0 %v297, 48
  %v551 = vpop.permute.xlu0 %550
  %552 = vrot.lane.b32.xlu0 %v298, 48
  %v553 = vpop.permute.xlu0 %552
  %554 = vrot.lane.b32.xlu0 %v338, 48
  %v555 = vpop.permute.xlu0 %554
  %556 = vrot.lane.b32.xlu0 %v300, 48
  %v557 = vpop.permute.xlu0 %556
  %558 = vrot.lane.b32.xlu0 %v301, 48
  %v559 = vpop.permute.xlu0 %558
  %560 = vrot.lane.b32.xlu0 %v302, 48
  %v561 = vpop.permute.xlu0 %560
  %562 = vrot.lane.b32.xlu0 %v303, 48
  %v563 = vpop.permute.xlu0 %562
  %564 = vrot.lane.b32.xlu0 %v304, 48
  %v565 = vpop.permute.xlu0 %564
  %566 = vrot.lane.b32.xlu0 %v339, 48
  %v567 = vpop.permute.xlu0 %566
  %568 = vrot.lane.b32.xlu0 %v306, 48
  %v569 = vpop.permute.xlu0 %568
  %570 = vrot.lane.b32.xlu0 %v307, 48
  %v571 = vpop.permute.xlu0 %570
  %572 = vrot.lane.b32.xlu0 %v308, 48
  %v573 = vpop.permute.xlu0 %572
  %574 = vrot.lane.b32.xlu0 %v309, 48
  %v575 = vpop.permute.xlu0 %574
  %576 = vrot.lane.b32.xlu0 %v310, 48
  %v577 = vpop.permute.xlu0 %576
  %578 = vrot.lane.b32.xlu0 %v340, 48
  %v579 = vpop.permute.xlu0 %578
  %580 = vrot.lane.b32.xlu0 %v438, 48
  %v581 = vpop.permute.xlu0 %580
  %582 = vrot.lane.b32.xlu0 %v439, 48
  %v583 = vpop.permute.xlu0 %582
  %584 = vrot.lane.b32.xlu0 %v440, 48
  %v585 = vpop.permute.xlu0 %584
  %586 = vrot.lane.b32.xlu0 %v441, 48
  %v587 = vpop.permute.xlu0 %586
  %588 = vrot.lane.b32.xlu0 %v442, 48
  %v589 = vpop.permute.xlu0 %588
  %590 = vrot.lane.b32.xlu0 %v519, 48
  %v591 = vpop.permute.xlu0 %590
  %vm592 = vcmask 130048
  %v595 = vsel %vm592, %v275, %v342
  %v598 = vsel %vm592, %v276, %v344
  %v601 = vsel %vm592, %v277, %v346
  %v604 = vsel %vm592, %v278, %v348
  %v607 = vsel %vm592, %v279, %v350
  %v610 = vsel %vm592, %v280, %v352
  %v613 = vsel %vm592, %v281, %v354
  %v616 = vsel %vm592, %v282, %v356
  %v619 = vsel %vm592, %v283, %v358
  %v622 = vsel %vm592, %v284, %v360
  %v625 = vsel %vm592, %v285, %v362
  %v628 = vsel %vm592, %v286, %v364
  %v631 = vsel %vm592, %v287, %v366
  %v634 = vsel %vm592, %v288, %v368
  %v637 = vsel %vm592, %v289, %v370
  %v640 = vsel %vm592, %v290, %v372
  %v643 = vsel %vm592, %v291, %v374
  %v646 = vsel %vm592, %v292, %v376
  %v649 = vsel %vm592, %v293, %v378
  %v652 = vsel %vm592, %v294, %v380
  %v655 = vsel %vm592, %v295, %v382
  %v658 = vsel %vm592, %v296, %v384
  %v661 = vsel %vm592, %v297, %v386
  %v664 = vsel %vm592, %v298, %v388
  %v667 = vsel %vm592, %v299, %v390
  %v670 = vsel %vm592, %v300, %v392
  %v673 = vsel %vm592, %v301, %v394
  %v676 = vsel %vm592, %v302, %v396
  %v679 = vsel %vm592, %v303, %v398
  %v682 = vsel %vm592, %v304, %v400
  %v685 = vsel %vm592, %v305, %v402
  %v688 = vsel %vm592, %v306, %v404
  %v691 = vsel %vm592, %v307, %v406
  %v694 = vsel %vm592, %v308, %v408
  %v697 = vsel %vm592, %v309, %v410
  %v700 = vsel %vm592, %v310, %v412
  %vm701 = vcmask 261120
  %v703 = vsel %vm701, %v595, %v444
  %v705 = vsel %vm701, %v598, %v446
  %v707 = vsel %vm701, %v601, %v448
  %v709 = vsel %vm701, %v604, %v450
  %v711 = vsel %vm701, %v607, %v452
  %v713 = vsel %vm701, %v610, %v454
  %v715 = vsel %vm701, %v613, %v456
  %v717 = vsel %vm701, %v616, %v458
  %v719 = vsel %vm701, %v619, %v460
  %v721 = vsel %vm701, %v622, %v462
  %v723 = vsel %vm701, %v625, %v464
  %v725 = vsel %vm701, %v628, %v466
  %v727 = vsel %vm701, %v631, %v468
  %v729 = vsel %vm701, %v634, %v470
  %v731 = vsel %vm701, %v637, %v472
  %v733 = vsel %vm701, %v640, %v474
  %v735 = vsel %vm701, %v643, %v476
  %v737 = vsel %vm701, %v646, %v478
  %v739 = vsel %vm701, %v649, %v480
  %v741 = vsel %vm701, %v652, %v482
  %v743 = vsel %vm701, %v655, %v484
  %v745 = vsel %vm701, %v658, %v486
  %v747 = vsel %vm701, %v661, %v488
  %v749 = vsel %vm701, %v664, %v490
  %v751 = vsel %vm701, %v667, %v492
  %v753 = vsel %vm701, %v670, %v494
  %v755 = vsel %vm701, %v673, %v496
  %v757 = vsel %vm701, %v676, %v498
  %v759 = vsel %vm701, %v679, %v500
  %v761 = vsel %vm701, %v682, %v502
  %v763 = vsel %vm701, %v685, %v504
  %v765 = vsel %vm701, %v688, %v506
  %v767 = vsel %vm701, %v691, %v508
  %v769 = vsel %vm701, %v694, %v510
  %v771 = vsel %vm701, %v697, %v512
  %v773 = vsel %vm701, %v700, %v514
  %vm774 = vcmask 392192
  %v776 = vsel %vm774, %v703, %v521
  %v778 = vsel %vm774, %v705, %v523
  %v780 = vsel %vm774, %v707, %v525
  %v782 = vsel %vm774, %v709, %v527
  %v784 = vsel %vm774, %v711, %v529
  %v786 = vsel %vm774, %v713, %v531
  %v788 = vsel %vm774, %v715, %v533
  %v790 = vsel %vm774, %v717, %v535
  %v792 = vsel %vm774, %v719, %v537
  %v794 = vsel %vm774, %v721, %v539
  %v796 = vsel %vm774, %v723, %v541
  %v798 = vsel %vm774, %v725, %v543
  %v800 = vsel %vm774, %v727, %v545
  %v802 = vsel %vm774, %v729, %v547
  %v804 = vsel %vm774, %v731, %v549
  %v806 = vsel %vm774, %v733, %v551
  %v808 = vsel %vm774, %v735, %v553
  %v810 = vsel %vm774, %v737, %v555
  %v812 = vsel %vm774, %v739, %v557
  %v814 = vsel %vm774, %v741, %v559
  %v816 = vsel %vm774, %v743, %v561
  %v818 = vsel %vm774, %v745, %v563
  %v820 = vsel %vm774, %v747, %v565
  %v822 = vsel %vm774, %v749, %v567
  %v824 = vsel %vm774, %v751, %v569
  %v826 = vsel %vm774, %v753, %v571
  %v828 = vsel %vm774, %v755, %v573
  %v830 = vsel %vm774, %v757, %v575
  %v832 = vsel %vm774, %v759, %v577
  %v834 = vsel %vm774, %v761, %v579
  %v836 = vsel %vm774, %v763, %v581
  %v838 = vsel %vm774, %v765, %v583
  %v840 = vsel %vm774, %v767, %v585
  %v842 = vsel %vm774, %v769, %v587
  %v844 = vsel %vm774, %v771, %v589
  %v846 = vsel %vm774, %v773, %v591
  %v847 = vld [vmem:[%s1] sm:$0xf]
  %v848 = vld [vmem:[%s1 + $0x4] sm:$0xf]
  %v849 = vld [vmem:[%s1 + $0x8] sm:$0xf]
  %v850 = vld [vmem:[%s1 + $0xc] sm:$0xf]
  %v851 = vld [vmem:[%s1 + $0x10] sm:$0xf]
  %v852 = vld [vmem:[%s1 + $0x14] sm:$0xf]
  %v853 = vld [vmem:[%s1 + $0x18] sm:$0xf]
  %v854 = vld [vmem:[%s1 + $0x1c] sm:$0xf]
  %v855 = vld [vmem:[%s2] sm:$0x1]
  %v857 = vlaneseq
  %v858 = vshrl.u32 %v857, 7
  %v859 = vsub.s32 0, %v858
  %v860 = vrot.slane %v855, %v859
  %v870 = vunpack.c.l.b16 %v847
  %v871 = vunpack.c.l.b16 %v848
  %v872 = vunpack.c.l.b16 %v849
  %v873 = vunpack.c.l.b16 %v850
  %v874 = vunpack.c.l.b16 %v851
  %v875 = vunpack.c.l.b16 %v852
  %v876 = vunpack.c.l.b16 %v853
  %v877 = vunpack.c.l.b16 %v854
  %v878 = vpack.c.b16 %v871, %v870
  %v879 = vpack.c.b16 %v873, %v872
  %v880 = vpack.c.b16 %v875, %v874
  %v881 = vpack.c.b16 %v877, %v876
  %vm886 = vcmask 523264
  %v887 = vsel %vm886, %v776, 0
  %v889 = vsel %vm886, %v778, 0
  %v891 = vsel %vm886, %v780, 0
  %v893 = vsel %vm886, %v782, 0
  %v895 = vsel %vm886, %v784, 0
  %v897 = vsel %vm886, %v786, 0
  %v899 = vsel %vm886, %v788, 0
  %v901 = vsel %vm886, %v790, 0
  %v903 = vsel %vm886, %v792, 0
  %v905 = vsel %vm886, %v794, 0
  %v907 = vsel %vm886, %v796, 0
  %v909 = vsel %vm886, %v798, 0
  %v911 = vsel %vm886, %v800, 0
  %v913 = vsel %vm886, %v802, 0
  %v915 = vsel %vm886, %v804, 0
  %v917 = vsel %vm886, %v806, 0
  %v919 = vsel %vm886, %v808, 0
  %v921 = vsel %vm886, %v810, 0
  %v923 = vsel %vm886, %v812, 0
  %v925 = vsel %vm886, %v814, 0
  %v927 = vsel %vm886, %v816, 0
  %v929 = vsel %vm886, %v818, 0
  %v931 = vsel %vm886, %v820, 0
  %v933 = vsel %vm886, %v822, 0
  %v935 = vsel %vm886, %v824, 0
  %v937 = vsel %vm886, %v826, 0
  %v939 = vsel %vm886, %v828, 0
  %v941 = vsel %vm886, %v830, 0
  %v943 = vsel %vm886, %v832, 0
  %v945 = vsel %vm886, %v834, 0
  %v947 = vsel %vm886, %v836, 0
  %v949 = vsel %vm886, %v838, 0
  %v951 = vsel %vm886, %v840, 0
  %v953 = vsel %vm886, %v842, 0
  %v955 = vsel %vm886, %v844, 0
  %v957 = vsel %vm886, %v846, 0
  %959 = vmatprep.subr.bf16.mxu0 0
  %960 = vmatpush1.bf16.msra.mxu0 %v878
  %961 = vmatprep.subr.bf16.mxu0 0
  %962 = vmatpush1.bf16.msra.mxu0 %v879
  %963 = vmatprep.subr.bf16.mxu0 0
  %964 = vmatpush1.bf16.msra.mxu0 %v880
  %965 = vmatprep.subr.bf16.mxu0 0
  %966 = vmatpush1.bf16.msra.mxu0 %v881
  %967 = vmatprep.subr.bf16.mxu0 0
  %968 = vmatpush1.bf16.msra.mxu0 0
  %969 = vmatprep.subr.bf16.mxu0 0
  %970 = vmatpush1.bf16.msra.mxu0 0
  %971 = vmatprep.subr.bf16.mxu0 0
  %972 = vmatpush1.bf16.msra.mxu0 0
  %973 = vmatprep.subr.bf16.mxu0 0
  %974 = vmatpush1.bf16.msra.mxu0 0
  %975 = vmatprep.subr.bf16.mxu0 0
  %976 = vmatpush1.bf16.msra.mxu0 0
  %977 = vmatprep.subr.bf16.mxu0 0
  %978 = vmatpush1.bf16.msra.mxu0 0
  %979 = vmatprep.subr.bf16.mxu0 0
  %980 = vmatpush1.bf16.msra.mxu0 0
  %981 = vmatprep.subr.bf16.mxu0 0
  %982 = vmatpush1.bf16.msra.mxu0 0
  %983 = vmatprep.subr.bf16.mxu0 0
  %984 = vmatpush1.bf16.msra.mxu0 0
  %985 = vmatprep.subr.bf16.mxu0 0
  %986 = vmatpush1.bf16.msra.mxu0 0
  %987 = vmatprep.subr.bf16.mxu0 0
  %988 = vmatpush1.bf16.msra.mxu0 0
  %989 = vmatprep.subr.bf16.mxu0 0
  %990 = vmatpush1.bf16.msra.mxu0 0
  %991 = vmatprep.mubr.bf16.mxu0 0
  %992 = vmatmul.mubr.bf16.gmra.mrb[0].mxu0 %v887
  %v993 = vpop.f32.mrb[0].mxu0
  %v994 = vadd.f32 %v860, %v993
  %v995 = vpop.f32.mrb[0].mxu0
  %v996 = vpop.f32.mrb[0].mxu0
  %v997 = vadd.f32 %v860, %v996
  %v998 = vpop.f32.mrb[0].mxu0
  %999 = vmatprep.mubr.bf16.mxu0 0
  %1000 = vmatmul.mubr.bf16.gmra.mrb[0].mxu0 %v889
  %v1001 = vpop.f32.mrb[0].mxu0
  %v1002 = vadd.f32 %v860, %v1001
  %v1003 = vpop.f32.mrb[0].mxu0
  %v1004 = vpop.f32.mrb[0].mxu0
  %v1005 = vadd.f32 %v860, %v1004
  %v1006 = vpop.f32.mrb[0].mxu0
  %1007 = vmatprep.mubr.bf16.mxu0 0
  %1008 = vmatmul.mubr.bf16.gmra.mrb[0].mxu0 %v891
  %v1009 = vpop.f32.mrb[0].mxu0
  %v1010 = vadd.f32 %v860, %v1009
  %v1011 = vpop.f32.mrb[0].mxu0
  %v1012 = vpop.f32.mrb[0].mxu0
  %v1013 = vadd.f32 %v860, %v1012
  %v1014 = vpop.f32.mrb[0].mxu0
  %1015 = vmatprep.mubr.bf16.mxu0 0
  %1016 = vmatmul.mubr.bf16.gmra.mrb[0].mxu0 %v893
  %v1017 = vpop.f32.mrb[0].mxu0
  %v1018 = vadd.f32 %v860, %v1017
  %v1019 = vpop.f32.mrb[0].mxu0
  %v1020 = vpop.f32.mrb[0].mxu0
  %v1021 = vadd.f32 %v860, %v1020
  %v1022 = vpop.f32.mrb[0].mxu0
  %1023 = vmatprep.mubr.bf16.mxu0 0
  %1024 = vmatmul.mubr.bf16.gmra.mrb[0].mxu0 %v895
  %v1025 = vpop.f32.mrb[0].mxu0
  %v1026 = vadd.f32 %v860, %v1025
  %v1027 = vpop.f32.mrb[0].mxu0
  %v1028 = vpop.f32.mrb[0].mxu0
  %v1029 = vadd.f32 %v860, %v1028
  %v1030 = vpop.f32.mrb[0].mxu0
  %1031 = vmatprep.mubr.bf16.mxu0 0
  %1032 = vmatmul.mubr.bf16.gmra.mrb[0].mxu0 %v897
  %v1033 = vpop.f32.mrb[0].mxu0
  %v1034 = vadd.f32 %v860, %v1033
  %v1035 = vpop.f32.mrb[0].mxu0
  %v1036 = vpop.f32.mrb[0].mxu0
  %v1037 = vadd.f32 %v860, %v1036
  %v1038 = vpop.f32.mrb[0].mxu0
  %1039 = vmatprep.mubr.bf16.mxu0 0
  %1040 = vmatmul.mubr.bf16.gmra.mrb[0].mxu0 %v899
  %v1041 = vpop.f32.mrb[0].mxu0
  %v1042 = vadd.f32 %v860, %v1041
  %v1043 = vpop.f32.mrb[0].mxu0
  %v1044 = vpop.f32.mrb[0].mxu0
  %v1045 = vadd.f32 %v860, %v1044
  %v1046 = vpop.f32.mrb[0].mxu0
  %1047 = vmatprep.mubr.bf16.mxu0 0
  %1048 = vmatmul.mubr.bf16.gmra.mrb[0].mxu0 %v901
  %v1049 = vpop.f32.mrb[0].mxu0
  %v1050 = vadd.f32 %v860, %v1049
  %v1051 = vpop.f32.mrb[0].mxu0
  %v1052 = vpop.f32.mrb[0].mxu0
  %v1053 = vadd.f32 %v860, %v1052
  %v1054 = vpop.f32.mrb[0].mxu0
  %1055 = vmatprep.mubr.bf16.mxu0 0
  %1056 = vmatmul.mubr.bf16.gmra.mrb[0].mxu0 %v903
  %v1057 = vpop.f32.mrb[0].mxu0
  %v1058 = vadd.f32 %v860, %v1057
  %v1059 = vpop.f32.mrb[0].mxu0
  %v1060 = vpop.f32.mrb[0].mxu0
  %v1061 = vadd.f32 %v860, %v1060
  %v1062 = vpop.f32.mrb[0].mxu0
  %1063 = vmatprep.mubr.bf16.mxu0 0
  %1064 = vmatmul.mubr.bf16.gmra.mrb[0].mxu0 %v905
  %v1065 = vpop.f32.mrb[0].mxu0
  %v1066 = vadd.f32 %v860, %v1065
  %v1067 = vpop.f32.mrb[0].mxu0
  %v1068 = vpop.f32.mrb[0].mxu0
  %v1069 = vadd.f32 %v860, %v1068
  %v1070 = vpop.f32.mrb[0].mxu0
  %1071 = vmatprep.mubr.bf16.mxu0 0
  %1072 = vmatmul.mubr.bf16.gmra.mrb[0].mxu0 %v907
  %v1073 = vpop.f32.mrb[0].mxu0
  %v1074 = vadd.f32 %v860, %v1073
  %v1075 = vpop.f32.mrb[0].mxu0
  %v1076 = vpop.f32.mrb[0].mxu0
  %v1077 = vadd.f32 %v860, %v1076
  %v1078 = vpop.f32.mrb[0].mxu0
  %1079 = vmatprep.mubr.bf16.mxu0 0
  %1080 = vmatmul.mubr.bf16.gmra.mrb[0].mxu0 %v909
  %v1081 = vpop.f32.mrb[0].mxu0
  %v1082 = vadd.f32 %v860, %v1081
  %v1083 = vpop.f32.mrb[0].mxu0
  %v1084 = vpop.f32.mrb[0].mxu0
  %v1085 = vadd.f32 %v860, %v1084
  %v1086 = vpop.f32.mrb[0].mxu0
  %1087 = vmatprep.mubr.bf16.mxu0 0
  %1088 = vmatmul.mubr.bf16.gmra.mrb[0].mxu0 %v911
  %v1089 = vpop.f32.mrb[0].mxu0
  %v1090 = vadd.f32 %v860, %v1089
  %v1091 = vpop.f32.mrb[0].mxu0
  %v1092 = vpop.f32.mrb[0].mxu0
  %v1093 = vadd.f32 %v860, %v1092
  %v1094 = vpop.f32.mrb[0].mxu0
  %1095 = vmatprep.mubr.bf16.mxu0 0
  %1096 = vmatmul.mubr.bf16.gmra.mrb[0].mxu0 %v913
  %v1097 = vpop.f32.mrb[0].mxu0
  %v1098 = vadd.f32 %v860, %v1097
  %v1099 = vpop.f32.mrb[0].mxu0
  %v1100 = vpop.f32.mrb[0].mxu0
  %v1101 = vadd.f32 %v860, %v1100
  %v1102 = vpop.f32.mrb[0].mxu0
  %1103 = vmatprep.mubr.bf16.mxu0 0
  %1104 = vmatmul.mubr.bf16.gmra.mrb[0].mxu0 %v915
  %v1105 = vpop.f32.mrb[0].mxu0
  %v1106 = vadd.f32 %v860, %v1105
  %v1107 = vpop.f32.mrb[0].mxu0
  %v1108 = vpop.f32.mrb[0].mxu0
  %v1109 = vadd.f32 %v860, %v1108
  %v1110 = vpop.f32.mrb[0].mxu0
  %1111 = vmatprep.mubr.bf16.mxu0 0
  %1112 = vmatmul.mubr.bf16.gmra.mrb[0].mxu0 %v917
  %v1113 = vpop.f32.mrb[0].mxu0
  %v1114 = vadd.f32 %v860, %v1113
  %v1115 = vpop.f32.mrb[0].mxu0
  %v1116 = vpop.f32.mrb[0].mxu0
  %v1117 = vadd.f32 %v860, %v1116
  %v1118 = vpop.f32.mrb[0].mxu0
  %1119 = vmatprep.mubr.bf16.mxu0 0
  %1120 = vmatmul.mubr.bf16.gmra.mrb[0].mxu0 %v919
  %v1121 = vpop.f32.mrb[0].mxu0
  %v1122 = vadd.f32 %v860, %v1121
  %v1123 = vpop.f32.mrb[0].mxu0
  %v1124 = vpop.f32.mrb[0].mxu0
  %v1125 = vadd.f32 %v860, %v1124
  %v1126 = vpop.f32.mrb[0].mxu0
  %1127 = vmatprep.mubr.bf16.mxu0 0
  %1128 = vmatmul.mubr.bf16.gmra.mrb[0].mxu0 %v921
  %v1129 = vpop.f32.mrb[0].mxu0
  %v1130 = vadd.f32 %v860, %v1129
  %v1131 = vpop.f32.mrb[0].mxu0
  %v1132 = vpop.f32.mrb[0].mxu0
  %v1133 = vadd.f32 %v860, %v1132
  %v1134 = vpop.f32.mrb[0].mxu0
  %1135 = vmatprep.mubr.bf16.mxu0 0
  %1136 = vmatmul.mubr.bf16.gmra.mrb[0].mxu0 %v923
  %v1137 = vpop.f32.mrb[0].mxu0
  %v1138 = vadd.f32 %v860, %v1137
  %v1139 = vpop.f32.mrb[0].mxu0
  %v1140 = vpop.f32.mrb[0].mxu0
  %v1141 = vadd.f32 %v860, %v1140
  %v1142 = vpop.f32.mrb[0].mxu0
  %1143 = vmatprep.mubr.bf16.mxu0 0
  %1144 = vmatmul.mubr.bf16.gmra.mrb[0].mxu0 %v925
  %v1145 = vpop.f32.mrb[0].mxu0
  %v1146 = vadd.f32 %v860, %v1145
  %v1147 = vpop.f32.mrb[0].mxu0
  %v1148 = vpop.f32.mrb[0].mxu0
  %v1149 = vadd.f32 %v860, %v1148
  %v1150 = vpop.f32.mrb[0].mxu0
  %1151 = vmatprep.mubr.bf16.mxu0 0
  %1152 = vmatmul.mubr.bf16.gmra.mrb[0].mxu0 %v927
  %v1153 = vpop.f32.mrb[0].mxu0
  %v1154 = vadd.f32 %v860, %v1153
  %v1155 = vpop.f32.mrb[0].mxu0
  %v1156 = vpop.f32.mrb[0].mxu0
  %v1157 = vadd.f32 %v860, %v1156
  %v1158 = vpop.f32.mrb[0].mxu0
  %1159 = vmatprep.mubr.bf16.mxu0 0
  %1160 = vmatmul.mubr.bf16.gmra.mrb[0].mxu0 %v929
  %v1161 = vpop.f32.mrb[0].mxu0
  %v1162 = vadd.f32 %v860, %v1161
  %v1163 = vpop.f32.mrb[0].mxu0
  %v1164 = vpop.f32.mrb[0].mxu0
  %v1165 = vadd.f32 %v860, %v1164
  %v1166 = vpop.f32.mrb[0].mxu0
  %1167 = vmatprep.mubr.bf16.mxu0 0
  %1168 = vmatmul.mubr.bf16.gmra.mrb[0].mxu0 %v931
  %v1169 = vpop.f32.mrb[0].mxu0
  %v1170 = vadd.f32 %v860, %v1169
  %v1171 = vpop.f32.mrb[0].mxu0
  %v1172 = vpop.f32.mrb[0].mxu0
  %v1173 = vadd.f32 %v860, %v1172
  %v1174 = vpop.f32.mrb[0].mxu0
  %1175 = vmatprep.mubr.bf16.mxu0 0
  %1176 = vmatmul.mubr.bf16.gmra.mrb[0].mxu0 %v933
  %v1177 = vpop.f32.mrb[0].mxu0
  %v1178 = vadd.f32 %v860, %v1177
  %v1179 = vpop.f32.mrb[0].mxu0
  %v1180 = vpop.f32.mrb[0].mxu0
  %v1181 = vadd.f32 %v860, %v1180
  %v1182 = vpop.f32.mrb[0].mxu0
  %1183 = vmatprep.mubr.bf16.mxu0 0
  %1184 = vmatmul.mubr.bf16.gmra.mrb[0].mxu0 %v935
  %v1185 = vpop.f32.mrb[0].mxu0
  %v1186 = vadd.f32 %v860, %v1185
  %v1187 = vpop.f32.mrb[0].mxu0
  %v1188 = vpop.f32.mrb[0].mxu0
  %v1189 = vadd.f32 %v860, %v1188
  %v1190 = vpop.f32.mrb[0].mxu0
  %1191 = vmatprep.mubr.bf16.mxu0 0
  %1192 = vmatmul.mubr.bf16.gmra.mrb[0].mxu0 %v937
  %v1193 = vpop.f32.mrb[0].mxu0
  %v1194 = vadd.f32 %v860, %v1193
  %v1195 = vpop.f32.mrb[0].mxu0
  %v1196 = vpop.f32.mrb[0].mxu0
  %v1197 = vadd.f32 %v860, %v1196
  %v1198 = vpop.f32.mrb[0].mxu0
  %1199 = vmatprep.mubr.bf16.mxu0 0
  %1200 = vmatmul.mubr.bf16.gmra.mrb[0].mxu0 %v939
  %v1201 = vpop.f32.mrb[0].mxu0
  %v1202 = vadd.f32 %v860, %v1201
  %v1203 = vpop.f32.mrb[0].mxu0
  %v1204 = vpop.f32.mrb[0].mxu0
  %v1205 = vadd.f32 %v860, %v1204
  %v1206 = vpop.f32.mrb[0].mxu0
  %1207 = vmatprep.mubr.bf16.mxu0 0
  %1208 = vmatmul.mubr.bf16.gmra.mrb[0].mxu0 %v941
  %v1209 = vpop.f32.mrb[0].mxu0
  %v1210 = vadd.f32 %v860, %v1209
  %v1211 = vpop.f32.mrb[0].mxu0
  %v1212 = vpop.f32.mrb[0].mxu0
  %v1213 = vadd.f32 %v860, %v1212
  %v1214 = vpop.f32.mrb[0].mxu0
  %1215 = vmatprep.mubr.bf16.mxu0 0
  %1216 = vmatmul.mubr.bf16.gmra.mrb[0].mxu0 %v943
  %v1217 = vpop.f32.mrb[0].mxu0
  %v1218 = vadd.f32 %v860, %v1217
  %v1219 = vpop.f32.mrb[0].mxu0
  %v1220 = vpop.f32.mrb[0].mxu0
  %v1221 = vadd.f32 %v860, %v1220
  %v1222 = vpop.f32.mrb[0].mxu0
  %1223 = vmatprep.mubr.bf16.mxu0 0
  %1224 = vmatmul.mubr.bf16.gmra.mrb[0].mxu0 %v945
  %v1225 = vpop.f32.mrb[0].mxu0
  %v1226 = vadd.f32 %v860, %v1225
  %v1227 = vpop.f32.mrb[0].mxu0
  %v1228 = vpop.f32.mrb[0].mxu0
  %v1229 = vadd.f32 %v860, %v1228
  %v1230 = vpop.f32.mrb[0].mxu0
  %1231 = vmatprep.mubr.bf16.mxu0 0
  %1232 = vmatmul.mubr.bf16.gmra.mrb[0].mxu0 %v947
  %v1233 = vpop.f32.mrb[0].mxu0
  %v1234 = vadd.f32 %v860, %v1233
  %v1235 = vpop.f32.mrb[0].mxu0
  %v1236 = vpop.f32.mrb[0].mxu0
  %v1237 = vadd.f32 %v860, %v1236
  %v1238 = vpop.f32.mrb[0].mxu0
  %1239 = vmatprep.mubr.bf16.mxu0 0
  %1240 = vmatmul.mubr.bf16.gmra.mrb[0].mxu0 %v949
  %v1241 = vpop.f32.mrb[0].mxu0
  %v1242 = vadd.f32 %v860, %v1241
  %v1243 = vpop.f32.mrb[0].mxu0
  %v1244 = vpop.f32.mrb[0].mxu0
  %v1245 = vadd.f32 %v860, %v1244
  %v1246 = vpop.f32.mrb[0].mxu0
  %1247 = vmatprep.mubr.bf16.mxu0 0
  %1248 = vmatmul.mubr.bf16.gmra.mrb[0].mxu0 %v951
  %v1249 = vpop.f32.mrb[0].mxu0
  %v1250 = vadd.f32 %v860, %v1249
  %v1251 = vpop.f32.mrb[0].mxu0
  %v1252 = vpop.f32.mrb[0].mxu0
  %v1253 = vadd.f32 %v860, %v1252
  %v1254 = vpop.f32.mrb[0].mxu0
  %1255 = vmatprep.mubr.bf16.mxu0 0
  %1256 = vmatmul.mubr.bf16.gmra.mrb[0].mxu0 %v953
  %v1257 = vpop.f32.mrb[0].mxu0
  %v1258 = vadd.f32 %v860, %v1257
  %v1259 = vpop.f32.mrb[0].mxu0
  %v1260 = vpop.f32.mrb[0].mxu0
  %v1261 = vadd.f32 %v860, %v1260
  %v1262 = vpop.f32.mrb[0].mxu0
  %1263 = vmatprep.mubr.bf16.mxu0 0
  %1264 = vmatmul.mubr.bf16.gmra.mrb[0].mxu0 %v955
  %v1265 = vpop.f32.mrb[0].mxu0
  %v1266 = vadd.f32 %v860, %v1265
  %v1267 = vpop.f32.mrb[0].mxu0
  %v1268 = vpop.f32.mrb[0].mxu0
  %v1269 = vadd.f32 %v860, %v1268
  %v1270 = vpop.f32.mrb[0].mxu0
  %1271 = vmatprep.mubr.bf16.mxu0 0
  %1272 = vmatmul.mubr.bf16.gmra.mrb[0].mxu0 %v957
  %v1273 = vpop.f32.mrb[0].mxu0
  %v1274 = vadd.f32 %v860, %v1273
  %v1275 = vpop.f32.mrb[0].mxu0
  %v1276 = vpop.f32.mrb[0].mxu0
  %v1277 = vadd.f32 %v860, %v1276
  %v1278 = vpop.f32.mrb[0].mxu0
  %1279 = vdwg.mxu0
  %v1280 = vmax.f32 %v994, 0.0
  %v1281 = vmax.f32 %v997, 0.0
  %v1282 = vmax.f32 %v1002, 0.0
  %v1283 = vmax.f32 %v1005, 0.0
  %v1284 = vmax.f32 %v1010, 0.0
  %v1285 = vmax.f32 %v1013, 0.0
  %v1286 = vmax.f32 %v1018, 0.0
  %v1287 = vmax.f32 %v1021, 0.0
  %v1288 = vmax.f32 %v1026, 0.0
  %v1289 = vmax.f32 %v1029, 0.0
  %v1290 = vmax.f32 %v1034, 0.0
  %v1291 = vmax.f32 %v1037, 0.0
  %v1292 = vmax.f32 %v1042, 0.0
  %v1293 = vmax.f32 %v1045, 0.0
  %v1294 = vmax.f32 %v1050, 0.0
  %v1295 = vmax.f32 %v1053, 0.0
  %v1296 = vmax.f32 %v1058, 0.0
  %v1297 = vmax.f32 %v1061, 0.0
  %v1298 = vmax.f32 %v1066, 0.0
  %v1299 = vmax.f32 %v1069, 0.0
  %v1300 = vmax.f32 %v1074, 0.0
  %v1301 = vmax.f32 %v1077, 0.0
  %v1302 = vmax.f32 %v1082, 0.0
  %v1303 = vmax.f32 %v1085, 0.0
  %v1304 = vmax.f32 %v1090, 0.0
  %v1305 = vmax.f32 %v1093, 0.0
  %v1306 = vmax.f32 %v1098, 0.0
  %v1307 = vmax.f32 %v1101, 0.0
  %v1308 = vmax.f32 %v1106, 0.0
  %v1309 = vmax.f32 %v1109, 0.0
  %v1310 = vmax.f32 %v1114, 0.0
  %v1311 = vmax.f32 %v1117, 0.0
  %v1312 = vmax.f32 %v1122, 0.0
  %v1313 = vmax.f32 %v1125, 0.0
  %v1314 = vmax.f32 %v1130, 0.0
  %v1315 = vmax.f32 %v1133, 0.0
  %v1316 = vmax.f32 %v1138, 0.0
  %v1317 = vmax.f32 %v1141, 0.0
  %v1318 = vmax.f32 %v1146, 0.0
  %v1319 = vmax.f32 %v1149, 0.0
  %v1320 = vmax.f32 %v1154, 0.0
  %v1321 = vmax.f32 %v1157, 0.0
  %v1322 = vmax.f32 %v1162, 0.0
  %v1323 = vmax.f32 %v1165, 0.0
  %v1324 = vmax.f32 %v1170, 0.0
  %v1325 = vmax.f32 %v1173, 0.0
  %v1326 = vmax.f32 %v1178, 0.0
  %v1327 = vmax.f32 %v1181, 0.0
  %v1328 = vmax.f32 %v1186, 0.0
  %v1329 = vmax.f32 %v1189, 0.0
  %v1330 = vmax.f32 %v1194, 0.0
  %v1331 = vmax.f32 %v1197, 0.0
  %v1332 = vmax.f32 %v1202, 0.0
  %v1333 = vmax.f32 %v1205, 0.0
  %v1334 = vmax.f32 %v1210, 0.0
  %v1335 = vmax.f32 %v1213, 0.0
  %v1336 = vmax.f32 %v1218, 0.0
  %v1337 = vmax.f32 %v1221, 0.0
  %v1338 = vmax.f32 %v1226, 0.0
  %v1339 = vmax.f32 %v1229, 0.0
  %v1340 = vmax.f32 %v1234, 0.0
  %v1341 = vmax.f32 %v1237, 0.0
  %v1342 = vmax.f32 %v1242, 0.0
  %v1343 = vmax.f32 %v1245, 0.0
  %v1344 = vmax.f32 %v1250, 0.0
  %v1345 = vmax.f32 %v1253, 0.0
  %v1346 = vmax.f32 %v1258, 0.0
  %v1347 = vmax.f32 %v1261, 0.0
  %v1348 = vmax.f32 %v1266, 0.0
  %v1349 = vmax.f32 %v1269, 0.0
  %v1350 = vmax.f32 %v1274, 0.0
  %v1351 = vmax.f32 %v1277, 0.0
  %v1352 = vpack.c.bf16 %v1281, %v1280
  %v1353 = vpack.c.bf16 %v1283, %v1282
  %v1354 = vpack.c.bf16 %v1285, %v1284
  %v1355 = vpack.c.bf16 %v1287, %v1286
  %v1356 = vpack.c.bf16 %v1289, %v1288
  %v1357 = vpack.c.bf16 %v1291, %v1290
  %v1358 = vpack.c.bf16 %v1293, %v1292
  %v1359 = vpack.c.bf16 %v1295, %v1294
  %v1360 = vpack.c.bf16 %v1297, %v1296
  %v1361 = vpack.c.bf16 %v1299, %v1298
  %v1362 = vpack.c.bf16 %v1301, %v1300
  %v1363 = vpack.c.bf16 %v1303, %v1302
  %v1364 = vpack.c.bf16 %v1305, %v1304
  %v1365 = vpack.c.bf16 %v1307, %v1306
  %v1366 = vpack.c.bf16 %v1309, %v1308
  %v1367 = vpack.c.bf16 %v1311, %v1310
  %v1368 = vpack.c.bf16 %v1313, %v1312
  %v1369 = vpack.c.bf16 %v1315, %v1314
  %v1370 = vpack.c.bf16 %v1317, %v1316
  %v1371 = vpack.c.bf16 %v1319, %v1318
  %v1372 = vpack.c.bf16 %v1321, %v1320
  %v1373 = vpack.c.bf16 %v1323, %v1322
  %v1374 = vpack.c.bf16 %v1325, %v1324
  %v1375 = vpack.c.bf16 %v1327, %v1326
  %v1376 = vpack.c.bf16 %v1329, %v1328
  %v1377 = vpack.c.bf16 %v1331, %v1330
  %v1378 = vpack.c.bf16 %v1333, %v1332
  %v1379 = vpack.c.bf16 %v1335, %v1334
  %v1380 = vpack.c.bf16 %v1337, %v1336
  %v1381 = vpack.c.bf16 %v1339, %v1338
  %v1382 = vpack.c.bf16 %v1341, %v1340
  %v1383 = vpack.c.bf16 %v1343, %v1342
  %v1384 = vpack.c.bf16 %v1345, %v1344
  %v1385 = vpack.c.bf16 %v1347, %v1346
  %v1386 = vpack.c.bf16 %v1349, %v1348
  %v1387 = vpack.c.bf16 %v1351, %v1350
  %v1388 = vld [vmem:[%s3] sm:$0xf]
  %v1389 = vld [vmem:[%s3 + $0x4] sm:$0xf]
  %v1390 = vld [vmem:[%s3 + $0x8] sm:$0xf]
  %v1391 = vld [vmem:[%s3 + $0xc] sm:$0xf]
  %v1392 = vld [vmem:[%s3 + $0x10] sm:$0xf]
  %v1393 = vld [vmem:[%s3 + $0x14] sm:$0xf]
  %v1394 = vld [vmem:[%s3 + $0x18] sm:$0xf]
  %v1395 = vld [vmem:[%s3 + $0x1c] sm:$0xf]
  %v1396 = vld [vmem:[%s3 + $0x20] sm:$0xf]
  %v1397 = vld [vmem:[%s3 + $0x24] sm:$0xf]
  %v1398 = vld [vmem:[%s3 + $0x28] sm:$0xf]
  %v1399 = vld [vmem:[%s3 + $0x2c] sm:$0xf]
  %v1400 = vld [vmem:[%s3 + $0x30] sm:$0xf]
  %v1401 = vld [vmem:[%s3 + $0x34] sm:$0xf]
  %v1402 = vld [vmem:[%s3 + $0x38] sm:$0xf]
  %v1403 = vld [vmem:[%s3 + $0x3c] sm:$0xf]
  %v1412 = vunpack.c.l.b16 %v1396
  %v1413 = vunpack.c.l.b16 %v1397
  %v1414 = vunpack.c.l.b16 %v1398
  %v1415 = vunpack.c.l.b16 %v1399
  %v1416 = vunpack.c.l.b16 %v1400
  %v1417 = vunpack.c.l.b16 %v1401
  %v1418 = vunpack.c.l.b16 %v1402
  %v1419 = vunpack.c.l.b16 %v1403
  %v1420 = vpack.c.b16 %v1413, %v1412
  %v1421 = vpack.c.b16 %v1415, %v1414
  %v1422 = vpack.c.b16 %v1417, %v1416
  %v1423 = vpack.c.b16 %v1419, %v1418
  %v1429 = vsel %vm886, %v1353, 0
  %v1432 = vsel %vm886, %v1354, 0
  %v1435 = vsel %vm886, %v1355, 0
  %v1438 = vsel %vm886, %v1356, 0
  %v1441 = vsel %vm886, %v1357, 0
  %v1444 = vsel %vm886, %v1359, 0
  %v1447 = vsel %vm886, %v1360, 0
  %v1450 = vsel %vm886, %v1361, 0
  %v1453 = vsel %vm886, %v1362, 0
  %v1456 = vsel %vm886, %v1363, 0
  %v1459 = vsel %vm886, %v1365, 0
  %v1462 = vsel %vm886, %v1366, 0
  %v1465 = vsel %vm886, %v1367, 0
  %v1468 = vsel %vm886, %v1368, 0
  %v1471 = vsel %vm886, %v1369, 0
  %v1474 = vsel %vm886, %v1371, 0
  %v1477 = vsel %vm886, %v1372, 0
  %v1480 = vsel %vm886, %v1373, 0
  %v1483 = vsel %vm886, %v1374, 0
  %v1486 = vsel %vm886, %v1375, 0
  %v1489 = vsel %vm886, %v1377, 0
  %v1492 = vsel %vm886, %v1378, 0
  %v1495 = vsel %vm886, %v1379, 0
  %v1498 = vsel %vm886, %v1380, 0
  %v1501 = vsel %vm886, %v1381, 0
  %1503 = vmatprep.subr.bf16.mxu0 0
  %1504 = vmatpush1.bf16.msra.mxu0 %v1420
  %1505 = vmatprep.subr.bf16.mxu0 0
  %1506 = vmatpush1.bf16.msra.mxu0 %v1421
  %1507 = vmatprep.subr.bf16.mxu0 0
  %1508 = vmatpush1.bf16.msra.mxu0 %v1422
  %1509 = vmatprep.subr.bf16.mxu0 0
  %1510 = vmatpush1.bf16.msra.mxu0 %v1423
  %1511 = vmatprep.subr.bf16.mxu0 0
  %1512 = vmatpush1.bf16.msra.mxu0 0
  %1513 = vmatprep.subr.bf16.mxu0 0
  %1514 = vmatpush1.bf16.msra.mxu0 0
  %1515 = vmatprep.subr.bf16.mxu0 0
  %1516 = vmatpush1.bf16.msra.mxu0 0
  %1517 = vmatprep.subr.bf16.mxu0 0
  %1518 = vmatpush1.bf16.msra.mxu0 0
  %1519 = vmatprep.subr.bf16.mxu0 0
  %1520 = vmatpush1.bf16.msra.mxu0 0
  %1521 = vmatprep.subr.bf16.mxu0 0
  %1522 = vmatpush1.bf16.msra.mxu0 0
  %1523 = vmatprep.subr.bf16.mxu0 0
  %1524 = vmatpush1.bf16.msra.mxu0 0
  %1525 = vmatprep.subr.bf16.mxu0 0
  %1526 = vmatpush1.bf16.msra.mxu0 0
  %1527 = vmatprep.subr.bf16.mxu0 0
  %1528 = vmatpush1.bf16.msra.mxu0 0
  %1529 = vmatprep.subr.bf16.mxu0 0
  %1530 = vmatpush1.bf16.msra.mxu0 0
  %1531 = vmatprep.subr.bf16.mxu0 0
  %1532 = vmatpush1.bf16.msra.mxu0 0
  %1533 = vmatprep.subr.bf16.mxu0 0
  %1534 = vmatpush1.bf16.msra.mxu0 0
  %1535 = vmatprep.mubr.bf16.mxu0 0
  %1536 = vmatmul.mubr.bf16.gmra.mrb[0].mxu0 %v1429
  %v1537 = vpop.f32.mrb[0].mxu0
  %v1538 = vadd.f32 0.0, %v1537
  %v1539 = vpop.f32.mrb[0].mxu0
  %v1540 = vpop.f32.mrb[0].mxu0
  %v1541 = vadd.f32 0.0, %v1540
  %v1542 = vpop.f32.mrb[0].mxu0
  %1543 = vmatprep.mubr.bf16.mxu0 0
  %1544 = vmatmul.mubr.bf16.gmra.mrb[0].mxu0 %v1432
  %v1545 = vpop.f32.mrb[0].mxu0
  %v1546 = vadd.f32 0.0, %v1545
  %v1547 = vpop.f32.mrb[0].mxu0
  %v1548 = vpop.f32.mrb[0].mxu0
  %v1549 = vadd.f32 0.0, %v1548
  %v1550 = vpop.f32.mrb[0].mxu0
  %1551 = vmatprep.mubr.bf16.mxu0 0
  %1552 = vmatmul.mubr.bf16.gmra.mrb[0].mxu0 %v1435
  %v1553 = vpop.f32.mrb[0].mxu0
  %v1554 = vadd.f32 0.0, %v1553
  %v1555 = vpop.f32.mrb[0].mxu0
  %v1556 = vpop.f32.mrb[0].mxu0
  %v1557 = vadd.f32 0.0, %v1556
  %v1558 = vpop.f32.mrb[0].mxu0
  %1559 = vmatprep.mubr.bf16.mxu0 0
  %1560 = vmatmul.mubr.bf16.gmra.mrb[0].mxu0 %v1438
  %v1561 = vpop.f32.mrb[0].mxu0
  %v1562 = vadd.f32 0.0, %v1561
  %v1563 = vpop.f32.mrb[0].mxu0
  %v1564 = vpop.f32.mrb[0].mxu0
  %v1565 = vadd.f32 0.0, %v1564
  %v1566 = vpop.f32.mrb[0].mxu0
  %1567 = vmatprep.mubr.bf16.mxu0 0
  %1568 = vmatmul.mubr.bf16.gmra.mrb[0].mxu0 %v1441
  %v1569 = vpop.f32.mrb[0].mxu0
  %v1570 = vadd.f32 0.0, %v1569
  %v1571 = vpop.f32.mrb[0].mxu0
  %v1572 = vpop.f32.mrb[0].mxu0
  %v1573 = vadd.f32 0.0, %v1572
  %v1574 = vpop.f32.mrb[0].mxu0
  %1575 = vmatprep.mubr.bf16.mxu0 0
  %1576 = vmatmul.mubr.bf16.gmra.mrb[0].mxu0 %v1444
  %v1577 = vpop.f32.mrb[0].mxu0
  %v1578 = vadd.f32 0.0, %v1577
  %v1579 = vpop.f32.mrb[0].mxu0
  %v1580 = vpop.f32.mrb[0].mxu0
  %v1581 = vadd.f32 0.0, %v1580
  %v1582 = vpop.f32.mrb[0].mxu0
  %1583 = vmatprep.mubr.bf16.mxu0 0
  %1584 = vmatmul.mubr.bf16.gmra.mrb[0].mxu0 %v1447
  %v1585 = vpop.f32.mrb[0].mxu0
  %v1586 = vadd.f32 0.0, %v1585
  %v1587 = vpop.f32.mrb[0].mxu0
  %v1588 = vpop.f32.mrb[0].mxu0
  %v1589 = vadd.f32 0.0, %v1588
  %v1590 = vpop.f32.mrb[0].mxu0
  %1591 = vmatprep.mubr.bf16.mxu0 0
  %1592 = vmatmul.mubr.bf16.gmra.mrb[0].mxu0 %v1450
  %v1593 = vpop.f32.mrb[0].mxu0
  %v1594 = vadd.f32 0.0, %v1593
  %v1595 = vpop.f32.mrb[0].mxu0
  %v1596 = vpop.f32.mrb[0].mxu0
  %v1597 = vadd.f32 0.0, %v1596
  %v1598 = vpop.f32.mrb[0].mxu0
  %1599 = vmatprep.mubr.bf16.mxu0 0
  %1600 = vmatmul.mubr.bf16.gmra.mrb[0].mxu0 %v1453
  %v1601 = vpop.f32.mrb[0].mxu0
  %v1602 = vadd.f32 0.0, %v1601
  %v1603 = vpop.f32.mrb[0].mxu0
  %v1604 = vpop.f32.mrb[0].mxu0
  %v1605 = vadd.f32 0.0, %v1604
  %v1606 = vpop.f32.mrb[0].mxu0
  %1607 = vmatprep.mubr.bf16.mxu0 0
  %1608 = vmatmul.mubr.bf16.gmra.mrb[0].mxu0 %v1456
  %v1609 = vpop.f32.mrb[0].mxu0
  %v1610 = vadd.f32 0.0, %v1609
  %v1611 = vpop.f32.mrb[0].mxu0
  %v1612 = vpop.f32.mrb[0].mxu0
  %v1613 = vadd.f32 0.0, %v1612
  %v1614 = vpop.f32.mrb[0].mxu0
  %1615 = vmatprep.mubr.bf16.mxu0 0
  %1616 = vmatmul.mubr.bf16.gmra.mrb[0].mxu0 %v1459
  %v1617 = vpop.f32.mrb[0].mxu0
  %v1618 = vadd.f32 0.0, %v1617
  %v1619 = vpop.f32.mrb[0].mxu0
  %v1620 = vpop.f32.mrb[0].mxu0
  %v1621 = vadd.f32 0.0, %v1620
  %v1622 = vpop.f32.mrb[0].mxu0
  %1623 = vmatprep.mubr.bf16.mxu0 0
  %1624 = vmatmul.mubr.bf16.gmra.mrb[0].mxu0 %v1462
  %v1625 = vpop.f32.mrb[0].mxu0
  %v1626 = vadd.f32 0.0, %v1625
  %v1627 = vpop.f32.mrb[0].mxu0
  %v1628 = vpop.f32.mrb[0].mxu0
  %v1629 = vadd.f32 0.0, %v1628
  %v1630 = vpop.f32.mrb[0].mxu0
  %1631 = vmatprep.mubr.bf16.mxu0 0
  %1632 = vmatmul.mubr.bf16.gmra.mrb[0].mxu0 %v1465
  %v1633 = vpop.f32.mrb[0].mxu0
  %v1634 = vadd.f32 0.0, %v1633
  %v1635 = vpop.f32.mrb[0].mxu0
  %v1636 = vpop.f32.mrb[0].mxu0
  %v1637 = vadd.f32 0.0, %v1636
  %v1638 = vpop.f32.mrb[0].mxu0
  %1639 = vmatprep.mubr.bf16.mxu0 0
  %1640 = vmatmul.mubr.bf16.gmra.mrb[0].mxu0 %v1468
  %v1641 = vpop.f32.mrb[0].mxu0
  %v1642 = vadd.f32 0.0, %v1641
  %v1643 = vpop.f32.mrb[0].mxu0
  %v1644 = vpop.f32.mrb[0].mxu0
  %v1645 = vadd.f32 0.0, %v1644
  %v1646 = vpop.f32.mrb[0].mxu0
  %1647 = vmatprep.mubr.bf16.mxu0 0
  %1648 = vmatmul.mubr.bf16.gmra.mrb[0].mxu0 %v1471
  %v1649 = vpop.f32.mrb[0].mxu0
  %v1650 = vadd.f32 0.0, %v1649
  %v1651 = vpop.f32.mrb[0].mxu0
  %v1652 = vpop.f32.mrb[0].mxu0
  %v1653 = vadd.f32 0.0, %v1652
  %v1654 = vpop.f32.mrb[0].mxu0
  %1655 = vmatprep.mubr.bf16.mxu0 0
  %1656 = vmatmul.mubr.bf16.gmra.mrb[0].mxu0 %v1474
  %v1657 = vpop.f32.mrb[0].mxu0
  %v1658 = vadd.f32 0.0, %v1657
  %v1659 = vpop.f32.mrb[0].mxu0
  %v1660 = vpop.f32.mrb[0].mxu0
  %v1661 = vadd.f32 0.0, %v1660
  %v1662 = vpop.f32.mrb[0].mxu0
  %1663 = vmatprep.mubr.bf16.mxu0 0
  %1664 = vmatmul.mubr.bf16.gmra.mrb[0].mxu0 %v1477
  %v1665 = vpop.f32.mrb[0].mxu0
  %v1666 = vadd.f32 0.0, %v1665
  %v1667 = vpop.f32.mrb[0].mxu0
  %v1668 = vpop.f32.mrb[0].mxu0
  %v1669 = vadd.f32 0.0, %v1668
  %v1670 = vpop.f32.mrb[0].mxu0
  %1671 = vmatprep.mubr.bf16.mxu0 0
  %1672 = vmatmul.mubr.bf16.gmra.mrb[0].mxu0 %v1480
  %v1673 = vpop.f32.mrb[0].mxu0
  %v1674 = vadd.f32 0.0, %v1673
  %v1675 = vpop.f32.mrb[0].mxu0
  %v1676 = vpop.f32.mrb[0].mxu0
  %v1677 = vadd.f32 0.0, %v1676
  %v1678 = vpop.f32.mrb[0].mxu0
  %1679 = vmatprep.mubr.bf16.mxu0 0
  %1680 = vmatmul.mubr.bf16.gmra.mrb[0].mxu0 %v1483
  %v1681 = vpop.f32.mrb[0].mxu0
  %v1682 = vadd.f32 0.0, %v1681
  %v1683 = vpop.f32.mrb[0].mxu0
  %v1684 = vpop.f32.mrb[0].mxu0
  %v1685 = vadd.f32 0.0, %v1684
  %v1686 = vpop.f32.mrb[0].mxu0
  %1687 = vmatprep.mubr.bf16.mxu0 0
  %1688 = vmatmul.mubr.bf16.gmra.mrb[0].mxu0 %v1486
  %v1689 = vpop.f32.mrb[0].mxu0
  %v1690 = vadd.f32 0.0, %v1689
  %v1691 = vpop.f32.mrb[0].mxu0
  %v1692 = vpop.f32.mrb[0].mxu0
  %v1693 = vadd.f32 0.0, %v1692
  %v1694 = vpop.f32.mrb[0].mxu0
  %1695 = vmatprep.mubr.bf16.mxu0 0
  %1696 = vmatmul.mubr.bf16.gmra.mrb[0].mxu0 %v1489
  %v1697 = vpop.f32.mrb[0].mxu0
  %v1698 = vadd.f32 0.0, %v1697
  %v1699 = vpop.f32.mrb[0].mxu0
  %v1700 = vpop.f32.mrb[0].mxu0
  %v1701 = vadd.f32 0.0, %v1700
  %v1702 = vpop.f32.mrb[0].mxu0
  %1703 = vmatprep.mubr.bf16.mxu0 0
  %1704 = vmatmul.mubr.bf16.gmra.mrb[0].mxu0 %v1492
  %v1705 = vpop.f32.mrb[0].mxu0
  %v1706 = vadd.f32 0.0, %v1705
  %v1707 = vpop.f32.mrb[0].mxu0
  %v1708 = vpop.f32.mrb[0].mxu0
  %v1709 = vadd.f32 0.0, %v1708
  %v1710 = vpop.f32.mrb[0].mxu0
  %1711 = vmatprep.mubr.bf16.mxu0 0
  %1712 = vmatmul.mubr.bf16.gmra.mrb[0].mxu0 %v1495
  %v1713 = vpop.f32.mrb[0].mxu0
  %v1714 = vadd.f32 0.0, %v1713
  %v1715 = vpop.f32.mrb[0].mxu0
  %v1716 = vpop.f32.mrb[0].mxu0
  %v1717 = vadd.f32 0.0, %v1716
  %v1718 = vpop.f32.mrb[0].mxu0
  %1719 = vmatprep.mubr.bf16.mxu0 0
  %1720 = vmatmul.mubr.bf16.gmra.mrb[0].mxu0 %v1498
  %v1721 = vpop.f32.mrb[0].mxu0
  %v1722 = vadd.f32 0.0, %v1721
  %v1723 = vpop.f32.mrb[0].mxu0
  %v1724 = vpop.f32.mrb[0].mxu0
  %v1725 = vadd.f32 0.0, %v1724
  %v1726 = vpop.f32.mrb[0].mxu0
  %1727 = vmatprep.mubr.bf16.mxu0 0
  %1728 = vmatmul.mubr.bf16.gmra.mrb[0].mxu0 %v1501
  %v1729 = vpop.f32.mrb[0].mxu0
  %v1730 = vadd.f32 0.0, %v1729
  %v1731 = vpop.f32.mrb[0].mxu0
  %v1732 = vpop.f32.mrb[0].mxu0
  %v1733 = vadd.f32 0.0, %v1732
  %v1734 = vpop.f32.mrb[0].mxu0
  %1735 = vdwg.mxu0
  %v1744 = vunpack.c.l.b16 %v1388
  %v1745 = vunpack.c.l.b16 %v1389
  %v1746 = vunpack.c.l.b16 %v1390
  %v1747 = vunpack.c.l.b16 %v1391
  %v1748 = vunpack.c.l.b16 %v1392
  %v1749 = vunpack.c.l.b16 %v1393
  %v1750 = vunpack.c.l.b16 %v1394
  %v1751 = vunpack.c.l.b16 %v1395
  %v1752 = vpack.c.b16 %v1745, %v1744
  %v1753 = vpack.c.b16 %v1747, %v1746
  %v1754 = vpack.c.b16 %v1749, %v1748
  %v1755 = vpack.c.b16 %v1751, %v1750
  %v1761 = vsel %vm886, %v1352, 0
  %v1764 = vsel %vm886, %v1358, 0
  %v1767 = vsel %vm886, %v1364, 0
  %v1770 = vsel %vm886, %v1370, 0
  %v1773 = vsel %vm886, %v1376, 0
  %1775 = vmatprep.subr.bf16.mxu0 0
  %1776 = vmatpush1.bf16.msra.mxu0 %v1752
  %1777 = vmatprep.subr.bf16.mxu0 0
  %1778 = vmatpush1.bf16.msra.mxu0 %v1753
  %1779 = vmatprep.subr.bf16.mxu0 0
  %1780 = vmatpush1.bf16.msra.mxu0 %v1754
  %1781 = vmatprep.subr.bf16.mxu0 0
  %1782 = vmatpush1.bf16.msra.mxu0 %v1755
  %1783 = vmatprep.subr.bf16.mxu0 0
  %1784 = vmatpush1.bf16.msra.mxu0 0
  %1785 = vmatprep.subr.bf16.mxu0 0
  %1786 = vmatpush1.bf16.msra.mxu0 0
  %1787 = vmatprep.subr.bf16.mxu0 0
  %1788 = vmatpush1.bf16.msra.mxu0 0
  %1789 = vmatprep.subr.bf16.mxu0 0
  %1790 = vmatpush1.bf16.msra.mxu0 0
  %1791 = vmatprep.subr.bf16.mxu0 0
  %1792 = vmatpush1.bf16.msra.mxu0 0
  %1793 = vmatprep.subr.bf16.mxu0 0
  %1794 = vmatpush1.bf16.msra.mxu0 0
  %1795 = vmatprep.subr.bf16.mxu0 0
  %1796 = vmatpush1.bf16.msra.mxu0 0
  %1797 = vmatprep.subr.bf16.mxu0 0
  %1798 = vmatpush1.bf16.msra.mxu0 0
  %1799 = vmatprep.subr.bf16.mxu0 0
  %1800 = vmatpush1.bf16.msra.mxu0 0
  %1801 = vmatprep.subr.bf16.mxu0 0
  %1802 = vmatpush1.bf16.msra.mxu0 0
  %1803 = vmatprep.subr.bf16.mxu0 0
  %1804 = vmatpush1.bf16.msra.mxu0 0
  %1805 = vmatprep.subr.bf16.mxu0 0
  %1806 = vmatpush1.bf16.msra.mxu0 0
  %1807 = vmatprep.mubr.bf16.mxu0 0
  %1808 = vmatmul.mubr.bf16.gmra.mrb[0].mxu0 %v1761
  %v1809 = vpop.f32.mrb[0].mxu0
  %v1810 = vadd.f32 %v1538, %v1809
  %v1811 = vpop.f32.mrb[0].mxu0
  %v1812 = vpop.f32.mrb[0].mxu0
  %v1813 = vadd.f32 %v1541, %v1812
  %v1814 = vpop.f32.mrb[0].mxu0
  %1815 = vmatprep.mubr.bf16.mxu0 0
  %1816 = vmatmul.mubr.bf16.gmra.mrb[0].mxu0 %v1429
  %v1817 = vpop.f32.mrb[0].mxu0
  %v1818 = vadd.f32 %v1546, %v1817
  %v1819 = vpop.f32.mrb[0].mxu0
  %v1820 = vpop.f32.mrb[0].mxu0
  %v1821 = vadd.f32 %v1549, %v1820
  %v1822 = vpop.f32.mrb[0].mxu0
  %1823 = vmatprep.mubr.bf16.mxu0 0
  %1824 = vmatmul.mubr.bf16.gmra.mrb[0].mxu0 %v1432
  %v1825 = vpop.f32.mrb[0].mxu0
  %v1826 = vadd.f32 %v1554, %v1825
  %v1827 = vpop.f32.mrb[0].mxu0
  %v1828 = vpop.f32.mrb[0].mxu0
  %v1829 = vadd.f32 %v1557, %v1828
  %v1830 = vpop.f32.mrb[0].mxu0
  %1831 = vmatprep.mubr.bf16.mxu0 0
  %1832 = vmatmul.mubr.bf16.gmra.mrb[0].mxu0 %v1435
  %v1833 = vpop.f32.mrb[0].mxu0
  %v1834 = vadd.f32 %v1562, %v1833
  %v1835 = vpop.f32.mrb[0].mxu0
  %v1836 = vpop.f32.mrb[0].mxu0
  %v1837 = vadd.f32 %v1565, %v1836
  %v1838 = vpop.f32.mrb[0].mxu0
  %1839 = vmatprep.mubr.bf16.mxu0 0
  %1840 = vmatmul.mubr.bf16.gmra.mrb[0].mxu0 %v1438
  %v1841 = vpop.f32.mrb[0].mxu0
  %v1842 = vadd.f32 %v1570, %v1841
  %v1843 = vpop.f32.mrb[0].mxu0
  %v1844 = vpop.f32.mrb[0].mxu0
  %v1845 = vadd.f32 %v1573, %v1844
  %v1846 = vpop.f32.mrb[0].mxu0
  %1847 = vmatprep.mubr.bf16.mxu0 0
  %1848 = vmatmul.mubr.bf16.gmra.mrb[0].mxu0 %v1764
  %v1849 = vpop.f32.mrb[0].mxu0
  %v1850 = vadd.f32 %v1578, %v1849
  %v1851 = vpop.f32.mrb[0].mxu0
  %v1852 = vpop.f32.mrb[0].mxu0
  %v1853 = vadd.f32 %v1581, %v1852
  %v1854 = vpop.f32.mrb[0].mxu0
  %1855 = vmatprep.mubr.bf16.mxu0 0
  %1856 = vmatmul.mubr.bf16.gmra.mrb[0].mxu0 %v1444
  %v1857 = vpop.f32.mrb[0].mxu0
  %v1858 = vadd.f32 %v1586, %v1857
  %v1859 = vpop.f32.mrb[0].mxu0
  %v1860 = vpop.f32.mrb[0].mxu0
  %v1861 = vadd.f32 %v1589, %v1860
  %v1862 = vpop.f32.mrb[0].mxu0
  %1863 = vmatprep.mubr.bf16.mxu0 0
  %1864 = vmatmul.mubr.bf16.gmra.mrb[0].mxu0 %v1447
  %v1865 = vpop.f32.mrb[0].mxu0
  %v1866 = vadd.f32 %v1594, %v1865
  %v1867 = vpop.f32.mrb[0].mxu0
  %v1868 = vpop.f32.mrb[0].mxu0
  %v1869 = vadd.f32 %v1597, %v1868
  %v1870 = vpop.f32.mrb[0].mxu0
  %1871 = vmatprep.mubr.bf16.mxu0 0
  %1872 = vmatmul.mubr.bf16.gmra.mrb[0].mxu0 %v1450
  %v1873 = vpop.f32.mrb[0].mxu0
  %v1874 = vadd.f32 %v1602, %v1873
  %v1875 = vpop.f32.mrb[0].mxu0
  %v1876 = vpop.f32.mrb[0].mxu0
  %v1877 = vadd.f32 %v1605, %v1876
  %v1878 = vpop.f32.mrb[0].mxu0
  %1879 = vmatprep.mubr.bf16.mxu0 0
  %1880 = vmatmul.mubr.bf16.gmra.mrb[0].mxu0 %v1453
  %v1881 = vpop.f32.mrb[0].mxu0
  %v1882 = vadd.f32 %v1610, %v1881
  %v1883 = vpop.f32.mrb[0].mxu0
  %v1884 = vpop.f32.mrb[0].mxu0
  %v1885 = vadd.f32 %v1613, %v1884
  %v1886 = vpop.f32.mrb[0].mxu0
  %1887 = vmatprep.mubr.bf16.mxu0 0
  %1888 = vmatmul.mubr.bf16.gmra.mrb[0].mxu0 %v1767
  %v1889 = vpop.f32.mrb[0].mxu0
  %v1890 = vadd.f32 %v1618, %v1889
  %v1891 = vpop.f32.mrb[0].mxu0
  %v1892 = vpop.f32.mrb[0].mxu0
  %v1893 = vadd.f32 %v1621, %v1892
  %v1894 = vpop.f32.mrb[0].mxu0
  %1895 = vmatprep.mubr.bf16.mxu0 0
  %1896 = vmatmul.mubr.bf16.gmra.mrb[0].mxu0 %v1459
  %v1897 = vpop.f32.mrb[0].mxu0
  %v1898 = vadd.f32 %v1626, %v1897
  %v1899 = vpop.f32.mrb[0].mxu0
  %v1900 = vpop.f32.mrb[0].mxu0
  %v1901 = vadd.f32 %v1629, %v1900
  %v1902 = vpop.f32.mrb[0].mxu0
  %1903 = vmatprep.mubr.bf16.mxu0 0
  %1904 = vmatmul.mubr.bf16.gmra.mrb[0].mxu0 %v1462
  %v1905 = vpop.f32.mrb[0].mxu0
  %v1906 = vadd.f32 %v1634, %v1905
  %v1907 = vpop.f32.mrb[0].mxu0
  %v1908 = vpop.f32.mrb[0].mxu0
  %v1909 = vadd.f32 %v1637, %v1908
  %v1910 = vpop.f32.mrb[0].mxu0
  %1911 = vmatprep.mubr.bf16.mxu0 0
  %1912 = vmatmul.mubr.bf16.gmra.mrb[0].mxu0 %v1465
  %v1913 = vpop.f32.mrb[0].mxu0
  %v1914 = vadd.f32 %v1642, %v1913
  %v1915 = vpop.f32.mrb[0].mxu0
  %v1916 = vpop.f32.mrb[0].mxu0
  %v1917 = vadd.f32 %v1645, %v1916
  %v1918 = vpop.f32.mrb[0].mxu0
  %1919 = vmatprep.mubr.bf16.mxu0 0
  %1920 = vmatmul.mubr.bf16.gmra.mrb[0].mxu0 %v1468
  %v1921 = vpop.f32.mrb[0].mxu0
  %v1922 = vadd.f32 %v1650, %v1921
  %v1923 = vpop.f32.mrb[0].mxu0
  %v1924 = vpop.f32.mrb[0].mxu0
  %v1925 = vadd.f32 %v1653, %v1924
  %v1926 = vpop.f32.mrb[0].mxu0
  %1927 = vmatprep.mubr.bf16.mxu0 0
  %1928 = vmatmul.mubr.bf16.gmra.mrb[0].mxu0 %v1770
  %v1929 = vpop.f32.mrb[0].mxu0
  %v1930 = vadd.f32 %v1658, %v1929
  %v1931 = vpop.f32.mrb[0].mxu0
  %v1932 = vpop.f32.mrb[0].mxu0
  %v1933 = vadd.f32 %v1661, %v1932
  %v1934 = vpop.f32.mrb[0].mxu0
  %1935 = vmatprep.mubr.bf16.mxu0 0
  %1936 = vmatmul.mubr.bf16.gmra.mrb[0].mxu0 %v1474
  %v1937 = vpop.f32.mrb[0].mxu0
  %v1938 = vadd.f32 %v1666, %v1937
  %v1939 = vpop.f32.mrb[0].mxu0
  %v1940 = vpop.f32.mrb[0].mxu0
  %v1941 = vadd.f32 %v1669, %v1940
  %v1942 = vpop.f32.mrb[0].mxu0
  %1943 = vmatprep.mubr.bf16.mxu0 0
  %1944 = vmatmul.mubr.bf16.gmra.mrb[0].mxu0 %v1477
  %v1945 = vpop.f32.mrb[0].mxu0
  %v1946 = vadd.f32 %v1674, %v1945
  %v1947 = vpop.f32.mrb[0].mxu0
  %v1948 = vpop.f32.mrb[0].mxu0
  %v1949 = vadd.f32 %v1677, %v1948
  %v1950 = vpop.f32.mrb[0].mxu0
  %1951 = vmatprep.mubr.bf16.mxu0 0
  %1952 = vmatmul.mubr.bf16.gmra.mrb[0].mxu0 %v1480
  %v1953 = vpop.f32.mrb[0].mxu0
  %v1954 = vadd.f32 %v1682, %v1953
  %v1955 = vpop.f32.mrb[0].mxu0
  %v1956 = vpop.f32.mrb[0].mxu0
  %v1957 = vadd.f32 %v1685, %v1956
  %v1958 = vpop.f32.mrb[0].mxu0
  %1959 = vmatprep.mubr.bf16.mxu0 0
  %1960 = vmatmul.mubr.bf16.gmra.mrb[0].mxu0 %v1483
  %v1961 = vpop.f32.mrb[0].mxu0
  %v1962 = vadd.f32 %v1690, %v1961
  %v1963 = vpop.f32.mrb[0].mxu0
  %v1964 = vpop.f32.mrb[0].mxu0
  %v1965 = vadd.f32 %v1693, %v1964
  %v1966 = vpop.f32.mrb[0].mxu0
  %1967 = vmatprep.mubr.bf16.mxu0 0
  %1968 = vmatmul.mubr.bf16.gmra.mrb[0].mxu0 %v1773
  %v1969 = vpop.f32.mrb[0].mxu0
  %v1970 = vadd.f32 %v1698, %v1969
  %v1971 = vpop.f32.mrb[0].mxu0
  %v1972 = vpop.f32.mrb[0].mxu0
  %v1973 = vadd.f32 %v1701, %v1972
  %v1974 = vpop.f32.mrb[0].mxu0
  %1975 = vmatprep.mubr.bf16.mxu0 0
  %1976 = vmatmul.mubr.bf16.gmra.mrb[0].mxu0 %v1489
  %v1977 = vpop.f32.mrb[0].mxu0
  %v1978 = vadd.f32 %v1706, %v1977
  %v1979 = vpop.f32.mrb[0].mxu0
  %v1980 = vpop.f32.mrb[0].mxu0
  %v1981 = vadd.f32 %v1709, %v1980
  %v1982 = vpop.f32.mrb[0].mxu0
  %1983 = vmatprep.mubr.bf16.mxu0 0
  %1984 = vmatmul.mubr.bf16.gmra.mrb[0].mxu0 %v1492
  %v1985 = vpop.f32.mrb[0].mxu0
  %v1986 = vadd.f32 %v1714, %v1985
  %v1987 = vpop.f32.mrb[0].mxu0
  %v1988 = vpop.f32.mrb[0].mxu0
  %v1989 = vadd.f32 %v1717, %v1988
  %v1990 = vpop.f32.mrb[0].mxu0
  %1991 = vmatprep.mubr.bf16.mxu0 0
  %1992 = vmatmul.mubr.bf16.gmra.mrb[0].mxu0 %v1495
  %v1993 = vpop.f32.mrb[0].mxu0
  %v1994 = vadd.f32 %v1722, %v1993
  %v1995 = vpop.f32.mrb[0].mxu0
  %v1996 = vpop.f32.mrb[0].mxu0
  %v1997 = vadd.f32 %v1725, %v1996
  %v1998 = vpop.f32.mrb[0].mxu0
  %1999 = vmatprep.mubr.bf16.mxu0 0
  %2000 = vmatmul.mubr.bf16.gmra.mrb[0].mxu0 %v1498
  %v2001 = vpop.f32.mrb[0].mxu0
  %v2002 = vadd.f32 %v1730, %v2001
  %v2003 = vpop.f32.mrb[0].mxu0
  %v2004 = vpop.f32.mrb[0].mxu0
  %v2005 = vadd.f32 %v1733, %v2004
  %v2006 = vpop.f32.mrb[0].mxu0
  %2007 = vdwg.mxu0
  %v2008 = vld [vmem:[%s3 + $0x40] sm:$0xf]
  %v2009 = vld [vmem:[%s3 + $0x44] sm:$0xf]
  %v2010 = vld [vmem:[%s3 + $0x48] sm:$0xf]
  %v2011 = vld [vmem:[%s3 + $0x4c] sm:$0xf]
  %v2012 = vld [vmem:[%s3 + $0x50] sm:$0xf]
  %v2013 = vld [vmem:[%s3 + $0x54] sm:$0xf]
  %v2014 = vld [vmem:[%s3 + $0x58] sm:$0xf]
  %v2015 = vld [vmem:[%s3 + $0x5c] sm:$0xf]
  %v2024 = vunpack.c.l.b16 %v2008
  %v2025 = vunpack.c.l.b16 %v2009
  %v2026 = vunpack.c.l.b16 %v2010
  %v2027 = vunpack.c.l.b16 %v2011
  %v2028 = vunpack.c.l.b16 %v2012
  %v2029 = vunpack.c.l.b16 %v2013
  %v2030 = vunpack.c.l.b16 %v2014
  %v2031 = vunpack.c.l.b16 %v2015
  %v2032 = vpack.c.b16 %v2025, %v2024
  %v2033 = vpack.c.b16 %v2027, %v2026
  %v2034 = vpack.c.b16 %v2029, %v2028
  %v2035 = vpack.c.b16 %v2031, %v2030
  %v2041 = vsel %vm886, %v1382, 0
  %v2044 = vsel %vm886, %v1383, 0
  %v2047 = vsel %vm886, %v1384, 0
  %v2050 = vsel %vm886, %v1385, 0
  %v2053 = vsel %vm886, %v1386, 0
  %2055 = vmatprep.subr.bf16.mxu0 0
  %2056 = vmatpush1.bf16.msra.mxu0 %v2032
  %2057 = vmatprep.subr.bf16.mxu0 0
  %2058 = vmatpush1.bf16.msra.mxu0 %v2033
  %2059 = vmatprep.subr.bf16.mxu0 0
  %2060 = vmatpush1.bf16.msra.mxu0 %v2034
  %2061 = vmatprep.subr.bf16.mxu0 0
  %2062 = vmatpush1.bf16.msra.mxu0 %v2035
  %2063 = vmatprep.subr.bf16.mxu0 0
  %2064 = vmatpush1.bf16.msra.mxu0 0
  %2065 = vmatprep.subr.bf16.mxu0 0
  %2066 = vmatpush1.bf16.msra.mxu0 0
  %2067 = vmatprep.subr.bf16.mxu0 0
  %2068 = vmatpush1.bf16.msra.mxu0 0
  %2069 = vmatprep.subr.bf16.mxu0 0
  %2070 = vmatpush1.bf16.msra.mxu0 0
  %2071 = vmatprep.subr.bf16.mxu0 0
  %2072 = vmatpush1.bf16.msra.mxu0 0
  %2073 = vmatprep.subr.bf16.mxu0 0
  %2074 = vmatpush1.bf16.msra.mxu0 0
  %2075 = vmatprep.subr.bf16.mxu0 0
  %2076 = vmatpush1.bf16.msra.mxu0 0
  %2077 = vmatprep.subr.bf16.mxu0 0
  %2078 = vmatpush1.bf16.msra.mxu0 0
  %2079 = vmatprep.subr.bf16.mxu0 0
  %2080 = vmatpush1.bf16.msra.mxu0 0
  %2081 = vmatprep.subr.bf16.mxu0 0
  %2082 = vmatpush1.bf16.msra.mxu0 0
  %2083 = vmatprep.subr.bf16.mxu0 0
  %2084 = vmatpush1.bf16.msra.mxu0 0
  %2085 = vmatprep.subr.bf16.mxu0 0
  %2086 = vmatpush1.bf16.msra.mxu0 0
  %2087 = vmatprep.mubr.bf16.mxu0 0
  %2088 = vmatmul.mubr.bf16.gmra.mrb[0].mxu0 %v1764
  %v2089 = vpop.f32.mrb[0].mxu0
  %v2090 = vadd.f32 0.0, %v2089
  %v2091 = vpop.f32.mrb[0].mxu0
  %v2092 = vpop.f32.mrb[0].mxu0
  %v2093 = vadd.f32 0.0, %v2092
  %v2094 = vpop.f32.mrb[0].mxu0
  %2095 = vmatprep.mubr.bf16.mxu0 0
  %2096 = vmatmul.mubr.bf16.gmra.mrb[0].mxu0 %v1444
  %v2097 = vpop.f32.mrb[0].mxu0
  %v2098 = vadd.f32 0.0, %v2097
  %v2099 = vpop.f32.mrb[0].mxu0
  %v2100 = vpop.f32.mrb[0].mxu0
  %v2101 = vadd.f32 0.0, %v2100
  %v2102 = vpop.f32.mrb[0].mxu0
  %2103 = vmatprep.mubr.bf16.mxu0 0
  %2104 = vmatmul.mubr.bf16.gmra.mrb[0].mxu0 %v1447
  %v2105 = vpop.f32.mrb[0].mxu0
  %v2106 = vadd.f32 0.0, %v2105
  %v2107 = vpop.f32.mrb[0].mxu0
  %v2108 = vpop.f32.mrb[0].mxu0
  %v2109 = vadd.f32 0.0, %v2108
  %v2110 = vpop.f32.mrb[0].mxu0
  %2111 = vmatprep.mubr.bf16.mxu0 0
  %2112 = vmatmul.mubr.bf16.gmra.mrb[0].mxu0 %v1450
  %v2113 = vpop.f32.mrb[0].mxu0
  %v2114 = vadd.f32 0.0, %v2113
  %v2115 = vpop.f32.mrb[0].mxu0
  %v2116 = vpop.f32.mrb[0].mxu0
  %v2117 = vadd.f32 0.0, %v2116
  %v2118 = vpop.f32.mrb[0].mxu0
  %2119 = vmatprep.mubr.bf16.mxu0 0
  %2120 = vmatmul.mubr.bf16.gmra.mrb[0].mxu0 %v1453
  %v2121 = vpop.f32.mrb[0].mxu0
  %v2122 = vadd.f32 0.0, %v2121
  %v2123 = vpop.f32.mrb[0].mxu0
  %v2124 = vpop.f32.mrb[0].mxu0
  %v2125 = vadd.f32 0.0, %v2124
  %v2126 = vpop.f32.mrb[0].mxu0
  %2127 = vmatprep.mubr.bf16.mxu0 0
  %2128 = vmatmul.mubr.bf16.gmra.mrb[0].mxu0 %v1767
  %v2129 = vpop.f32.mrb[0].mxu0
  %v2130 = vadd.f32 0.0, %v2129
  %v2131 = vpop.f32.mrb[0].mxu0
  %v2132 = vpop.f32.mrb[0].mxu0
  %v2133 = vadd.f32 0.0, %v2132
  %v2134 = vpop.f32.mrb[0].mxu0
  %2135 = vmatprep.mubr.bf16.mxu0 0
  %2136 = vmatmul.mubr.bf16.gmra.mrb[0].mxu0 %v1459
  %v2137 = vpop.f32.mrb[0].mxu0
  %v2138 = vadd.f32 0.0, %v2137
  %v2139 = vpop.f32.mrb[0].mxu0
  %v2140 = vpop.f32.mrb[0].mxu0
  %v2141 = vadd.f32 0.0, %v2140
  %v2142 = vpop.f32.mrb[0].mxu0
  %2143 = vmatprep.mubr.bf16.mxu0 0
  %2144 = vmatmul.mubr.bf16.gmra.mrb[0].mxu0 %v1462
  %v2145 = vpop.f32.mrb[0].mxu0
  %v2146 = vadd.f32 0.0, %v2145
  %v2147 = vpop.f32.mrb[0].mxu0
  %v2148 = vpop.f32.mrb[0].mxu0
  %v2149 = vadd.f32 0.0, %v2148
  %v2150 = vpop.f32.mrb[0].mxu0
  %2151 = vmatprep.mubr.bf16.mxu0 0
  %2152 = vmatmul.mubr.bf16.gmra.mrb[0].mxu0 %v1465
  %v2153 = vpop.f32.mrb[0].mxu0
  %v2154 = vadd.f32 0.0, %v2153
  %v2155 = vpop.f32.mrb[0].mxu0
  %v2156 = vpop.f32.mrb[0].mxu0
  %v2157 = vadd.f32 0.0, %v2156
  %v2158 = vpop.f32.mrb[0].mxu0
  %2159 = vmatprep.mubr.bf16.mxu0 0
  %2160 = vmatmul.mubr.bf16.gmra.mrb[0].mxu0 %v1468
  %v2161 = vpop.f32.mrb[0].mxu0
  %v2162 = vadd.f32 0.0, %v2161
  %v2163 = vpop.f32.mrb[0].mxu0
  %v2164 = vpop.f32.mrb[0].mxu0
  %v2165 = vadd.f32 0.0, %v2164
  %v2166 = vpop.f32.mrb[0].mxu0
  %2167 = vmatprep.mubr.bf16.mxu0 0
  %2168 = vmatmul.mubr.bf16.gmra.mrb[0].mxu0 %v1770
  %v2169 = vpop.f32.mrb[0].mxu0
  %v2170 = vadd.f32 0.0, %v2169
  %v2171 = vpop.f32.mrb[0].mxu0
  %v2172 = vpop.f32.mrb[0].mxu0
  %v2173 = vadd.f32 0.0, %v2172
  %v2174 = vpop.f32.mrb[0].mxu0
  %2175 = vmatprep.mubr.bf16.mxu0 0
  %2176 = vmatmul.mubr.bf16.gmra.mrb[0].mxu0 %v1474
  %v2177 = vpop.f32.mrb[0].mxu0
  %v2178 = vadd.f32 0.0, %v2177
  %v2179 = vpop.f32.mrb[0].mxu0
  %v2180 = vpop.f32.mrb[0].mxu0
  %v2181 = vadd.f32 0.0, %v2180
  %v2182 = vpop.f32.mrb[0].mxu0
  %2183 = vmatprep.mubr.bf16.mxu0 0
  %2184 = vmatmul.mubr.bf16.gmra.mrb[0].mxu0 %v1477
  %v2185 = vpop.f32.mrb[0].mxu0
  %v2186 = vadd.f32 0.0, %v2185
  %v2187 = vpop.f32.mrb[0].mxu0
  %v2188 = vpop.f32.mrb[0].mxu0
  %v2189 = vadd.f32 0.0, %v2188
  %v2190 = vpop.f32.mrb[0].mxu0
  %2191 = vmatprep.mubr.bf16.mxu0 0
  %2192 = vmatmul.mubr.bf16.gmra.mrb[0].mxu0 %v1480
  %v2193 = vpop.f32.mrb[0].mxu0
  %v2194 = vadd.f32 0.0, %v2193
  %v2195 = vpop.f32.mrb[0].mxu0
  %v2196 = vpop.f32.mrb[0].mxu0
  %v2197 = vadd.f32 0.0, %v2196
  %v2198 = vpop.f32.mrb[0].mxu0
  %2199 = vmatprep.mubr.bf16.mxu0 0
  %2200 = vmatmul.mubr.bf16.gmra.mrb[0].mxu0 %v1483
  %v2201 = vpop.f32.mrb[0].mxu0
  %v2202 = vadd.f32 0.0, %v2201
  %v2203 = vpop.f32.mrb[0].mxu0
  %v2204 = vpop.f32.mrb[0].mxu0
  %v2205 = vadd.f32 0.0, %v2204
  %v2206 = vpop.f32.mrb[0].mxu0
  %2207 = vmatprep.mubr.bf16.mxu0 0
  %2208 = vmatmul.mubr.bf16.gmra.mrb[0].mxu0 %v1773
  %v2209 = vpop.f32.mrb[0].mxu0
  %v2210 = vadd.f32 0.0, %v2209
  %v2211 = vpop.f32.mrb[0].mxu0
  %v2212 = vpop.f32.mrb[0].mxu0
  %v2213 = vadd.f32 0.0, %v2212
  %v2214 = vpop.f32.mrb[0].mxu0
  %2215 = vmatprep.mubr.bf16.mxu0 0
  %2216 = vmatmul.mubr.bf16.gmra.mrb[0].mxu0 %v1489
  %v2217 = vpop.f32.mrb[0].mxu0
  %v2218 = vadd.f32 0.0, %v2217
  %v2219 = vpop.f32.mrb[0].mxu0
  %v2220 = vpop.f32.mrb[0].mxu0
  %v2221 = vadd.f32 0.0, %v2220
  %v2222 = vpop.f32.mrb[0].mxu0
  %2223 = vmatprep.mubr.bf16.mxu0 0
  %2224 = vmatmul.mubr.bf16.gmra.mrb[0].mxu0 %v1492
  %v2225 = vpop.f32.mrb[0].mxu0
  %v2226 = vadd.f32 0.0, %v2225
  %v2227 = vpop.f32.mrb[0].mxu0
  %v2228 = vpop.f32.mrb[0].mxu0
  %v2229 = vadd.f32 0.0, %v2228
  %v2230 = vpop.f32.mrb[0].mxu0
  %2231 = vmatprep.mubr.bf16.mxu0 0
  %2232 = vmatmul.mubr.bf16.gmra.mrb[0].mxu0 %v1495
  %v2233 = vpop.f32.mrb[0].mxu0
  %v2234 = vadd.f32 0.0, %v2233
  %v2235 = vpop.f32.mrb[0].mxu0
  %v2236 = vpop.f32.mrb[0].mxu0
  %v2237 = vadd.f32 0.0, %v2236
  %v2238 = vpop.f32.mrb[0].mxu0
  %2239 = vmatprep.mubr.bf16.mxu0 0
  %2240 = vmatmul.mubr.bf16.gmra.mrb[0].mxu0 %v1498
  %v2241 = vpop.f32.mrb[0].mxu0
  %v2242 = vadd.f32 0.0, %v2241
  %v2243 = vpop.f32.mrb[0].mxu0
  %v2244 = vpop.f32.mrb[0].mxu0
  %v2245 = vadd.f32 0.0, %v2244
  %v2246 = vpop.f32.mrb[0].mxu0
  %2247 = vmatprep.mubr.bf16.mxu0 0
  %2248 = vmatmul.mubr.bf16.gmra.mrb[0].mxu0 %v2041
  %v2249 = vpop.f32.mrb[0].mxu0
  %v2250 = vadd.f32 0.0, %v2249
  %v2251 = vpop.f32.mrb[0].mxu0
  %v2252 = vpop.f32.mrb[0].mxu0
  %v2253 = vadd.f32 0.0, %v2252
  %v2254 = vpop.f32.mrb[0].mxu0
  %2255 = vmatprep.mubr.bf16.mxu0 0
  %2256 = vmatmul.mubr.bf16.gmra.mrb[0].mxu0 %v2044
  %v2257 = vpop.f32.mrb[0].mxu0
  %v2258 = vadd.f32 0.0, %v2257
  %v2259 = vpop.f32.mrb[0].mxu0
  %v2260 = vpop.f32.mrb[0].mxu0
  %v2261 = vadd.f32 0.0, %v2260
  %v2262 = vpop.f32.mrb[0].mxu0
  %2263 = vmatprep.mubr.bf16.mxu0 0
  %2264 = vmatmul.mubr.bf16.gmra.mrb[0].mxu0 %v2047
  %v2265 = vpop.f32.mrb[0].mxu0
  %v2266 = vadd.f32 0.0, %v2265
  %v2267 = vpop.f32.mrb[0].mxu0
  %v2268 = vpop.f32.mrb[0].mxu0
  %v2269 = vadd.f32 0.0, %v2268
  %v2270 = vpop.f32.mrb[0].mxu0
  %2271 = vmatprep.mubr.bf16.mxu0 0
  %2272 = vmatmul.mubr.bf16.gmra.mrb[0].mxu0 %v2050
  %v2273 = vpop.f32.mrb[0].mxu0
  %v2274 = vadd.f32 0.0, %v2273
  %v2275 = vpop.f32.mrb[0].mxu0
  %v2276 = vpop.f32.mrb[0].mxu0
  %v2277 = vadd.f32 0.0, %v2276
  %v2278 = vpop.f32.mrb[0].mxu0
  %2279 = vmatprep.mubr.bf16.mxu0 0
  %2280 = vmatmul.mubr.bf16.gmra.mrb[0].mxu0 %v2053
  %v2281 = vpop.f32.mrb[0].mxu0
  %v2282 = vadd.f32 0.0, %v2281
  %v2283 = vpop.f32.mrb[0].mxu0
  %v2284 = vpop.f32.mrb[0].mxu0
  %v2285 = vadd.f32 0.0, %v2284
  %v2286 = vpop.f32.mrb[0].mxu0
  %2287 = vdwg.mxu0
  %v2288 = vadd.f32 %v1810, %v2090
  %v2289 = vadd.f32 %v1813, %v2093
  %v2290 = vadd.f32 %v1818, %v2098
  %v2291 = vadd.f32 %v1821, %v2101
  %v2292 = vadd.f32 %v1826, %v2106
  %v2293 = vadd.f32 %v1829, %v2109
  %v2294 = vadd.f32 %v1834, %v2114
  %v2295 = vadd.f32 %v1837, %v2117
  %v2296 = vadd.f32 %v1842, %v2122
  %v2297 = vadd.f32 %v1845, %v2125
  %v2298 = vadd.f32 %v1850, %v2130
  %v2299 = vadd.f32 %v1853, %v2133
  %v2300 = vadd.f32 %v1858, %v2138
  %v2301 = vadd.f32 %v1861, %v2141
  %v2302 = vadd.f32 %v1866, %v2146
  %v2303 = vadd.f32 %v1869, %v2149
  %v2304 = vadd.f32 %v1874, %v2154
  %v2305 = vadd.f32 %v1877, %v2157
  %v2306 = vadd.f32 %v1882, %v2162
  %v2307 = vadd.f32 %v1885, %v2165
  %v2308 = vadd.f32 %v1890, %v2170
  %v2309 = vadd.f32 %v1893, %v2173
  %v2310 = vadd.f32 %v1898, %v2178
  %v2311 = vadd.f32 %v1901, %v2181
  %v2312 = vadd.f32 %v1906, %v2186
  %v2313 = vadd.f32 %v1909, %v2189
  %v2314 = vadd.f32 %v1914, %v2194
  %v2315 = vadd.f32 %v1917, %v2197
  %v2316 = vadd.f32 %v1922, %v2202
  %v2317 = vadd.f32 %v1925, %v2205
  %v2318 = vadd.f32 %v1930, %v2210
  %v2319 = vadd.f32 %v1933, %v2213
  %v2320 = vadd.f32 %v1938, %v2218
  %v2321 = vadd.f32 %v1941, %v2221
  %v2322 = vadd.f32 %v1946, %v2226
  %v2323 = vadd.f32 %v1949, %v2229
  %v2324 = vadd.f32 %v1954, %v2234
  %v2325 = vadd.f32 %v1957, %v2237
  %v2326 = vadd.f32 %v1962, %v2242
  %v2327 = vadd.f32 %v1965, %v2245
  %v2328 = vadd.f32 %v1970, %v2250
  %v2329 = vadd.f32 %v1973, %v2253
  %v2330 = vadd.f32 %v1978, %v2258
  %v2331 = vadd.f32 %v1981, %v2261
  %v2332 = vadd.f32 %v1986, %v2266
  %v2333 = vadd.f32 %v1989, %v2269
  %v2334 = vadd.f32 %v1994, %v2274
  %v2335 = vadd.f32 %v1997, %v2277
  %v2336 = vadd.f32 %v2002, %v2282
  %v2337 = vadd.f32 %v2005, %v2285
  %v2338 = vld [vmem:[%s3 + $0x60] sm:$0xf]
  %v2339 = vld [vmem:[%s3 + $0x64] sm:$0xf]
  %v2340 = vld [vmem:[%s3 + $0x68] sm:$0xf]
  %v2341 = vld [vmem:[%s3 + $0x6c] sm:$0xf]
  %v2342 = vld [vmem:[%s3 + $0x70] sm:$0xf]
  %v2343 = vld [vmem:[%s3 + $0x74] sm:$0xf]
  %v2344 = vld [vmem:[%s3 + $0x78] sm:$0xf]
  %v2345 = vld [vmem:[%s3 + $0x7c] sm:$0xf]
  %v2354 = vunpack.c.l.b16 %v2338
  %v2355 = vunpack.c.l.b16 %v2339
  %v2356 = vunpack.c.l.b16 %v2340
  %v2357 = vunpack.c.l.b16 %v2341
  %v2358 = vunpack.c.l.b16 %v2342
  %v2359 = vunpack.c.l.b16 %v2343
  %v2360 = vunpack.c.l.b16 %v2344
  %v2361 = vunpack.c.l.b16 %v2345
  %v2362 = vpack.c.b16 %v2355, %v2354
  %v2363 = vpack.c.b16 %v2357, %v2356
  %v2364 = vpack.c.b16 %v2359, %v2358
  %v2365 = vpack.c.b16 %v2361, %v2360
  %v2371 = vsel %vm886, %v1387, 0
  %2373 = vmatprep.subr.bf16.mxu0 0
  %2374 = vmatpush1.bf16.msra.mxu0 %v2362
  %2375 = vmatprep.subr.bf16.mxu0 0
  %2376 = vmatpush1.bf16.msra.mxu0 %v2363
  %2377 = vmatprep.subr.bf16.mxu0 0
  %2378 = vmatpush1.bf16.msra.mxu0 %v2364
  %2379 = vmatprep.subr.bf16.mxu0 0
  %2380 = vmatpush1.bf16.msra.mxu0 %v2365
  %2381 = vmatprep.subr.bf16.mxu0 0
  %2382 = vmatpush1.bf16.msra.mxu0 0
  %2383 = vmatprep.subr.bf16.mxu0 0
  %2384 = vmatpush1.bf16.msra.mxu0 0
  %2385 = vmatprep.subr.bf16.mxu0 0
  %2386 = vmatpush1.bf16.msra.mxu0 0
  %2387 = vmatprep.subr.bf16.mxu0 0
  %2388 = vmatpush1.bf16.msra.mxu0 0
  %2389 = vmatprep.subr.bf16.mxu0 0
  %2390 = vmatpush1.bf16.msra.mxu0 0
  %2391 = vmatprep.subr.bf16.mxu0 0
  %2392 = vmatpush1.bf16.msra.mxu0 0
  %2393 = vmatprep.subr.bf16.mxu0 0
  %2394 = vmatpush1.bf16.msra.mxu0 0
  %2395 = vmatprep.subr.bf16.mxu0 0
  %2396 = vmatpush1.bf16.msra.mxu0 0
  %2397 = vmatprep.subr.bf16.mxu0 0
  %2398 = vmatpush1.bf16.msra.mxu0 0
  %2399 = vmatprep.subr.bf16.mxu0 0
  %2400 = vmatpush1.bf16.msra.mxu0 0
  %2401 = vmatprep.subr.bf16.mxu0 0
  %2402 = vmatpush1.bf16.msra.mxu0 0
  %2403 = vmatprep.subr.bf16.mxu0 0
  %2404 = vmatpush1.bf16.msra.mxu0 0
  %2405 = vmatprep.mubr.bf16.mxu0 0
  %2406 = vmatmul.mubr.bf16.gmra.mrb[0].mxu0 %v1444
  %v2407 = vpop.f32.mrb[0].mxu0
  %v2408 = vadd.f32 0.0, %v2407
  %v2409 = vpop.f32.mrb[0].mxu0
  %v2410 = vpop.f32.mrb[0].mxu0
  %v2411 = vadd.f32 0.0, %v2410
  %v2412 = vpop.f32.mrb[0].mxu0
  %2413 = vmatprep.mubr.bf16.mxu0 0
  %2414 = vmatmul.mubr.bf16.gmra.mrb[0].mxu0 %v1447
  %v2415 = vpop.f32.mrb[0].mxu0
  %v2416 = vadd.f32 0.0, %v2415
  %v2417 = vpop.f32.mrb[0].mxu0
  %v2418 = vpop.f32.mrb[0].mxu0
  %v2419 = vadd.f32 0.0, %v2418
  %v2420 = vpop.f32.mrb[0].mxu0
  %2421 = vmatprep.mubr.bf16.mxu0 0
  %2422 = vmatmul.mubr.bf16.gmra.mrb[0].mxu0 %v1450
  %v2423 = vpop.f32.mrb[0].mxu0
  %v2424 = vadd.f32 0.0, %v2423
  %v2425 = vpop.f32.mrb[0].mxu0
  %v2426 = vpop.f32.mrb[0].mxu0
  %v2427 = vadd.f32 0.0, %v2426
  %v2428 = vpop.f32.mrb[0].mxu0
  %2429 = vmatprep.mubr.bf16.mxu0 0
  %2430 = vmatmul.mubr.bf16.gmra.mrb[0].mxu0 %v1453
  %v2431 = vpop.f32.mrb[0].mxu0
  %v2432 = vadd.f32 0.0, %v2431
  %v2433 = vpop.f32.mrb[0].mxu0
  %v2434 = vpop.f32.mrb[0].mxu0
  %v2435 = vadd.f32 0.0, %v2434
  %v2436 = vpop.f32.mrb[0].mxu0
  %2437 = vmatprep.mubr.bf16.mxu0 0
  %2438 = vmatmul.mubr.bf16.gmra.mrb[0].mxu0 %v1456
  %v2439 = vpop.f32.mrb[0].mxu0
  %v2440 = vadd.f32 0.0, %v2439
  %v2441 = vpop.f32.mrb[0].mxu0
  %v2442 = vpop.f32.mrb[0].mxu0
  %v2443 = vadd.f32 0.0, %v2442
  %v2444 = vpop.f32.mrb[0].mxu0
  %2445 = vmatprep.mubr.bf16.mxu0 0
  %2446 = vmatmul.mubr.bf16.gmra.mrb[0].mxu0 %v1459
  %v2447 = vpop.f32.mrb[0].mxu0
  %v2448 = vadd.f32 0.0, %v2447
  %v2449 = vpop.f32.mrb[0].mxu0
  %v2450 = vpop.f32.mrb[0].mxu0
  %v2451 = vadd.f32 0.0, %v2450
  %v2452 = vpop.f32.mrb[0].mxu0
  %2453 = vmatprep.mubr.bf16.mxu0 0
  %2454 = vmatmul.mubr.bf16.gmra.mrb[0].mxu0 %v1462
  %v2455 = vpop.f32.mrb[0].mxu0
  %v2456 = vadd.f32 0.0, %v2455
  %v2457 = vpop.f32.mrb[0].mxu0
  %v2458 = vpop.f32.mrb[0].mxu0
  %v2459 = vadd.f32 0.0, %v2458
  %v2460 = vpop.f32.mrb[0].mxu0
  %2461 = vmatprep.mubr.bf16.mxu0 0
  %2462 = vmatmul.mubr.bf16.gmra.mrb[0].mxu0 %v1465
  %v2463 = vpop.f32.mrb[0].mxu0
  %v2464 = vadd.f32 0.0, %v2463
  %v2465 = vpop.f32.mrb[0].mxu0
  %v2466 = vpop.f32.mrb[0].mxu0
  %v2467 = vadd.f32 0.0, %v2466
  %v2468 = vpop.f32.mrb[0].mxu0
  %2469 = vmatprep.mubr.bf16.mxu0 0
  %2470 = vmatmul.mubr.bf16.gmra.mrb[0].mxu0 %v1468
  %v2471 = vpop.f32.mrb[0].mxu0
  %v2472 = vadd.f32 0.0, %v2471
  %v2473 = vpop.f32.mrb[0].mxu0
  %v2474 = vpop.f32.mrb[0].mxu0
  %v2475 = vadd.f32 0.0, %v2474
  %v2476 = vpop.f32.mrb[0].mxu0
  %2477 = vmatprep.mubr.bf16.mxu0 0
  %2478 = vmatmul.mubr.bf16.gmra.mrb[0].mxu0 %v1471
  %v2479 = vpop.f32.mrb[0].mxu0
  %v2480 = vadd.f32 0.0, %v2479
  %v2481 = vpop.f32.mrb[0].mxu0
  %v2482 = vpop.f32.mrb[0].mxu0
  %v2483 = vadd.f32 0.0, %v2482
  %v2484 = vpop.f32.mrb[0].mxu0
  %2485 = vmatprep.mubr.bf16.mxu0 0
  %2486 = vmatmul.mubr.bf16.gmra.mrb[0].mxu0 %v1474
  %v2487 = vpop.f32.mrb[0].mxu0
  %v2488 = vadd.f32 0.0, %v2487
  %v2489 = vpop.f32.mrb[0].mxu0
  %v2490 = vpop.f32.mrb[0].mxu0
  %v2491 = vadd.f32 0.0, %v2490
  %v2492 = vpop.f32.mrb[0].mxu0
  %2493 = vmatprep.mubr.bf16.mxu0 0
  %2494 = vmatmul.mubr.bf16.gmra.mrb[0].mxu0 %v1477
  %v2495 = vpop.f32.mrb[0].mxu0
  %v2496 = vadd.f32 0.0, %v2495
  %v2497 = vpop.f32.mrb[0].mxu0
  %v2498 = vpop.f32.mrb[0].mxu0
  %v2499 = vadd.f32 0.0, %v2498
  %v2500 = vpop.f32.mrb[0].mxu0
  %2501 = vmatprep.mubr.bf16.mxu0 0
  %2502 = vmatmul.mubr.bf16.gmra.mrb[0].mxu0 %v1480
  %v2503 = vpop.f32.mrb[0].mxu0
  %v2504 = vadd.f32 0.0, %v2503
  %v2505 = vpop.f32.mrb[0].mxu0
  %v2506 = vpop.f32.mrb[0].mxu0
  %v2507 = vadd.f32 0.0, %v2506
  %v2508 = vpop.f32.mrb[0].mxu0
  %2509 = vmatprep.mubr.bf16.mxu0 0
  %2510 = vmatmul.mubr.bf16.gmra.mrb[0].mxu0 %v1483
  %v2511 = vpop.f32.mrb[0].mxu0
  %v2512 = vadd.f32 0.0, %v2511
  %v2513 = vpop.f32.mrb[0].mxu0
  %v2514 = vpop.f32.mrb[0].mxu0
  %v2515 = vadd.f32 0.0, %v2514
  %v2516 = vpop.f32.mrb[0].mxu0
  %2517 = vmatprep.mubr.bf16.mxu0 0
  %2518 = vmatmul.mubr.bf16.gmra.mrb[0].mxu0 %v1486
  %v2519 = vpop.f32.mrb[0].mxu0
  %v2520 = vadd.f32 0.0, %v2519
  %v2521 = vpop.f32.mrb[0].mxu0
  %v2522 = vpop.f32.mrb[0].mxu0
  %v2523 = vadd.f32 0.0, %v2522
  %v2524 = vpop.f32.mrb[0].mxu0
  %2525 = vmatprep.mubr.bf16.mxu0 0
  %2526 = vmatmul.mubr.bf16.gmra.mrb[0].mxu0 %v1489
  %v2527 = vpop.f32.mrb[0].mxu0
  %v2528 = vadd.f32 0.0, %v2527
  %v2529 = vpop.f32.mrb[0].mxu0
  %v2530 = vpop.f32.mrb[0].mxu0
  %v2531 = vadd.f32 0.0, %v2530
  %v2532 = vpop.f32.mrb[0].mxu0
  %2533 = vmatprep.mubr.bf16.mxu0 0
  %2534 = vmatmul.mubr.bf16.gmra.mrb[0].mxu0 %v1492
  %v2535 = vpop.f32.mrb[0].mxu0
  %v2536 = vadd.f32 0.0, %v2535
  %v2537 = vpop.f32.mrb[0].mxu0
  %v2538 = vpop.f32.mrb[0].mxu0
  %v2539 = vadd.f32 0.0, %v2538
  %v2540 = vpop.f32.mrb[0].mxu0
  %2541 = vmatprep.mubr.bf16.mxu0 0
  %2542 = vmatmul.mubr.bf16.gmra.mrb[0].mxu0 %v1495
  %v2543 = vpop.f32.mrb[0].mxu0
  %v2544 = vadd.f32 0.0, %v2543
  %v2545 = vpop.f32.mrb[0].mxu0
  %v2546 = vpop.f32.mrb[0].mxu0
  %v2547 = vadd.f32 0.0, %v2546
  %v2548 = vpop.f32.mrb[0].mxu0
  %2549 = vmatprep.mubr.bf16.mxu0 0
  %2550 = vmatmul.mubr.bf16.gmra.mrb[0].mxu0 %v1498
  %v2551 = vpop.f32.mrb[0].mxu0
  %v2552 = vadd.f32 0.0, %v2551
  %v2553 = vpop.f32.mrb[0].mxu0
  %v2554 = vpop.f32.mrb[0].mxu0
  %v2555 = vadd.f32 0.0, %v2554
  %v2556 = vpop.f32.mrb[0].mxu0
  %2557 = vmatprep.mubr.bf16.mxu0 0
  %2558 = vmatmul.mubr.bf16.gmra.mrb[0].mxu0 %v1501
  %v2559 = vpop.f32.mrb[0].mxu0
  %v2560 = vadd.f32 0.0, %v2559
  %v2561 = vpop.f32.mrb[0].mxu0
  %v2562 = vpop.f32.mrb[0].mxu0
  %v2563 = vadd.f32 0.0, %v2562
  %v2564 = vpop.f32.mrb[0].mxu0
  %2565 = vmatprep.mubr.bf16.mxu0 0
  %2566 = vmatmul.mubr.bf16.gmra.mrb[0].mxu0 %v2044
  %v2567 = vpop.f32.mrb[0].mxu0
  %v2568 = vadd.f32 0.0, %v2567
  %v2569 = vpop.f32.mrb[0].mxu0
  %v2570 = vpop.f32.mrb[0].mxu0
  %v2571 = vadd.f32 0.0, %v2570
  %v2572 = vpop.f32.mrb[0].mxu0
  %2573 = vmatprep.mubr.bf16.mxu0 0
  %2574 = vmatmul.mubr.bf16.gmra.mrb[0].mxu0 %v2047
  %v2575 = vpop.f32.mrb[0].mxu0
  %v2576 = vadd.f32 0.0, %v2575
  %v2577 = vpop.f32.mrb[0].mxu0
  %v2578 = vpop.f32.mrb[0].mxu0
  %v2579 = vadd.f32 0.0, %v2578
  %v2580 = vpop.f32.mrb[0].mxu0
  %2581 = vmatprep.mubr.bf16.mxu0 0
  %2582 = vmatmul.mubr.bf16.gmra.mrb[0].mxu0 %v2050
  %v2583 = vpop.f32.mrb[0].mxu0
  %v2584 = vadd.f32 0.0, %v2583
  %v2585 = vpop.f32.mrb[0].mxu0
  %v2586 = vpop.f32.mrb[0].mxu0
  %v2587 = vadd.f32 0.0, %v2586
  %v2588 = vpop.f32.mrb[0].mxu0
  %2589 = vmatprep.mubr.bf16.mxu0 0
  %2590 = vmatmul.mubr.bf16.gmra.mrb[0].mxu0 %v2053
  %v2591 = vpop.f32.mrb[0].mxu0
  %v2592 = vadd.f32 0.0, %v2591
  %v2593 = vpop.f32.mrb[0].mxu0
  %v2594 = vpop.f32.mrb[0].mxu0
  %v2595 = vadd.f32 0.0, %v2594
  %v2596 = vpop.f32.mrb[0].mxu0
  %2597 = vmatprep.mubr.bf16.mxu0 0
  %2598 = vmatmul.mubr.bf16.gmra.mrb[0].mxu0 %v2371
  %v2599 = vpop.f32.mrb[0].mxu0
  %v2600 = vadd.f32 0.0, %v2599
  %v2601 = vpop.f32.mrb[0].mxu0
  %v2602 = vpop.f32.mrb[0].mxu0
  %v2603 = vadd.f32 0.0, %v2602
  %v2604 = vpop.f32.mrb[0].mxu0
  %2605 = vdwg.mxu0
  %v2606 = vadd.f32 %v2288, %v2408
  %v2607 = vadd.f32 %v2289, %v2411
  %v2608 = vadd.f32 %v2290, %v2416
  %v2609 = vadd.f32 %v2291, %v2419
  %v2610 = vadd.f32 %v2292, %v2424
  %v2611 = vadd.f32 %v2293, %v2427
  %v2612 = vadd.f32 %v2294, %v2432
  %v2613 = vadd.f32 %v2295, %v2435
  %v2614 = vadd.f32 %v2296, %v2440
  %v2615 = vadd.f32 %v2297, %v2443
  %v2616 = vadd.f32 %v2298, %v2448
  %v2617 = vadd.f32 %v2299, %v2451
  %v2618 = vadd.f32 %v2300, %v2456
  %v2619 = vadd.f32 %v2301, %v2459
  %v2620 = vadd.f32 %v2302, %v2464
  %v2621 = vadd.f32 %v2303, %v2467
  %v2622 = vadd.f32 %v2304, %v2472
  %v2623 = vadd.f32 %v2305, %v2475
  %v2624 = vadd.f32 %v2306, %v2480
  %v2625 = vadd.f32 %v2307, %v2483
  %v2626 = vadd.f32 %v2308, %v2488
  %v2627 = vadd.f32 %v2309, %v2491
  %v2628 = vadd.f32 %v2310, %v2496
  %v2629 = vadd.f32 %v2311, %v2499
  %v2630 = vadd.f32 %v2312, %v2504
  %v2631 = vadd.f32 %v2313, %v2507
  %v2632 = vadd.f32 %v2314, %v2512
  %v2633 = vadd.f32 %v2315, %v2515
  %v2634 = vadd.f32 %v2316, %v2520
  %v2635 = vadd.f32 %v2317, %v2523
  %v2636 = vadd.f32 %v2318, %v2528
  %v2637 = vadd.f32 %v2319, %v2531
  %v2638 = vadd.f32 %v2320, %v2536
  %v2639 = vadd.f32 %v2321, %v2539
  %v2640 = vadd.f32 %v2322, %v2544
  %v2641 = vadd.f32 %v2323, %v2547
  %v2642 = vadd.f32 %v2324, %v2552
  %v2643 = vadd.f32 %v2325, %v2555
  %v2644 = vadd.f32 %v2326, %v2560
  %v2645 = vadd.f32 %v2327, %v2563
  %v2646 = vadd.f32 %v2328, %v2568
  %v2647 = vadd.f32 %v2329, %v2571
  %v2648 = vadd.f32 %v2330, %v2576
  %v2649 = vadd.f32 %v2331, %v2579
  %v2650 = vadd.f32 %v2332, %v2584
  %v2651 = vadd.f32 %v2333, %v2587
  %v2652 = vadd.f32 %v2334, %v2592
  %v2653 = vadd.f32 %v2335, %v2595
  %v2654 = vadd.f32 %v2336, %v2600
  %v2655 = vadd.f32 %v2337, %v2603
  %v2656 = vld [vmem:[%s4] sm:$0x1]
  %v2658 = vlaneseq
  %v2659 = vshrl.u32 %v2658, 7
  %v2660 = vsub.s32 0, %v2659
  %v2661 = vrot.slane %v2656, %v2660
  %v2663 = vadd.f32 %v2606, %v2661
  %v2664 = vadd.f32 %v2607, %v2661
  %v2665 = vadd.f32 %v2608, %v2661
  %v2666 = vadd.f32 %v2609, %v2661
  %v2667 = vadd.f32 %v2610, %v2661
  %v2668 = vadd.f32 %v2611, %v2661
  %v2669 = vadd.f32 %v2612, %v2661
  %v2670 = vadd.f32 %v2613, %v2661
  %v2671 = vadd.f32 %v2614, %v2661
  %v2672 = vadd.f32 %v2615, %v2661
  %v2673 = vadd.f32 %v2616, %v2661
  %v2674 = vadd.f32 %v2617, %v2661
  %v2675 = vadd.f32 %v2618, %v2661
  %v2676 = vadd.f32 %v2619, %v2661
  %v2677 = vadd.f32 %v2620, %v2661
  %v2678 = vadd.f32 %v2621, %v2661
  %v2679 = vadd.f32 %v2622, %v2661
  %v2680 = vadd.f32 %v2623, %v2661
  %v2681 = vadd.f32 %v2624, %v2661
  %v2682 = vadd.f32 %v2625, %v2661
  %v2683 = vadd.f32 %v2626, %v2661
  %v2684 = vadd.f32 %v2627, %v2661
  %v2685 = vadd.f32 %v2628, %v2661
  %v2686 = vadd.f32 %v2629, %v2661
  %v2687 = vadd.f32 %v2630, %v2661
  %v2688 = vadd.f32 %v2631, %v2661
  %v2689 = vadd.f32 %v2632, %v2661
  %v2690 = vadd.f32 %v2633, %v2661
  %v2691 = vadd.f32 %v2634, %v2661
  %v2692 = vadd.f32 %v2635, %v2661
  %v2693 = vadd.f32 %v2636, %v2661
  %v2694 = vadd.f32 %v2637, %v2661
  %v2695 = vadd.f32 %v2638, %v2661
  %v2696 = vadd.f32 %v2639, %v2661
  %v2697 = vadd.f32 %v2640, %v2661
  %v2698 = vadd.f32 %v2641, %v2661
  %v2699 = vadd.f32 %v2642, %v2661
  %v2700 = vadd.f32 %v2643, %v2661
  %v2701 = vadd.f32 %v2644, %v2661
  %v2702 = vadd.f32 %v2645, %v2661
  %v2703 = vadd.f32 %v2646, %v2661
  %v2704 = vadd.f32 %v2647, %v2661
  %v2705 = vadd.f32 %v2648, %v2661
  %v2706 = vadd.f32 %v2649, %v2661
  %v2707 = vadd.f32 %v2650, %v2661
  %v2708 = vadd.f32 %v2651, %v2661
  %v2709 = vadd.f32 %v2652, %v2661
  %v2710 = vadd.f32 %v2653, %v2661
  %v2711 = vadd.f32 %v2654, %v2661
  %v2712 = vadd.f32 %v2655, %v2661
  %v2713 = vmax.f32 %v2663, 0.0
  %v2714 = vmax.f32 %v2664, 0.0
  %v2715 = vmax.f32 %v2665, 0.0
  %v2716 = vmax.f32 %v2666, 0.0
  %v2717 = vmax.f32 %v2667, 0.0
  %v2718 = vmax.f32 %v2668, 0.0
  %v2719 = vmax.f32 %v2669, 0.0
  %v2720 = vmax.f32 %v2670, 0.0
  %v2721 = vmax.f32 %v2671, 0.0
  %v2722 = vmax.f32 %v2672, 0.0
  %v2723 = vmax.f32 %v2673, 0.0
  %v2724 = vmax.f32 %v2674, 0.0
  %v2725 = vmax.f32 %v2675, 0.0
  %v2726 = vmax.f32 %v2676, 0.0
  %v2727 = vmax.f32 %v2677, 0.0
  %v2728 = vmax.f32 %v2678, 0.0
  %v2729 = vmax.f32 %v2679, 0.0
  %v2730 = vmax.f32 %v2680, 0.0
  %v2731 = vmax.f32 %v2681, 0.0
  %v2732 = vmax.f32 %v2682, 0.0
  %v2733 = vmax.f32 %v2683, 0.0
  %v2734 = vmax.f32 %v2684, 0.0
  %v2735 = vmax.f32 %v2685, 0.0
  %v2736 = vmax.f32 %v2686, 0.0
  %v2737 = vmax.f32 %v2687, 0.0
  %v2738 = vmax.f32 %v2688, 0.0
  %v2739 = vmax.f32 %v2689, 0.0
  %v2740 = vmax.f32 %v2690, 0.0
  %v2741 = vmax.f32 %v2691, 0.0
  %v2742 = vmax.f32 %v2692, 0.0
  %v2743 = vmax.f32 %v2693, 0.0
  %v2744 = vmax.f32 %v2694, 0.0
  %v2745 = vmax.f32 %v2695, 0.0
  %v2746 = vmax.f32 %v2696, 0.0
  %v2747 = vmax.f32 %v2697, 0.0
  %v2748 = vmax.f32 %v2698, 0.0
  %v2749 = vmax.f32 %v2699, 0.0
  %v2750 = vmax.f32 %v2700, 0.0
  %v2751 = vmax.f32 %v2701, 0.0
  %v2752 = vmax.f32 %v2702, 0.0
  %v2753 = vmax.f32 %v2703, 0.0
  %v2754 = vmax.f32 %v2704, 0.0
  %v2755 = vmax.f32 %v2705, 0.0
  %v2756 = vmax.f32 %v2706, 0.0
  %v2757 = vmax.f32 %v2707, 0.0
  %v2758 = vmax.f32 %v2708, 0.0
  %v2759 = vmax.f32 %v2709, 0.0
  %v2760 = vmax.f32 %v2710, 0.0
  %v2761 = vmax.f32 %v2711, 0.0
  %v2762 = vmax.f32 %v2712, 0.0
  %v2763 = vpack.c.bf16 %v2714, %v2713
  %v2764 = vpack.c.bf16 %v2716, %v2715
  %v2765 = vpack.c.bf16 %v2718, %v2717
  %v2766 = vpack.c.bf16 %v2720, %v2719
  %v2767 = vpack.c.bf16 %v2722, %v2721
  %v2768 = vpack.c.bf16 %v2724, %v2723
  %v2769 = vpack.c.bf16 %v2726, %v2725
  %v2770 = vpack.c.bf16 %v2728, %v2727
  %v2771 = vpack.c.bf16 %v2730, %v2729
  %v2772 = vpack.c.bf16 %v2732, %v2731
  %v2773 = vpack.c.bf16 %v2734, %v2733
  %v2774 = vpack.c.bf16 %v2736, %v2735
  %v2775 = vpack.c.bf16 %v2738, %v2737
  %v2776 = vpack.c.bf16 %v2740, %v2739
  %v2777 = vpack.c.bf16 %v2742, %v2741
  %v2778 = vpack.c.bf16 %v2744, %v2743
  %v2779 = vpack.c.bf16 %v2746, %v2745
  %v2780 = vpack.c.bf16 %v2748, %v2747
  %v2781 = vpack.c.bf16 %v2750, %v2749
  %v2782 = vpack.c.bf16 %v2752, %v2751
  %v2783 = vpack.c.bf16 %v2754, %v2753
  %v2784 = vpack.c.bf16 %v2756, %v2755
  %v2785 = vpack.c.bf16 %v2758, %v2757
  %v2786 = vpack.c.bf16 %v2760, %v2759
  %v2787 = vpack.c.bf16 %v2762, %v2761
  %v2788 = vld [vmem:[%s5] sm:$0xff]
  %v2789 = vld [vmem:[%s5 + $0x8] sm:$0xff]
  %v2790 = vld [vmem:[%s5 + $0x10] sm:$0xff]
  %v2791 = vld [vmem:[%s5 + $0x18] sm:$0xff]
  %v2792 = vld [vmem:[%s5 + $0x20] sm:$0xff]
  %v2793 = vld [vmem:[%s5 + $0x28] sm:$0xff]
  %v2794 = vld [vmem:[%s5 + $0x30] sm:$0xff]
  %v2795 = vld [vmem:[%s5 + $0x38] sm:$0xff]
  %v2800 = vunpack.c.l.b16 %v2792
  %v2801 = vunpack.c.h.b16 %v2792
  %v2802 = vunpack.c.l.b16 %v2793
  %v2803 = vunpack.c.h.b16 %v2793
  %v2804 = vunpack.c.l.b16 %v2794
  %v2805 = vunpack.c.h.b16 %v2794
  %v2806 = vunpack.c.l.b16 %v2795
  %v2807 = vunpack.c.h.b16 %v2795
  %v2808 = vpack.c.b16 %v2802, %v2800
  %v2809 = vpack.c.b16 %v2803, %v2801
  %v2810 = vpack.c.b16 %v2806, %v2804
  %v2811 = vpack.c.b16 %v2807, %v2805
  %v2817 = vsel %vm701, %v2764, 0
  %2819 = vmatprep.subr.bf16.mxu0 %v2809
  %2820 = vmatpush1.bf16.msra.mxu0 %v2808
  %2821 = vmatprep.subr.bf16.mxu0 %v2811
  %2822 = vmatpush1.bf16.msra.mxu0 %v2810
  %2823 = vmatprep.subr.bf16.mxu0 0
  %2824 = vmatpush1.bf16.msra.mxu0 0
  %2825 = vmatprep.subr.bf16.mxu0 0
  %2826 = vmatpush1.bf16.msra.mxu0 0
  %2827 = vmatprep.subr.bf16.mxu0 0
  %2828 = vmatpush1.bf16.msra.mxu0 0
  %2829 = vmatprep.subr.bf16.mxu0 0
  %2830 = vmatpush1.bf16.msra.mxu0 0
  %2831 = vmatprep.subr.bf16.mxu0 0
  %2832 = vmatpush1.bf16.msra.mxu0 0
  %2833 = vmatprep.subr.bf16.mxu0 0
  %2834 = vmatpush1.bf16.msra.mxu0 0
  %2835 = vmatprep.subr.bf16.mxu0 0
  %2836 = vmatpush1.bf16.msra.mxu0 0
  %2837 = vmatprep.subr.bf16.mxu0 0
  %2838 = vmatpush1.bf16.msra.mxu0 0
  %2839 = vmatprep.subr.bf16.mxu0 0
  %2840 = vmatpush1.bf16.msra.mxu0 0
  %2841 = vmatprep.subr.bf16.mxu0 0
  %2842 = vmatpush1.bf16.msra.mxu0 0
  %2843 = vmatprep.subr.bf16.mxu0 0
  %2844 = vmatpush1.bf16.msra.mxu0 0
  %2845 = vmatprep.subr.bf16.mxu0 0
  %2846 = vmatpush1.bf16.msra.mxu0 0
  %2847 = vmatprep.subr.bf16.mxu0 0
  %2848 = vmatpush1.bf16.msra.mxu0 0
  %2849 = vmatprep.subr.bf16.mxu0 0
  %2850 = vmatpush1.bf16.msra.mxu0 0
  %2851 = vmatprep.mubr.bf16.mxu0 0
  %2852 = vmatmul.mubr.bf16.gmra.mrb[0].mxu0 %v2817
  %v2853 = vpop.f32.mrb[0].mxu0
  %v2854 = vadd.f32 0.0, %v2853
  %v2855 = vpop.f32.mrb[0].mxu0
  %v2856 = vadd.f32 0.0, %v2855
  %v2857 = vpop.f32.mrb[0].mxu0
  %v2858 = vadd.f32 0.0, %v2857
  %v2859 = vpop.f32.mrb[0].mxu0
  %v2860 = vadd.f32 0.0, %v2859
  %2861 = vdwg.mxu0
  %v2866 = vunpack.c.l.b16 %v2788
  %v2867 = vunpack.c.h.b16 %v2788
  %v2868 = vunpack.c.l.b16 %v2789
  %v2869 = vunpack.c.h.b16 %v2789
  %v2870 = vunpack.c.l.b16 %v2790
  %v2871 = vunpack.c.h.b16 %v2790
  %v2872 = vunpack.c.l.b16 %v2791
  %v2873 = vunpack.c.h.b16 %v2791
  %v2874 = vpack.c.b16 %v2868, %v2866
  %v2875 = vpack.c.b16 %v2869, %v2867
  %v2876 = vpack.c.b16 %v2872, %v2870
  %v2877 = vpack.c.b16 %v2873, %v2871
  %v2883 = vsel %vm701, %v2763, 0
  %2885 = vmatprep.subr.bf16.mxu0 %v2875
  %2886 = vmatpush1.bf16.msra.mxu0 %v2874
  %2887 = vmatprep.subr.bf16.mxu0 %v2877
  %2888 = vmatpush1.bf16.msra.mxu0 %v2876
  %2889 = vmatprep.subr.bf16.mxu0 0
  %2890 = vmatpush1.bf16.msra.mxu0 0
  %2891 = vmatprep.subr.bf16.mxu0 0
  %2892 = vmatpush1.bf16.msra.mxu0 0
  %2893 = vmatprep.subr.bf16.mxu0 0
  %2894 = vmatpush1.bf16.msra.mxu0 0
  %2895 = vmatprep.subr.bf16.mxu0 0
  %2896 = vmatpush1.bf16.msra.mxu0 0
  %2897 = vmatprep.subr.bf16.mxu0 0
  %2898 = vmatpush1.bf16.msra.mxu0 0
  %2899 = vmatprep.subr.bf16.mxu0 0
  %2900 = vmatpush1.bf16.msra.mxu0 0
  %2901 = vmatprep.subr.bf16.mxu0 0
  %2902 = vmatpush1.bf16.msra.mxu0 0
  %2903 = vmatprep.subr.bf16.mxu0 0
  %2904 = vmatpush1.bf16.msra.mxu0 0
  %2905 = vmatprep.subr.bf16.mxu0 0
  %2906 = vmatpush1.bf16.msra.mxu0 0
  %2907 = vmatprep.subr.bf16.mxu0 0
  %2908 = vmatpush1.bf16.msra.mxu0 0
  %2909 = vmatprep.subr.bf16.mxu0 0
  %2910 = vmatpush1.bf16.msra.mxu0 0
  %2911 = vmatprep.subr.bf16.mxu0 0
  %2912 = vmatpush1.bf16.msra.mxu0 0
  %2913 = vmatprep.subr.bf16.mxu0 0
  %2914 = vmatpush1.bf16.msra.mxu0 0
  %2915 = vmatprep.subr.bf16.mxu0 0
  %2916 = vmatpush1.bf16.msra.mxu0 0
  %2917 = vmatprep.mubr.bf16.mxu0 0
  %2918 = vmatmul.mubr.bf16.gmra.mrb[0].mxu0 %v2883
  %v2919 = vpop.f32.mrb[0].mxu0
  %v2920 = vadd.f32 %v2854, %v2919
  %v2921 = vpop.f32.mrb[0].mxu0
  %v2922 = vadd.f32 %v2856, %v2921
  %v2923 = vpop.f32.mrb[0].mxu0
  %v2924 = vadd.f32 %v2858, %v2923
  %v2925 = vpop.f32.mrb[0].mxu0
  %v2926 = vadd.f32 %v2860, %v2925
  %2927 = vdwg.mxu0
  %v2928 = vld [vmem:[%s5 + $0x40] sm:$0xff]
  %v2929 = vld [vmem:[%s5 + $0x48] sm:$0xff]
  %v2930 = vld [vmem:[%s5 + $0x50] sm:$0xff]
  %v2931 = vld [vmem:[%s5 + $0x58] sm:$0xff]
  %v2936 = vunpack.c.l.b16 %v2928
  %v2937 = vunpack.c.h.b16 %v2928
  %v2938 = vunpack.c.l.b16 %v2929
  %v2939 = vunpack.c.h.b16 %v2929
  %v2940 = vunpack.c.l.b16 %v2930
  %v2941 = vunpack.c.h.b16 %v2930
  %v2942 = vunpack.c.l.b16 %v2931
  %v2943 = vunpack.c.h.b16 %v2931
  %v2944 = vpack.c.b16 %v2938, %v2936
  %v2945 = vpack.c.b16 %v2939, %v2937
  %v2946 = vpack.c.b16 %v2942, %v2940
  %v2947 = vpack.c.b16 %v2943, %v2941
  %v2953 = vsel %vm701, %v2765, 0
  %2955 = vmatprep.subr.bf16.mxu0 %v2945
  %2956 = vmatpush1.bf16.msra.mxu0 %v2944
  %2957 = vmatprep.subr.bf16.mxu0 %v2947
  %2958 = vmatpush1.bf16.msra.mxu0 %v2946
  %2959 = vmatprep.subr.bf16.mxu0 0
  %2960 = vmatpush1.bf16.msra.mxu0 0
  %2961 = vmatprep.subr.bf16.mxu0 0
  %2962 = vmatpush1.bf16.msra.mxu0 0
  %2963 = vmatprep.subr.bf16.mxu0 0
  %2964 = vmatpush1.bf16.msra.mxu0 0
  %2965 = vmatprep.subr.bf16.mxu0 0
  %2966 = vmatpush1.bf16.msra.mxu0 0
  %2967 = vmatprep.subr.bf16.mxu0 0
  %2968 = vmatpush1.bf16.msra.mxu0 0
  %2969 = vmatprep.subr.bf16.mxu0 0
  %2970 = vmatpush1.bf16.msra.mxu0 0
  %2971 = vmatprep.subr.bf16.mxu0 0
  %2972 = vmatpush1.bf16.msra.mxu0 0
  %2973 = vmatprep.subr.bf16.mxu0 0
  %2974 = vmatpush1.bf16.msra.mxu0 0
  %2975 = vmatprep.subr.bf16.mxu0 0
  %2976 = vmatpush1.bf16.msra.mxu0 0
  %2977 = vmatprep.subr.bf16.mxu0 0
  %2978 = vmatpush1.bf16.msra.mxu0 0
  %2979 = vmatprep.subr.bf16.mxu0 0
  %2980 = vmatpush1.bf16.msra.mxu0 0
  %2981 = vmatprep.subr.bf16.mxu0 0
  %2982 = vmatpush1.bf16.msra.mxu0 0
  %2983 = vmatprep.subr.bf16.mxu0 0
  %2984 = vmatpush1.bf16.msra.mxu0 0
  %2985 = vmatprep.subr.bf16.mxu0 0
  %2986 = vmatpush1.bf16.msra.mxu0 0
  %2987 = vmatprep.mubr.bf16.mxu0 0
  %2988 = vmatmul.mubr.bf16.gmra.mrb[0].mxu0 %v2953
  %v2989 = vpop.f32.mrb[0].mxu0
  %v2990 = vadd.f32 0.0, %v2989
  %v2991 = vpop.f32.mrb[0].mxu0
  %v2992 = vadd.f32 0.0, %v2991
  %v2993 = vpop.f32.mrb[0].mxu0
  %v2994 = vadd.f32 0.0, %v2993
  %v2995 = vpop.f32.mrb[0].mxu0
  %v2996 = vadd.f32 0.0, %v2995
  %2997 = vdwg.mxu0
  %v2998 = vadd.f32 %v2920, %v2990
  %v2999 = vadd.f32 %v2922, %v2992
  %v3000 = vadd.f32 %v2924, %v2994
  %v3001 = vadd.f32 %v2926, %v2996
  %v3002 = vld [vmem:[%s5 + $0x60] sm:$0xff]
  %v3003 = vld [vmem:[%s5 + $0x68] sm:$0xff]
  %v3004 = vld [vmem:[%s5 + $0x70] sm:$0xff]
  %v3005 = vld [vmem:[%s5 + $0x78] sm:$0xff]
  %v3010 = vunpack.c.l.b16 %v3002
  %v3011 = vunpack.c.h.b16 %v3002
  %v3012 = vunpack.c.l.b16 %v3003
  %v3013 = vunpack.c.h.b16 %v3003
  %v3014 = vunpack.c.l.b16 %v3004
  %v3015 = vunpack.c.h.b16 %v3004
  %v3016 = vunpack.c.l.b16 %v3005
  %v3017 = vunpack.c.h.b16 %v3005
  %v3018 = vpack.c.b16 %v3012, %v3010
  %v3019 = vpack.c.b16 %v3013, %v3011
  %v3020 = vpack.c.b16 %v3016, %v3014
  %v3021 = vpack.c.b16 %v3017, %v3015
  %v3027 = vsel %vm701, %v2766, 0
  %3029 = vmatprep.subr.bf16.mxu0 %v3019
  %3030 = vmatpush1.bf16.msra.mxu0 %v3018
  %3031 = vmatprep.subr.bf16.mxu0 %v3021
  %3032 = vmatpush1.bf16.msra.mxu0 %v3020
  %3033 = vmatprep.subr.bf16.mxu0 0
  %3034 = vmatpush1.bf16.msra.mxu0 0
  %3035 = vmatprep.subr.bf16.mxu0 0
  %3036 = vmatpush1.bf16.msra.mxu0 0
  %3037 = vmatprep.subr.bf16.mxu0 0
  %3038 = vmatpush1.bf16.msra.mxu0 0
  %3039 = vmatprep.subr.bf16.mxu0 0
  %3040 = vmatpush1.bf16.msra.mxu0 0
  %3041 = vmatprep.subr.bf16.mxu0 0
  %3042 = vmatpush1.bf16.msra.mxu0 0
  %3043 = vmatprep.subr.bf16.mxu0 0
  %3044 = vmatpush1.bf16.msra.mxu0 0
  %3045 = vmatprep.subr.bf16.mxu0 0
  %3046 = vmatpush1.bf16.msra.mxu0 0
  %3047 = vmatprep.subr.bf16.mxu0 0
  %3048 = vmatpush1.bf16.msra.mxu0 0
  %3049 = vmatprep.subr.bf16.mxu0 0
  %3050 = vmatpush1.bf16.msra.mxu0 0
  %3051 = vmatprep.subr.bf16.mxu0 0
  %3052 = vmatpush1.bf16.msra.mxu0 0
  %3053 = vmatprep.subr.bf16.mxu0 0
  %3054 = vmatpush1.bf16.msra.mxu0 0
  %3055 = vmatprep.subr.bf16.mxu0 0
  %3056 = vmatpush1.bf16.msra.mxu0 0
  %3057 = vmatprep.subr.bf16.mxu0 0
  %3058 = vmatpush1.bf16.msra.mxu0 0
  %3059 = vmatprep.subr.bf16.mxu0 0
  %3060 = vmatpush1.bf16.msra.mxu0 0
  %3061 = vmatprep.mubr.bf16.mxu0 0
  %3062 = vmatmul.mubr.bf16.gmra.mrb[0].mxu0 %v3027
  %v3063 = vpop.f32.mrb[0].mxu0
  %v3064 = vadd.f32 0.0, %v3063
  %v3065 = vpop.f32.mrb[0].mxu0
  %v3066 = vadd.f32 0.0, %v3065
  %v3067 = vpop.f32.mrb[0].mxu0
  %v3068 = vadd.f32 0.0, %v3067
  %v3069 = vpop.f32.mrb[0].mxu0
  %v3070 = vadd.f32 0.0, %v3069
  %3071 = vdwg.mxu0
  %v3072 = vadd.f32 %v2998, %v3064
  %v3073 = vadd.f32 %v2999, %v3066
  %v3074 = vadd.f32 %v3000, %v3068
  %v3075 = vadd.f32 %v3001, %v3070
  %v3076 = vld [vmem:[%s5 + $0x80] sm:$0xff]
  %v3077 = vld [vmem:[%s5 + $0x88] sm:$0xff]
  %v3078 = vld [vmem:[%s5 + $0x90] sm:$0xff]
  %v3079 = vld [vmem:[%s5 + $0x98] sm:$0xff]
  %v3084 = vunpack.c.l.b16 %v3076
  %v3085 = vunpack.c.h.b16 %v3076
  %v3086 = vunpack.c.l.b16 %v3077
  %v3087 = vunpack.c.h.b16 %v3077
  %v3088 = vunpack.c.l.b16 %v3078
  %v3089 = vunpack.c.h.b16 %v3078
  %v3090 = vunpack.c.l.b16 %v3079
  %v3091 = vunpack.c.h.b16 %v3079
  %v3092 = vpack.c.b16 %v3086, %v3084
  %v3093 = vpack.c.b16 %v3087, %v3085
  %v3094 = vpack.c.b16 %v3090, %v3088
  %v3095 = vpack.c.b16 %v3091, %v3089
  %v3101 = vsel %vm701, %v2767, 0
  %3103 = vmatprep.subr.bf16.mxu0 %v3093
  %3104 = vmatpush1.bf16.msra.mxu0 %v3092
  %3105 = vmatprep.subr.bf16.mxu0 %v3095
  %3106 = vmatpush1.bf16.msra.mxu0 %v3094
  %3107 = vmatprep.subr.bf16.mxu0 0
  %3108 = vmatpush1.bf16.msra.mxu0 0
  %3109 = vmatprep.subr.bf16.mxu0 0
  %3110 = vmatpush1.bf16.msra.mxu0 0
  %3111 = vmatprep.subr.bf16.mxu0 0
  %3112 = vmatpush1.bf16.msra.mxu0 0
  %3113 = vmatprep.subr.bf16.mxu0 0
  %3114 = vmatpush1.bf16.msra.mxu0 0
  %3115 = vmatprep.subr.bf16.mxu0 0
  %3116 = vmatpush1.bf16.msra.mxu0 0
  %3117 = vmatprep.subr.bf16.mxu0 0
  %3118 = vmatpush1.bf16.msra.mxu0 0
  %3119 = vmatprep.subr.bf16.mxu0 0
  %3120 = vmatpush1.bf16.msra.mxu0 0
  %3121 = vmatprep.subr.bf16.mxu0 0
  %3122 = vmatpush1.bf16.msra.mxu0 0
  %3123 = vmatprep.subr.bf16.mxu0 0
  %3124 = vmatpush1.bf16.msra.mxu0 0
  %3125 = vmatprep.subr.bf16.mxu0 0
  %3126 = vmatpush1.bf16.msra.mxu0 0
  %3127 = vmatprep.subr.bf16.mxu0 0
  %3128 = vmatpush1.bf16.msra.mxu0 0
  %3129 = vmatprep.subr.bf16.mxu0 0
  %3130 = vmatpush1.bf16.msra.mxu0 0
  %3131 = vmatprep.subr.bf16.mxu0 0
  %3132 = vmatpush1.bf16.msra.mxu0 0
  %3133 = vmatprep.subr.bf16.mxu0 0
  %3134 = vmatpush1.bf16.msra.mxu0 0
  %3135 = vmatprep.mubr.bf16.mxu0 0
  %3136 = vmatmul.mubr.bf16.gmra.mrb[0].mxu0 %v3101
  %v3137 = vpop.f32.mrb[0].mxu0
  %v3138 = vadd.f32 0.0, %v3137
  %v3139 = vpop.f32.mrb[0].mxu0
  %v3140 = vadd.f32 0.0, %v3139
  %v3141 = vpop.f32.mrb[0].mxu0
  %v3142 = vadd.f32 0.0, %v3141
  %v3143 = vpop.f32.mrb[0].mxu0
  %v3144 = vadd.f32 0.0, %v3143
  %3145 = vdwg.mxu0
  %v3146 = vadd.f32 %v3072, %v3138
  %v3147 = vadd.f32 %v3073, %v3140
  %v3148 = vadd.f32 %v3074, %v3142
  %v3149 = vadd.f32 %v3075, %v3144
  %v3150 = vld [vmem:[%s5 + $0xa0] sm:$0xff]
  %v3151 = vld [vmem:[%s5 + $0xa8] sm:$0xff]
  %v3152 = vld [vmem:[%s5 + $0xb0] sm:$0xff]
  %v3153 = vld [vmem:[%s5 + $0xb8] sm:$0xff]
  %v3158 = vunpack.c.l.b16 %v3150
  %v3159 = vunpack.c.h.b16 %v3150
  %v3160 = vunpack.c.l.b16 %v3151
  %v3161 = vunpack.c.h.b16 %v3151
  %v3162 = vunpack.c.l.b16 %v3152
  %v3163 = vunpack.c.h.b16 %v3152
  %v3164 = vunpack.c.l.b16 %v3153
  %v3165 = vunpack.c.h.b16 %v3153
  %v3166 = vpack.c.b16 %v3160, %v3158
  %v3167 = vpack.c.b16 %v3161, %v3159
  %v3168 = vpack.c.b16 %v3164, %v3162
  %v3169 = vpack.c.b16 %v3165, %v3163
  %v3175 = vsel %vm701, %v2768, 0
  %3177 = vmatprep.subr.bf16.mxu0 %v3167
  %3178 = vmatpush1.bf16.msra.mxu0 %v3166
  %3179 = vmatprep.subr.bf16.mxu0 %v3169
  %3180 = vmatpush1.bf16.msra.mxu0 %v3168
  %3181 = vmatprep.subr.bf16.mxu0 0
  %3182 = vmatpush1.bf16.msra.mxu0 0
  %3183 = vmatprep.subr.bf16.mxu0 0
  %3184 = vmatpush1.bf16.msra.mxu0 0
  %3185 = vmatprep.subr.bf16.mxu0 0
  %3186 = vmatpush1.bf16.msra.mxu0 0
  %3187 = vmatprep.subr.bf16.mxu0 0
  %3188 = vmatpush1.bf16.msra.mxu0 0
  %3189 = vmatprep.subr.bf16.mxu0 0
  %3190 = vmatpush1.bf16.msra.mxu0 0
  %3191 = vmatprep.subr.bf16.mxu0 0
  %3192 = vmatpush1.bf16.msra.mxu0 0
  %3193 = vmatprep.subr.bf16.mxu0 0
  %3194 = vmatpush1.bf16.msra.mxu0 0
  %3195 = vmatprep.subr.bf16.mxu0 0
  %3196 = vmatpush1.bf16.msra.mxu0 0
  %3197 = vmatprep.subr.bf16.mxu0 0
  %3198 = vmatpush1.bf16.msra.mxu0 0
  %3199 = vmatprep.subr.bf16.mxu0 0
  %3200 = vmatpush1.bf16.msra.mxu0 0
  %3201 = vmatprep.subr.bf16.mxu0 0
  %3202 = vmatpush1.bf16.msra.mxu0 0
  %3203 = vmatprep.subr.bf16.mxu0 0
  %3204 = vmatpush1.bf16.msra.mxu0 0
  %3205 = vmatprep.subr.bf16.mxu0 0
  %3206 = vmatpush1.bf16.msra.mxu0 0
  %3207 = vmatprep.subr.bf16.mxu0 0
  %3208 = vmatpush1.bf16.msra.mxu0 0
  %3209 = vmatprep.mubr.bf16.mxu0 0
  %3210 = vmatmul.mubr.bf16.gmra.mrb[0].mxu0 %v3175
  %v3211 = vpop.f32.mrb[0].mxu0
  %v3212 = vadd.f32 0.0, %v3211
  %v3213 = vpop.f32.mrb[0].mxu0
  %v3214 = vadd.f32 0.0, %v3213
  %v3215 = vpop.f32.mrb[0].mxu0
  %v3216 = vadd.f32 0.0, %v3215
  %v3217 = vpop.f32.mrb[0].mxu0
  %v3218 = vadd.f32 0.0, %v3217
  %3219 = vdwg.mxu0
  %v3220 = vadd.f32 %v3146, %v3212
  %v3221 = vadd.f32 %v3147, %v3214
  %v3222 = vadd.f32 %v3148, %v3216
  %v3223 = vadd.f32 %v3149, %v3218
  %v3224 = vld [vmem:[%s5 + $0xc0] sm:$0xff]
  %v3225 = vld [vmem:[%s5 + $0xc8] sm:$0xff]
  %v3226 = vld [vmem:[%s5 + $0xd0] sm:$0xff]
  %v3227 = vld [vmem:[%s5 + $0xd8] sm:$0xff]
  %v3232 = vunpack.c.l.b16 %v3224
  %v3233 = vunpack.c.h.b16 %v3224
  %v3234 = vunpack.c.l.b16 %v3225
  %v3235 = vunpack.c.h.b16 %v3225
  %v3236 = vunpack.c.l.b16 %v3226
  %v3237 = vunpack.c.h.b16 %v3226
  %v3238 = vunpack.c.l.b16 %v3227
  %v3239 = vunpack.c.h.b16 %v3227
  %v3240 = vpack.c.b16 %v3234, %v3232
  %v3241 = vpack.c.b16 %v3235, %v3233
  %v3242 = vpack.c.b16 %v3238, %v3236
  %v3243 = vpack.c.b16 %v3239, %v3237
  %v3249 = vsel %vm701, %v2769, 0
  %3251 = vmatprep.subr.bf16.mxu0 %v3241
  %3252 = vmatpush1.bf16.msra.mxu0 %v3240
  %3253 = vmatprep.subr.bf16.mxu0 %v3243
  %3254 = vmatpush1.bf16.msra.mxu0 %v3242
  %3255 = vmatprep.subr.bf16.mxu0 0
  %3256 = vmatpush1.bf16.msra.mxu0 0
  %3257 = vmatprep.subr.bf16.mxu0 0
  %3258 = vmatpush1.bf16.msra.mxu0 0
  %3259 = vmatprep.subr.bf16.mxu0 0
  %3260 = vmatpush1.bf16.msra.mxu0 0
  %3261 = vmatprep.subr.bf16.mxu0 0
  %3262 = vmatpush1.bf16.msra.mxu0 0
  %3263 = vmatprep.subr.bf16.mxu0 0
  %3264 = vmatpush1.bf16.msra.mxu0 0
  %3265 = vmatprep.subr.bf16.mxu0 0
  %3266 = vmatpush1.bf16.msra.mxu0 0
  %3267 = vmatprep.subr.bf16.mxu0 0
  %3268 = vmatpush1.bf16.msra.mxu0 0
  %3269 = vmatprep.subr.bf16.mxu0 0
  %3270 = vmatpush1.bf16.msra.mxu0 0
  %3271 = vmatprep.subr.bf16.mxu0 0
  %3272 = vmatpush1.bf16.msra.mxu0 0
  %3273 = vmatprep.subr.bf16.mxu0 0
  %3274 = vmatpush1.bf16.msra.mxu0 0
  %3275 = vmatprep.subr.bf16.mxu0 0
  %3276 = vmatpush1.bf16.msra.mxu0 0
  %3277 = vmatprep.subr.bf16.mxu0 0
  %3278 = vmatpush1.bf16.msra.mxu0 0
  %3279 = vmatprep.subr.bf16.mxu0 0
  %3280 = vmatpush1.bf16.msra.mxu0 0
  %3281 = vmatprep.subr.bf16.mxu0 0
  %3282 = vmatpush1.bf16.msra.mxu0 0
  %3283 = vmatprep.mubr.bf16.mxu0 0
  %3284 = vmatmul.mubr.bf16.gmra.mrb[0].mxu0 %v3249
  %v3285 = vpop.f32.mrb[0].mxu0
  %v3286 = vadd.f32 0.0, %v3285
  %v3287 = vpop.f32.mrb[0].mxu0
  %v3288 = vadd.f32 0.0, %v3287
  %v3289 = vpop.f32.mrb[0].mxu0
  %v3290 = vadd.f32 0.0, %v3289
  %v3291 = vpop.f32.mrb[0].mxu0
  %v3292 = vadd.f32 0.0, %v3291
  %3293 = vdwg.mxu0
  %v3294 = vadd.f32 %v3220, %v3286
  %v3295 = vadd.f32 %v3221, %v3288
  %v3296 = vadd.f32 %v3222, %v3290
  %v3297 = vadd.f32 %v3223, %v3292
  %v3298 = vld [vmem:[%s5 + $0xe0] sm:$0xff]
  %v3299 = vld [vmem:[%s5 + $0xe8] sm:$0xff]
  %v3300 = vld [vmem:[%s5 + $0xf0] sm:$0xff]
  %v3301 = vld [vmem:[%s5 + $0xf8] sm:$0xff]
  %v3306 = vunpack.c.l.b16 %v3298
  %v3307 = vunpack.c.h.b16 %v3298
  %v3308 = vunpack.c.l.b16 %v3299
  %v3309 = vunpack.c.h.b16 %v3299
  %v3310 = vunpack.c.l.b16 %v3300
  %v3311 = vunpack.c.h.b16 %v3300
  %v3312 = vunpack.c.l.b16 %v3301
  %v3313 = vunpack.c.h.b16 %v3301
  %v3314 = vpack.c.b16 %v3308, %v3306
  %v3315 = vpack.c.b16 %v3309, %v3307
  %v3316 = vpack.c.b16 %v3312, %v3310
  %v3317 = vpack.c.b16 %v3313, %v3311
  %v3323 = vsel %vm701, %v2770, 0
  %3325 = vmatprep.subr.bf16.mxu0 %v3315
  %3326 = vmatpush1.bf16.msra.mxu0 %v3314
  %3327 = vmatprep.subr.bf16.mxu0 %v3317
  %3328 = vmatpush1.bf16.msra.mxu0 %v3316
  %3329 = vmatprep.subr.bf16.mxu0 0
  %3330 = vmatpush1.bf16.msra.mxu0 0
  %3331 = vmatprep.subr.bf16.mxu0 0
  %3332 = vmatpush1.bf16.msra.mxu0 0
  %3333 = vmatprep.subr.bf16.mxu0 0
  %3334 = vmatpush1.bf16.msra.mxu0 0
  %3335 = vmatprep.subr.bf16.mxu0 0
  %3336 = vmatpush1.bf16.msra.mxu0 0
  %3337 = vmatprep.subr.bf16.mxu0 0
  %3338 = vmatpush1.bf16.msra.mxu0 0
  %3339 = vmatprep.subr.bf16.mxu0 0
  %3340 = vmatpush1.bf16.msra.mxu0 0
  %3341 = vmatprep.subr.bf16.mxu0 0
  %3342 = vmatpush1.bf16.msra.mxu0 0
  %3343 = vmatprep.subr.bf16.mxu0 0
  %3344 = vmatpush1.bf16.msra.mxu0 0
  %3345 = vmatprep.subr.bf16.mxu0 0
  %3346 = vmatpush1.bf16.msra.mxu0 0
  %3347 = vmatprep.subr.bf16.mxu0 0
  %3348 = vmatpush1.bf16.msra.mxu0 0
  %3349 = vmatprep.subr.bf16.mxu0 0
  %3350 = vmatpush1.bf16.msra.mxu0 0
  %3351 = vmatprep.subr.bf16.mxu0 0
  %3352 = vmatpush1.bf16.msra.mxu0 0
  %3353 = vmatprep.subr.bf16.mxu0 0
  %3354 = vmatpush1.bf16.msra.mxu0 0
  %3355 = vmatprep.subr.bf16.mxu0 0
  %3356 = vmatpush1.bf16.msra.mxu0 0
  %3357 = vmatprep.mubr.bf16.mxu0 0
  %3358 = vmatmul.mubr.bf16.gmra.mrb[0].mxu0 %v3323
  %v3359 = vpop.f32.mrb[0].mxu0
  %v3360 = vadd.f32 0.0, %v3359
  %v3361 = vpop.f32.mrb[0].mxu0
  %v3362 = vadd.f32 0.0, %v3361
  %v3363 = vpop.f32.mrb[0].mxu0
  %v3364 = vadd.f32 0.0, %v3363
  %v3365 = vpop.f32.mrb[0].mxu0
  %v3366 = vadd.f32 0.0, %v3365
  %3367 = vdwg.mxu0
  %v3368 = vadd.f32 %v3294, %v3360
  %v3369 = vadd.f32 %v3295, %v3362
  %v3370 = vadd.f32 %v3296, %v3364
  %v3371 = vadd.f32 %v3297, %v3366
  %v3372 = vld [vmem:[%s5 + $0x100] sm:$0xff]
  %v3373 = vld [vmem:[%s5 + $0x108] sm:$0xff]
  %v3374 = vld [vmem:[%s5 + $0x110] sm:$0xff]
  %v3375 = vld [vmem:[%s5 + $0x118] sm:$0xff]
  %v3380 = vunpack.c.l.b16 %v3372
  %v3381 = vunpack.c.h.b16 %v3372
  %v3382 = vunpack.c.l.b16 %v3373
  %v3383 = vunpack.c.h.b16 %v3373
  %v3384 = vunpack.c.l.b16 %v3374
  %v3385 = vunpack.c.h.b16 %v3374
  %v3386 = vunpack.c.l.b16 %v3375
  %v3387 = vunpack.c.h.b16 %v3375
  %v3388 = vpack.c.b16 %v3382, %v3380
  %v3389 = vpack.c.b16 %v3383, %v3381
  %v3390 = vpack.c.b16 %v3386, %v3384
  %v3391 = vpack.c.b16 %v3387, %v3385
  %v3397 = vsel %vm701, %v2771, 0
  %3399 = vmatprep.subr.bf16.mxu0 %v3389
  %3400 = vmatpush1.bf16.msra.mxu0 %v3388
  %3401 = vmatprep.subr.bf16.mxu0 %v3391
  %3402 = vmatpush1.bf16.msra.mxu0 %v3390
  %3403 = vmatprep.subr.bf16.mxu0 0
  %3404 = vmatpush1.bf16.msra.mxu0 0
  %3405 = vmatprep.subr.bf16.mxu0 0
  %3406 = vmatpush1.bf16.msra.mxu0 0
  %3407 = vmatprep.subr.bf16.mxu0 0
  %3408 = vmatpush1.bf16.msra.mxu0 0
  %3409 = vmatprep.subr.bf16.mxu0 0
  %3410 = vmatpush1.bf16.msra.mxu0 0
  %3411 = vmatprep.subr.bf16.mxu0 0
  %3412 = vmatpush1.bf16.msra.mxu0 0
  %3413 = vmatprep.subr.bf16.mxu0 0
  %3414 = vmatpush1.bf16.msra.mxu0 0
  %3415 = vmatprep.subr.bf16.mxu0 0
  %3416 = vmatpush1.bf16.msra.mxu0 0
  %3417 = vmatprep.subr.bf16.mxu0 0
  %3418 = vmatpush1.bf16.msra.mxu0 0
  %3419 = vmatprep.subr.bf16.mxu0 0
  %3420 = vmatpush1.bf16.msra.mxu0 0
  %3421 = vmatprep.subr.bf16.mxu0 0
  %3422 = vmatpush1.bf16.msra.mxu0 0
  %3423 = vmatprep.subr.bf16.mxu0 0
  %3424 = vmatpush1.bf16.msra.mxu0 0
  %3425 = vmatprep.subr.bf16.mxu0 0
  %3426 = vmatpush1.bf16.msra.mxu0 0
  %3427 = vmatprep.subr.bf16.mxu0 0
  %3428 = vmatpush1.bf16.msra.mxu0 0
  %3429 = vmatprep.subr.bf16.mxu0 0
  %3430 = vmatpush1.bf16.msra.mxu0 0
  %3431 = vmatprep.mubr.bf16.mxu0 0
  %3432 = vmatmul.mubr.bf16.gmra.mrb[0].mxu0 %v3397
  %v3433 = vpop.f32.mrb[0].mxu0
  %v3434 = vadd.f32 0.0, %v3433
  %v3435 = vpop.f32.mrb[0].mxu0
  %v3436 = vadd.f32 0.0, %v3435
  %v3437 = vpop.f32.mrb[0].mxu0
  %v3438 = vadd.f32 0.0, %v3437
  %v3439 = vpop.f32.mrb[0].mxu0
  %v3440 = vadd.f32 0.0, %v3439
  %3441 = vdwg.mxu0
  %v3442 = vadd.f32 %v3368, %v3434
  %v3443 = vadd.f32 %v3369, %v3436
  %v3444 = vadd.f32 %v3370, %v3438
  %v3445 = vadd.f32 %v3371, %v3440
  %v3446 = vld [vmem:[%s5 + $0x120] sm:$0xff]
  %v3447 = vld [vmem:[%s5 + $0x128] sm:$0xff]
  %v3448 = vld [vmem:[%s5 + $0x130] sm:$0xff]
  %v3449 = vld [vmem:[%s5 + $0x138] sm:$0xff]
  %v3454 = vunpack.c.l.b16 %v3446
  %v3455 = vunpack.c.h.b16 %v3446
  %v3456 = vunpack.c.l.b16 %v3447
  %v3457 = vunpack.c.h.b16 %v3447
  %v3458 = vunpack.c.l.b16 %v3448
  %v3459 = vunpack.c.h.b16 %v3448
  %v3460 = vunpack.c.l.b16 %v3449
  %v3461 = vunpack.c.h.b16 %v3449
  %v3462 = vpack.c.b16 %v3456, %v3454
  %v3463 = vpack.c.b16 %v3457, %v3455
  %v3464 = vpack.c.b16 %v3460, %v3458
  %v3465 = vpack.c.b16 %v3461, %v3459
  %v3471 = vsel %vm701, %v2772, 0
  %3473 = vmatprep.subr.bf16.mxu0 %v3463
  %3474 = vmatpush1.bf16.msra.mxu0 %v3462
  %3475 = vmatprep.subr.bf16.mxu0 %v3465
  %3476 = vmatpush1.bf16.msra.mxu0 %v3464
  %3477 = vmatprep.subr.bf16.mxu0 0
  %3478 = vmatpush1.bf16.msra.mxu0 0
  %3479 = vmatprep.subr.bf16.mxu0 0
  %3480 = vmatpush1.bf16.msra.mxu0 0
  %3481 = vmatprep.subr.bf16.mxu0 0
  %3482 = vmatpush1.bf16.msra.mxu0 0
  %3483 = vmatprep.subr.bf16.mxu0 0
  %3484 = vmatpush1.bf16.msra.mxu0 0
  %3485 = vmatprep.subr.bf16.mxu0 0
  %3486 = vmatpush1.bf16.msra.mxu0 0
  %3487 = vmatprep.subr.bf16.mxu0 0
  %3488 = vmatpush1.bf16.msra.mxu0 0
  %3489 = vmatprep.subr.bf16.mxu0 0
  %3490 = vmatpush1.bf16.msra.mxu0 0
  %3491 = vmatprep.subr.bf16.mxu0 0
  %3492 = vmatpush1.bf16.msra.mxu0 0
  %3493 = vmatprep.subr.bf16.mxu0 0
  %3494 = vmatpush1.bf16.msra.mxu0 0
  %3495 = vmatprep.subr.bf16.mxu0 0
  %3496 = vmatpush1.bf16.msra.mxu0 0
  %3497 = vmatprep.subr.bf16.mxu0 0
  %3498 = vmatpush1.bf16.msra.mxu0 0
  %3499 = vmatprep.subr.bf16.mxu0 0
  %3500 = vmatpush1.bf16.msra.mxu0 0
  %3501 = vmatprep.subr.bf16.mxu0 0
  %3502 = vmatpush1.bf16.msra.mxu0 0
  %3503 = vmatprep.subr.bf16.mxu0 0
  %3504 = vmatpush1.bf16.msra.mxu0 0
  %3505 = vmatprep.mubr.bf16.mxu0 0
  %3506 = vmatmul.mubr.bf16.gmra.mrb[0].mxu0 %v3471
  %v3507 = vpop.f32.mrb[0].mxu0
  %v3508 = vadd.f32 0.0, %v3507
  %v3509 = vpop.f32.mrb[0].mxu0
  %v3510 = vadd.f32 0.0, %v3509
  %v3511 = vpop.f32.mrb[0].mxu0
  %v3512 = vadd.f32 0.0, %v3511
  %v3513 = vpop.f32.mrb[0].mxu0
  %v3514 = vadd.f32 0.0, %v3513
  %3515 = vdwg.mxu0
  %v3516 = vadd.f32 %v3442, %v3508
  %v3517 = vadd.f32 %v3443, %v3510
  %v3518 = vadd.f32 %v3444, %v3512
  %v3519 = vadd.f32 %v3445, %v3514
  %v3520 = vld [vmem:[%s5 + $0x140] sm:$0xff]
  %v3521 = vld [vmem:[%s5 + $0x148] sm:$0xff]
  %v3522 = vld [vmem:[%s5 + $0x150] sm:$0xff]
  %v3523 = vld [vmem:[%s5 + $0x158] sm:$0xff]
  %v3528 = vunpack.c.l.b16 %v3520
  %v3529 = vunpack.c.h.b16 %v3520
  %v3530 = vunpack.c.l.b16 %v3521
  %v3531 = vunpack.c.h.b16 %v3521
  %v3532 = vunpack.c.l.b16 %v3522
  %v3533 = vunpack.c.h.b16 %v3522
  %v3534 = vunpack.c.l.b16 %v3523
  %v3535 = vunpack.c.h.b16 %v3523
  %v3536 = vpack.c.b16 %v3530, %v3528
  %v3537 = vpack.c.b16 %v3531, %v3529
  %v3538 = vpack.c.b16 %v3534, %v3532
  %v3539 = vpack.c.b16 %v3535, %v3533
  %v3545 = vsel %vm701, %v2773, 0
  %3547 = vmatprep.subr.bf16.mxu0 %v3537
  %3548 = vmatpush1.bf16.msra.mxu0 %v3536
  %3549 = vmatprep.subr.bf16.mxu0 %v3539
  %3550 = vmatpush1.bf16.msra.mxu0 %v3538
  %3551 = vmatprep.subr.bf16.mxu0 0
  %3552 = vmatpush1.bf16.msra.mxu0 0
  %3553 = vmatprep.subr.bf16.mxu0 0
  %3554 = vmatpush1.bf16.msra.mxu0 0
  %3555 = vmatprep.subr.bf16.mxu0 0
  %3556 = vmatpush1.bf16.msra.mxu0 0
  %3557 = vmatprep.subr.bf16.mxu0 0
  %3558 = vmatpush1.bf16.msra.mxu0 0
  %3559 = vmatprep.subr.bf16.mxu0 0
  %3560 = vmatpush1.bf16.msra.mxu0 0
  %3561 = vmatprep.subr.bf16.mxu0 0
  %3562 = vmatpush1.bf16.msra.mxu0 0
  %3563 = vmatprep.subr.bf16.mxu0 0
  %3564 = vmatpush1.bf16.msra.mxu0 0
  %3565 = vmatprep.subr.bf16.mxu0 0
  %3566 = vmatpush1.bf16.msra.mxu0 0
  %3567 = vmatprep.subr.bf16.mxu0 0
  %3568 = vmatpush1.bf16.msra.mxu0 0
  %3569 = vmatprep.subr.bf16.mxu0 0
  %3570 = vmatpush1.bf16.msra.mxu0 0
  %3571 = vmatprep.subr.bf16.mxu0 0
  %3572 = vmatpush1.bf16.msra.mxu0 0
  %3573 = vmatprep.subr.bf16.mxu0 0
  %3574 = vmatpush1.bf16.msra.mxu0 0
  %3575 = vmatprep.subr.bf16.mxu0 0
  %3576 = vmatpush1.bf16.msra.mxu0 0
  %3577 = vmatprep.subr.bf16.mxu0 0
  %3578 = vmatpush1.bf16.msra.mxu0 0
  %3579 = vmatprep.mubr.bf16.mxu0 0
  %3580 = vmatmul.mubr.bf16.gmra.mrb[0].mxu0 %v3545
  %v3581 = vpop.f32.mrb[0].mxu0
  %v3582 = vadd.f32 0.0, %v3581
  %v3583 = vpop.f32.mrb[0].mxu0
  %v3584 = vadd.f32 0.0, %v3583
  %v3585 = vpop.f32.mrb[0].mxu0
  %v3586 = vadd.f32 0.0, %v3585
  %v3587 = vpop.f32.mrb[0].mxu0
  %v3588 = vadd.f32 0.0, %v3587
  %3589 = vdwg.mxu0
  %v3590 = vadd.f32 %v3516, %v3582
  %v3591 = vadd.f32 %v3517, %v3584
  %v3592 = vadd.f32 %v3518, %v3586
  %v3593 = vadd.f32 %v3519, %v3588
  %v3594 = vld [vmem:[%s5 + $0x160] sm:$0xff]
  %v3595 = vld [vmem:[%s5 + $0x168] sm:$0xff]
  %v3596 = vld [vmem:[%s5 + $0x170] sm:$0xff]
  %v3597 = vld [vmem:[%s5 + $0x178] sm:$0xff]
  %v3602 = vunpack.c.l.b16 %v3594
  %v3603 = vunpack.c.h.b16 %v3594
  %v3604 = vunpack.c.l.b16 %v3595
  %v3605 = vunpack.c.h.b16 %v3595
  %v3606 = vunpack.c.l.b16 %v3596
  %v3607 = vunpack.c.h.b16 %v3596
  %v3608 = vunpack.c.l.b16 %v3597
  %v3609 = vunpack.c.h.b16 %v3597
  %v3610 = vpack.c.b16 %v3604, %v3602
  %v3611 = vpack.c.b16 %v3605, %v3603
  %v3612 = vpack.c.b16 %v3608, %v3606
  %v3613 = vpack.c.b16 %v3609, %v3607
  %v3619 = vsel %vm701, %v2774, 0
  %3621 = vmatprep.subr.bf16.mxu0 %v3611
  %3622 = vmatpush1.bf16.msra.mxu0 %v3610
  %3623 = vmatprep.subr.bf16.mxu0 %v3613
  %3624 = vmatpush1.bf16.msra.mxu0 %v3612
  %3625 = vmatprep.subr.bf16.mxu0 0
  %3626 = vmatpush1.bf16.msra.mxu0 0
  %3627 = vmatprep.subr.bf16.mxu0 0
  %3628 = vmatpush1.bf16.msra.mxu0 0
  %3629 = vmatprep.subr.bf16.mxu0 0
  %3630 = vmatpush1.bf16.msra.mxu0 0
  %3631 = vmatprep.subr.bf16.mxu0 0
  %3632 = vmatpush1.bf16.msra.mxu0 0
  %3633 = vmatprep.subr.bf16.mxu0 0
  %3634 = vmatpush1.bf16.msra.mxu0 0
  %3635 = vmatprep.subr.bf16.mxu0 0
  %3636 = vmatpush1.bf16.msra.mxu0 0
  %3637 = vmatprep.subr.bf16.mxu0 0
  %3638 = vmatpush1.bf16.msra.mxu0 0
  %3639 = vmatprep.subr.bf16.mxu0 0
  %3640 = vmatpush1.bf16.msra.mxu0 0
  %3641 = vmatprep.subr.bf16.mxu0 0
  %3642 = vmatpush1.bf16.msra.mxu0 0
  %3643 = vmatprep.subr.bf16.mxu0 0
  %3644 = vmatpush1.bf16.msra.mxu0 0
  %3645 = vmatprep.subr.bf16.mxu0 0
  %3646 = vmatpush1.bf16.msra.mxu0 0
  %3647 = vmatprep.subr.bf16.mxu0 0
  %3648 = vmatpush1.bf16.msra.mxu0 0
  %3649 = vmatprep.subr.bf16.mxu0 0
  %3650 = vmatpush1.bf16.msra.mxu0 0
  %3651 = vmatprep.subr.bf16.mxu0 0
  %3652 = vmatpush1.bf16.msra.mxu0 0
  %3653 = vmatprep.mubr.bf16.mxu0 0
  %3654 = vmatmul.mubr.bf16.gmra.mrb[0].mxu0 %v3619
  %v3655 = vpop.f32.mrb[0].mxu0
  %v3656 = vadd.f32 0.0, %v3655
  %v3657 = vpop.f32.mrb[0].mxu0
  %v3658 = vadd.f32 0.0, %v3657
  %v3659 = vpop.f32.mrb[0].mxu0
  %v3660 = vadd.f32 0.0, %v3659
  %v3661 = vpop.f32.mrb[0].mxu0
  %v3662 = vadd.f32 0.0, %v3661
  %3663 = vdwg.mxu0
  %v3664 = vadd.f32 %v3590, %v3656
  %v3665 = vadd.f32 %v3591, %v3658
  %v3666 = vadd.f32 %v3592, %v3660
  %v3667 = vadd.f32 %v3593, %v3662
  %v3668 = vld [vmem:[%s5 + $0x180] sm:$0xff]
  %v3669 = vld [vmem:[%s5 + $0x188] sm:$0xff]
  %v3670 = vld [vmem:[%s5 + $0x190] sm:$0xff]
  %v3671 = vld [vmem:[%s5 + $0x198] sm:$0xff]
  %v3676 = vunpack.c.l.b16 %v3668
  %v3677 = vunpack.c.h.b16 %v3668
  %v3678 = vunpack.c.l.b16 %v3669
  %v3679 = vunpack.c.h.b16 %v3669
  %v3680 = vunpack.c.l.b16 %v3670
  %v3681 = vunpack.c.h.b16 %v3670
  %v3682 = vunpack.c.l.b16 %v3671
  %v3683 = vunpack.c.h.b16 %v3671
  %v3684 = vpack.c.b16 %v3678, %v3676
  %v3685 = vpack.c.b16 %v3679, %v3677
  %v3686 = vpack.c.b16 %v3682, %v3680
  %v3687 = vpack.c.b16 %v3683, %v3681
  %v3693 = vsel %vm701, %v2775, 0
  %3695 = vmatprep.subr.bf16.mxu0 %v3685
  %3696 = vmatpush1.bf16.msra.mxu0 %v3684
  %3697 = vmatprep.subr.bf16.mxu0 %v3687
  %3698 = vmatpush1.bf16.msra.mxu0 %v3686
  %3699 = vmatprep.subr.bf16.mxu0 0
  %3700 = vmatpush1.bf16.msra.mxu0 0
  %3701 = vmatprep.subr.bf16.mxu0 0
  %3702 = vmatpush1.bf16.msra.mxu0 0
  %3703 = vmatprep.subr.bf16.mxu0 0
  %3704 = vmatpush1.bf16.msra.mxu0 0
  %3705 = vmatprep.subr.bf16.mxu0 0
  %3706 = vmatpush1.bf16.msra.mxu0 0
  %3707 = vmatprep.subr.bf16.mxu0 0
  %3708 = vmatpush1.bf16.msra.mxu0 0
  %3709 = vmatprep.subr.bf16.mxu0 0
  %3710 = vmatpush1.bf16.msra.mxu0 0
  %3711 = vmatprep.subr.bf16.mxu0 0
  %3712 = vmatpush1.bf16.msra.mxu0 0
  %3713 = vmatprep.subr.bf16.mxu0 0
  %3714 = vmatpush1.bf16.msra.mxu0 0
  %3715 = vmatprep.subr.bf16.mxu0 0
  %3716 = vmatpush1.bf16.msra.mxu0 0
  %3717 = vmatprep.subr.bf16.mxu0 0
  %3718 = vmatpush1.bf16.msra.mxu0 0
  %3719 = vmatprep.subr.bf16.mxu0 0
  %3720 = vmatpush1.bf16.msra.mxu0 0
  %3721 = vmatprep.subr.bf16.mxu0 0
  %3722 = vmatpush1.bf16.msra.mxu0 0
  %3723 = vmatprep.subr.bf16.mxu0 0
  %3724 = vmatpush1.bf16.msra.mxu0 0
  %3725 = vmatprep.subr.bf16.mxu0 0
  %3726 = vmatpush1.bf16.msra.mxu0 0
  %3727 = vmatprep.mubr.bf16.mxu0 0
  %3728 = vmatmul.mubr.bf16.gmra.mrb[0].mxu0 %v3693
  %v3729 = vpop.f32.mrb[0].mxu0
  %v3730 = vadd.f32 0.0, %v3729
  %v3731 = vpop.f32.mrb[0].mxu0
  %v3732 = vadd.f32 0.0, %v3731
  %v3733 = vpop.f32.mrb[0].mxu0
  %v3734 = vadd.f32 0.0, %v3733
  %v3735 = vpop.f32.mrb[0].mxu0
  %v3736 = vadd.f32 0.0, %v3735
  %3737 = vdwg.mxu0
  %v3738 = vadd.f32 %v3664, %v3730
  %v3739 = vadd.f32 %v3665, %v3732
  %v3740 = vadd.f32 %v3666, %v3734
  %v3741 = vadd.f32 %v3667, %v3736
  %v3742 = vld [vmem:[%s5 + $0x1a0] sm:$0xff]
  %v3743 = vld [vmem:[%s5 + $0x1a8] sm:$0xff]
  %v3744 = vld [vmem:[%s5 + $0x1b0] sm:$0xff]
  %v3745 = vld [vmem:[%s5 + $0x1b8] sm:$0xff]
  %v3750 = vunpack.c.l.b16 %v3742
  %v3751 = vunpack.c.h.b16 %v3742
  %v3752 = vunpack.c.l.b16 %v3743
  %v3753 = vunpack.c.h.b16 %v3743
  %v3754 = vunpack.c.l.b16 %v3744
  %v3755 = vunpack.c.h.b16 %v3744
  %v3756 = vunpack.c.l.b16 %v3745
  %v3757 = vunpack.c.h.b16 %v3745
  %v3758 = vpack.c.b16 %v3752, %v3750
  %v3759 = vpack.c.b16 %v3753, %v3751
  %v3760 = vpack.c.b16 %v3756, %v3754
  %v3761 = vpack.c.b16 %v3757, %v3755
  %v3767 = vsel %vm701, %v2776, 0
  %3769 = vmatprep.subr.bf16.mxu0 %v3759
  %3770 = vmatpush1.bf16.msra.mxu0 %v3758
  %3771 = vmatprep.subr.bf16.mxu0 %v3761
  %3772 = vmatpush1.bf16.msra.mxu0 %v3760
  %3773 = vmatprep.subr.bf16.mxu0 0
  %3774 = vmatpush1.bf16.msra.mxu0 0
  %3775 = vmatprep.subr.bf16.mxu0 0
  %3776 = vmatpush1.bf16.msra.mxu0 0
  %3777 = vmatprep.subr.bf16.mxu0 0
  %3778 = vmatpush1.bf16.msra.mxu0 0
  %3779 = vmatprep.subr.bf16.mxu0 0
  %3780 = vmatpush1.bf16.msra.mxu0 0
  %3781 = vmatprep.subr.bf16.mxu0 0
  %3782 = vmatpush1.bf16.msra.mxu0 0
  %3783 = vmatprep.subr.bf16.mxu0 0
  %3784 = vmatpush1.bf16.msra.mxu0 0
  %3785 = vmatprep.subr.bf16.mxu0 0
  %3786 = vmatpush1.bf16.msra.mxu0 0
  %3787 = vmatprep.subr.bf16.mxu0 0
  %3788 = vmatpush1.bf16.msra.mxu0 0
  %3789 = vmatprep.subr.bf16.mxu0 0
  %3790 = vmatpush1.bf16.msra.mxu0 0
  %3791 = vmatprep.subr.bf16.mxu0 0
  %3792 = vmatpush1.bf16.msra.mxu0 0
  %3793 = vmatprep.subr.bf16.mxu0 0
  %3794 = vmatpush1.bf16.msra.mxu0 0
  %3795 = vmatprep.subr.bf16.mxu0 0
  %3796 = vmatpush1.bf16.msra.mxu0 0
  %3797 = vmatprep.subr.bf16.mxu0 0
  %3798 = vmatpush1.bf16.msra.mxu0 0
  %3799 = vmatprep.subr.bf16.mxu0 0
  %3800 = vmatpush1.bf16.msra.mxu0 0
  %3801 = vmatprep.mubr.bf16.mxu0 0
  %3802 = vmatmul.mubr.bf16.gmra.mrb[0].mxu0 %v3767
  %v3803 = vpop.f32.mrb[0].mxu0
  %v3804 = vadd.f32 0.0, %v3803
  %v3805 = vpop.f32.mrb[0].mxu0
  %v3806 = vadd.f32 0.0, %v3805
  %v3807 = vpop.f32.mrb[0].mxu0
  %v3808 = vadd.f32 0.0, %v3807
  %v3809 = vpop.f32.mrb[0].mxu0
  %v3810 = vadd.f32 0.0, %v3809
  %3811 = vdwg.mxu0
  %v3812 = vadd.f32 %v3738, %v3804
  %v3813 = vadd.f32 %v3739, %v3806
  %v3814 = vadd.f32 %v3740, %v3808
  %v3815 = vadd.f32 %v3741, %v3810
  %v3816 = vld [vmem:[%s5 + $0x1c0] sm:$0xff]
  %v3817 = vld [vmem:[%s5 + $0x1c8] sm:$0xff]
  %v3818 = vld [vmem:[%s5 + $0x1d0] sm:$0xff]
  %v3819 = vld [vmem:[%s5 + $0x1d8] sm:$0xff]
  %v3824 = vunpack.c.l.b16 %v3816
  %v3825 = vunpack.c.h.b16 %v3816
  %v3826 = vunpack.c.l.b16 %v3817
  %v3827 = vunpack.c.h.b16 %v3817
  %v3828 = vunpack.c.l.b16 %v3818
  %v3829 = vunpack.c.h.b16 %v3818
  %v3830 = vunpack.c.l.b16 %v3819
  %v3831 = vunpack.c.h.b16 %v3819
  %v3832 = vpack.c.b16 %v3826, %v3824
  %v3833 = vpack.c.b16 %v3827, %v3825
  %v3834 = vpack.c.b16 %v3830, %v3828
  %v3835 = vpack.c.b16 %v3831, %v3829
  %v3841 = vsel %vm701, %v2777, 0
  %3843 = vmatprep.subr.bf16.mxu0 %v3833
  %3844 = vmatpush1.bf16.msra.mxu0 %v3832
  %3845 = vmatprep.subr.bf16.mxu0 %v3835
  %3846 = vmatpush1.bf16.msra.mxu0 %v3834
  %3847 = vmatprep.subr.bf16.mxu0 0
  %3848 = vmatpush1.bf16.msra.mxu0 0
  %3849 = vmatprep.subr.bf16.mxu0 0
  %3850 = vmatpush1.bf16.msra.mxu0 0
  %3851 = vmatprep.subr.bf16.mxu0 0
  %3852 = vmatpush1.bf16.msra.mxu0 0
  %3853 = vmatprep.subr.bf16.mxu0 0
  %3854 = vmatpush1.bf16.msra.mxu0 0
  %3855 = vmatprep.subr.bf16.mxu0 0
  %3856 = vmatpush1.bf16.msra.mxu0 0
  %3857 = vmatprep.subr.bf16.mxu0 0
  %3858 = vmatpush1.bf16.msra.mxu0 0
  %3859 = vmatprep.subr.bf16.mxu0 0
  %3860 = vmatpush1.bf16.msra.mxu0 0
  %3861 = vmatprep.subr.bf16.mxu0 0
  %3862 = vmatpush1.bf16.msra.mxu0 0
  %3863 = vmatprep.subr.bf16.mxu0 0
  %3864 = vmatpush1.bf16.msra.mxu0 0
  %3865 = vmatprep.subr.bf16.mxu0 0
  %3866 = vmatpush1.bf16.msra.mxu0 0
  %3867 = vmatprep.subr.bf16.mxu0 0
  %3868 = vmatpush1.bf16.msra.mxu0 0
  %3869 = vmatprep.subr.bf16.mxu0 0
  %3870 = vmatpush1.bf16.msra.mxu0 0
  %3871 = vmatprep.subr.bf16.mxu0 0
  %3872 = vmatpush1.bf16.msra.mxu0 0
  %3873 = vmatprep.subr.bf16.mxu0 0
  %3874 = vmatpush1.bf16.msra.mxu0 0
  %3875 = vmatprep.mubr.bf16.mxu0 0
  %3876 = vmatmul.mubr.bf16.gmra.mrb[0].mxu0 %v3841
  %v3877 = vpop.f32.mrb[0].mxu0
  %v3878 = vadd.f32 0.0, %v3877
  %v3879 = vpop.f32.mrb[0].mxu0
  %v3880 = vadd.f32 0.0, %v3879
  %v3881 = vpop.f32.mrb[0].mxu0
  %v3882 = vadd.f32 0.0, %v3881
  %v3883 = vpop.f32.mrb[0].mxu0
  %v3884 = vadd.f32 0.0, %v3883
  %3885 = vdwg.mxu0
  %v3886 = vadd.f32 %v3812, %v3878
  %v3887 = vadd.f32 %v3813, %v3880
  %v3888 = vadd.f32 %v3814, %v3882
  %v3889 = vadd.f32 %v3815, %v3884
  %v3890 = vld [vmem:[%s5 + $0x1e0] sm:$0xff]
  %v3891 = vld [vmem:[%s5 + $0x1e8] sm:$0xff]
  %v3892 = vld [vmem:[%s5 + $0x1f0] sm:$0xff]
  %v3893 = vld [vmem:[%s5 + $0x1f8] sm:$0xff]
  %v3898 = vunpack.c.l.b16 %v3890
  %v3899 = vunpack.c.h.b16 %v3890
  %v3900 = vunpack.c.l.b16 %v3891
  %v3901 = vunpack.c.h.b16 %v3891
  %v3902 = vunpack.c.l.b16 %v3892
  %v3903 = vunpack.c.h.b16 %v3892
  %v3904 = vunpack.c.l.b16 %v3893
  %v3905 = vunpack.c.h.b16 %v3893
  %v3906 = vpack.c.b16 %v3900, %v3898
  %v3907 = vpack.c.b16 %v3901, %v3899
  %v3908 = vpack.c.b16 %v3904, %v3902
  %v3909 = vpack.c.b16 %v3905, %v3903
  %v3915 = vsel %vm701, %v2778, 0
  %3917 = vmatprep.subr.bf16.mxu0 %v3907
  %3918 = vmatpush1.bf16.msra.mxu0 %v3906
  %3919 = vmatprep.subr.bf16.mxu0 %v3909
  %3920 = vmatpush1.bf16.msra.mxu0 %v3908
  %3921 = vmatprep.subr.bf16.mxu0 0
  %3922 = vmatpush1.bf16.msra.mxu0 0
  %3923 = vmatprep.subr.bf16.mxu0 0
  %3924 = vmatpush1.bf16.msra.mxu0 0
  %3925 = vmatprep.subr.bf16.mxu0 0
  %3926 = vmatpush1.bf16.msra.mxu0 0
  %3927 = vmatprep.subr.bf16.mxu0 0
  %3928 = vmatpush1.bf16.msra.mxu0 0
  %3929 = vmatprep.subr.bf16.mxu0 0
  %3930 = vmatpush1.bf16.msra.mxu0 0
  %3931 = vmatprep.subr.bf16.mxu0 0
  %3932 = vmatpush1.bf16.msra.mxu0 0
  %3933 = vmatprep.subr.bf16.mxu0 0
  %3934 = vmatpush1.bf16.msra.mxu0 0
  %3935 = vmatprep.subr.bf16.mxu0 0
  %3936 = vmatpush1.bf16.msra.mxu0 0
  %3937 = vmatprep.subr.bf16.mxu0 0
  %3938 = vmatpush1.bf16.msra.mxu0 0
  %3939 = vmatprep.subr.bf16.mxu0 0
  %3940 = vmatpush1.bf16.msra.mxu0 0
  %3941 = vmatprep.subr.bf16.mxu0 0
  %3942 = vmatpush1.bf16.msra.mxu0 0
  %3943 = vmatprep.subr.bf16.mxu0 0
  %3944 = vmatpush1.bf16.msra.mxu0 0
  %3945 = vmatprep.subr.bf16.mxu0 0
  %3946 = vmatpush1.bf16.msra.mxu0 0
  %3947 = vmatprep.subr.bf16.mxu0 0
  %3948 = vmatpush1.bf16.msra.mxu0 0
  %3949 = vmatprep.mubr.bf16.mxu0 0
  %3950 = vmatmul.mubr.bf16.gmra.mrb[0].mxu0 %v3915
  %v3951 = vpop.f32.mrb[0].mxu0
  %v3952 = vadd.f32 0.0, %v3951
  %v3953 = vpop.f32.mrb[0].mxu0
  %v3954 = vadd.f32 0.0, %v3953
  %v3955 = vpop.f32.mrb[0].mxu0
  %v3956 = vadd.f32 0.0, %v3955
  %v3957 = vpop.f32.mrb[0].mxu0
  %v3958 = vadd.f32 0.0, %v3957
  %3959 = vdwg.mxu0
  %v3960 = vadd.f32 %v3886, %v3952
  %v3961 = vadd.f32 %v3887, %v3954
  %v3962 = vadd.f32 %v3888, %v3956
  %v3963 = vadd.f32 %v3889, %v3958
  %v3964 = vld [vmem:[%s5 + $0x200] sm:$0xff]
  %v3965 = vld [vmem:[%s5 + $0x208] sm:$0xff]
  %v3966 = vld [vmem:[%s5 + $0x210] sm:$0xff]
  %v3967 = vld [vmem:[%s5 + $0x218] sm:$0xff]
  %v3972 = vunpack.c.l.b16 %v3964
  %v3973 = vunpack.c.h.b16 %v3964
  %v3974 = vunpack.c.l.b16 %v3965
  %v3975 = vunpack.c.h.b16 %v3965
  %v3976 = vunpack.c.l.b16 %v3966
  %v3977 = vunpack.c.h.b16 %v3966
  %v3978 = vunpack.c.l.b16 %v3967
  %v3979 = vunpack.c.h.b16 %v3967
  %v3980 = vpack.c.b16 %v3974, %v3972
  %v3981 = vpack.c.b16 %v3975, %v3973
  %v3982 = vpack.c.b16 %v3978, %v3976
  %v3983 = vpack.c.b16 %v3979, %v3977
  %v3989 = vsel %vm701, %v2779, 0
  %3991 = vmatprep.subr.bf16.mxu0 %v3981
  %3992 = vmatpush1.bf16.msra.mxu0 %v3980
  %3993 = vmatprep.subr.bf16.mxu0 %v3983
  %3994 = vmatpush1.bf16.msra.mxu0 %v3982
  %3995 = vmatprep.subr.bf16.mxu0 0
  %3996 = vmatpush1.bf16.msra.mxu0 0
  %3997 = vmatprep.subr.bf16.mxu0 0
  %3998 = vmatpush1.bf16.msra.mxu0 0
  %3999 = vmatprep.subr.bf16.mxu0 0
  %4000 = vmatpush1.bf16.msra.mxu0 0
  %4001 = vmatprep.subr.bf16.mxu0 0
  %4002 = vmatpush1.bf16.msra.mxu0 0
  %4003 = vmatprep.subr.bf16.mxu0 0
  %4004 = vmatpush1.bf16.msra.mxu0 0
  %4005 = vmatprep.subr.bf16.mxu0 0
  %4006 = vmatpush1.bf16.msra.mxu0 0
  %4007 = vmatprep.subr.bf16.mxu0 0
  %4008 = vmatpush1.bf16.msra.mxu0 0
  %4009 = vmatprep.subr.bf16.mxu0 0
  %4010 = vmatpush1.bf16.msra.mxu0 0
  %4011 = vmatprep.subr.bf16.mxu0 0
  %4012 = vmatpush1.bf16.msra.mxu0 0
  %4013 = vmatprep.subr.bf16.mxu0 0
  %4014 = vmatpush1.bf16.msra.mxu0 0
  %4015 = vmatprep.subr.bf16.mxu0 0
  %4016 = vmatpush1.bf16.msra.mxu0 0
  %4017 = vmatprep.subr.bf16.mxu0 0
  %4018 = vmatpush1.bf16.msra.mxu0 0
  %4019 = vmatprep.subr.bf16.mxu0 0
  %4020 = vmatpush1.bf16.msra.mxu0 0
  %4021 = vmatprep.subr.bf16.mxu0 0
  %4022 = vmatpush1.bf16.msra.mxu0 0
  %4023 = vmatprep.mubr.bf16.mxu0 0
  %4024 = vmatmul.mubr.bf16.gmra.mrb[0].mxu0 %v3989
  %v4025 = vpop.f32.mrb[0].mxu0
  %v4026 = vadd.f32 0.0, %v4025
  %v4027 = vpop.f32.mrb[0].mxu0
  %v4028 = vadd.f32 0.0, %v4027
  %v4029 = vpop.f32.mrb[0].mxu0
  %v4030 = vadd.f32 0.0, %v4029
  %v4031 = vpop.f32.mrb[0].mxu0
  %v4032 = vadd.f32 0.0, %v4031
  %4033 = vdwg.mxu0
  %v4034 = vadd.f32 %v3960, %v4026
  %v4035 = vadd.f32 %v3961, %v4028
  %v4036 = vadd.f32 %v3962, %v4030
  %v4037 = vadd.f32 %v3963, %v4032
  %v4038 = vld [vmem:[%s5 + $0x220] sm:$0xff]
  %v4039 = vld [vmem:[%s5 + $0x228] sm:$0xff]
  %v4040 = vld [vmem:[%s5 + $0x230] sm:$0xff]
  %v4041 = vld [vmem:[%s5 + $0x238] sm:$0xff]
  %v4046 = vunpack.c.l.b16 %v4038
  %v4047 = vunpack.c.h.b16 %v4038
  %v4048 = vunpack.c.l.b16 %v4039
  %v4049 = vunpack.c.h.b16 %v4039
  %v4050 = vunpack.c.l.b16 %v4040
  %v4051 = vunpack.c.h.b16 %v4040
  %v4052 = vunpack.c.l.b16 %v4041
  %v4053 = vunpack.c.h.b16 %v4041
  %v4054 = vpack.c.b16 %v4048, %v4046
  %v4055 = vpack.c.b16 %v4049, %v4047
  %v4056 = vpack.c.b16 %v4052, %v4050
  %v4057 = vpack.c.b16 %v4053, %v4051
  %v4063 = vsel %vm701, %v2780, 0
  %4065 = vmatprep.subr.bf16.mxu0 %v4055
  %4066 = vmatpush1.bf16.msra.mxu0 %v4054
  %4067 = vmatprep.subr.bf16.mxu0 %v4057
  %4068 = vmatpush1.bf16.msra.mxu0 %v4056
  %4069 = vmatprep.subr.bf16.mxu0 0
  %4070 = vmatpush1.bf16.msra.mxu0 0
  %4071 = vmatprep.subr.bf16.mxu0 0
  %4072 = vmatpush1.bf16.msra.mxu0 0
  %4073 = vmatprep.subr.bf16.mxu0 0
  %4074 = vmatpush1.bf16.msra.mxu0 0
  %4075 = vmatprep.subr.bf16.mxu0 0
  %4076 = vmatpush1.bf16.msra.mxu0 0
  %4077 = vmatprep.subr.bf16.mxu0 0
  %4078 = vmatpush1.bf16.msra.mxu0 0
  %4079 = vmatprep.subr.bf16.mxu0 0
  %4080 = vmatpush1.bf16.msra.mxu0 0
  %4081 = vmatprep.subr.bf16.mxu0 0
  %4082 = vmatpush1.bf16.msra.mxu0 0
  %4083 = vmatprep.subr.bf16.mxu0 0
  %4084 = vmatpush1.bf16.msra.mxu0 0
  %4085 = vmatprep.subr.bf16.mxu0 0
  %4086 = vmatpush1.bf16.msra.mxu0 0
  %4087 = vmatprep.subr.bf16.mxu0 0
  %4088 = vmatpush1.bf16.msra.mxu0 0
  %4089 = vmatprep.subr.bf16.mxu0 0
  %4090 = vmatpush1.bf16.msra.mxu0 0
  %4091 = vmatprep.subr.bf16.mxu0 0
  %4092 = vmatpush1.bf16.msra.mxu0 0
  %4093 = vmatprep.subr.bf16.mxu0 0
  %4094 = vmatpush1.bf16.msra.mxu0 0
  %4095 = vmatprep.subr.bf16.mxu0 0
  %4096 = vmatpush1.bf16.msra.mxu0 0
  %4097 = vmatprep.mubr.bf16.mxu0 0
  %4098 = vmatmul.mubr.bf16.gmra.mrb[0].mxu0 %v4063
  %v4099 = vpop.f32.mrb[0].mxu0
  %v4100 = vadd.f32 0.0, %v4099
  %v4101 = vpop.f32.mrb[0].mxu0
  %v4102 = vadd.f32 0.0, %v4101
  %v4103 = vpop.f32.mrb[0].mxu0
  %v4104 = vadd.f32 0.0, %v4103
  %v4105 = vpop.f32.mrb[0].mxu0
  %v4106 = vadd.f32 0.0, %v4105
  %4107 = vdwg.mxu0
  %v4108 = vadd.f32 %v4034, %v4100
  %v4109 = vadd.f32 %v4035, %v4102
  %v4110 = vadd.f32 %v4036, %v4104
  %v4111 = vadd.f32 %v4037, %v4106
  %v4112 = vld [vmem:[%s5 + $0x240] sm:$0xff]
  %v4113 = vld [vmem:[%s5 + $0x248] sm:$0xff]
  %v4114 = vld [vmem:[%s5 + $0x250] sm:$0xff]
  %v4115 = vld [vmem:[%s5 + $0x258] sm:$0xff]
  %v4120 = vunpack.c.l.b16 %v4112
  %v4121 = vunpack.c.h.b16 %v4112
  %v4122 = vunpack.c.l.b16 %v4113
  %v4123 = vunpack.c.h.b16 %v4113
  %v4124 = vunpack.c.l.b16 %v4114
  %v4125 = vunpack.c.h.b16 %v4114
  %v4126 = vunpack.c.l.b16 %v4115
  %v4127 = vunpack.c.h.b16 %v4115
  %v4128 = vpack.c.b16 %v4122, %v4120
  %v4129 = vpack.c.b16 %v4123, %v4121
  %v4130 = vpack.c.b16 %v4126, %v4124
  %v4131 = vpack.c.b16 %v4127, %v4125
  %v4137 = vsel %vm701, %v2781, 0
  %4139 = vmatprep.subr.bf16.mxu0 %v4129
  %4140 = vmatpush1.bf16.msra.mxu0 %v4128
  %4141 = vmatprep.subr.bf16.mxu0 %v4131
  %4142 = vmatpush1.bf16.msra.mxu0 %v4130
  %4143 = vmatprep.subr.bf16.mxu0 0
  %4144 = vmatpush1.bf16.msra.mxu0 0
  %4145 = vmatprep.subr.bf16.mxu0 0
  %4146 = vmatpush1.bf16.msra.mxu0 0
  %4147 = vmatprep.subr.bf16.mxu0 0
  %4148 = vmatpush1.bf16.msra.mxu0 0
  %4149 = vmatprep.subr.bf16.mxu0 0
  %4150 = vmatpush1.bf16.msra.mxu0 0
  %4151 = vmatprep.subr.bf16.mxu0 0
  %4152 = vmatpush1.bf16.msra.mxu0 0
  %4153 = vmatprep.subr.bf16.mxu0 0
  %4154 = vmatpush1.bf16.msra.mxu0 0
  %4155 = vmatprep.subr.bf16.mxu0 0
  %4156 = vmatpush1.bf16.msra.mxu0 0
  %4157 = vmatprep.subr.bf16.mxu0 0
  %4158 = vmatpush1.bf16.msra.mxu0 0
  %4159 = vmatprep.subr.bf16.mxu0 0
  %4160 = vmatpush1.bf16.msra.mxu0 0
  %4161 = vmatprep.subr.bf16.mxu0 0
  %4162 = vmatpush1.bf16.msra.mxu0 0
  %4163 = vmatprep.subr.bf16.mxu0 0
  %4164 = vmatpush1.bf16.msra.mxu0 0
  %4165 = vmatprep.subr.bf16.mxu0 0
  %4166 = vmatpush1.bf16.msra.mxu0 0
  %4167 = vmatprep.subr.bf16.mxu0 0
  %4168 = vmatpush1.bf16.msra.mxu0 0
  %4169 = vmatprep.subr.bf16.mxu0 0
  %4170 = vmatpush1.bf16.msra.mxu0 0
  %4171 = vmatprep.mubr.bf16.mxu0 0
  %4172 = vmatmul.mubr.bf16.gmra.mrb[0].mxu0 %v4137
  %v4173 = vpop.f32.mrb[0].mxu0
  %v4174 = vadd.f32 0.0, %v4173
  %v4175 = vpop.f32.mrb[0].mxu0
  %v4176 = vadd.f32 0.0, %v4175
  %v4177 = vpop.f32.mrb[0].mxu0
  %v4178 = vadd.f32 0.0, %v4177
  %v4179 = vpop.f32.mrb[0].mxu0
  %v4180 = vadd.f32 0.0, %v4179
  %4181 = vdwg.mxu0
  %v4182 = vadd.f32 %v4108, %v4174
  %v4183 = vadd.f32 %v4109, %v4176
  %v4184 = vadd.f32 %v4110, %v4178
  %v4185 = vadd.f32 %v4111, %v4180
  %v4186 = vld [vmem:[%s5 + $0x260] sm:$0xff]
  %v4187 = vld [vmem:[%s5 + $0x268] sm:$0xff]
  %v4188 = vld [vmem:[%s5 + $0x270] sm:$0xff]
  %v4189 = vld [vmem:[%s5 + $0x278] sm:$0xff]
  %v4194 = vunpack.c.l.b16 %v4186
  %v4195 = vunpack.c.h.b16 %v4186
  %v4196 = vunpack.c.l.b16 %v4187
  %v4197 = vunpack.c.h.b16 %v4187
  %v4198 = vunpack.c.l.b16 %v4188
  %v4199 = vunpack.c.h.b16 %v4188
  %v4200 = vunpack.c.l.b16 %v4189
  %v4201 = vunpack.c.h.b16 %v4189
  %v4202 = vpack.c.b16 %v4196, %v4194
  %v4203 = vpack.c.b16 %v4197, %v4195
  %v4204 = vpack.c.b16 %v4200, %v4198
  %v4205 = vpack.c.b16 %v4201, %v4199
  %v4211 = vsel %vm701, %v2782, 0
  %4213 = vmatprep.subr.bf16.mxu0 %v4203
  %4214 = vmatpush1.bf16.msra.mxu0 %v4202
  %4215 = vmatprep.subr.bf16.mxu0 %v4205
  %4216 = vmatpush1.bf16.msra.mxu0 %v4204
  %4217 = vmatprep.subr.bf16.mxu0 0
  %4218 = vmatpush1.bf16.msra.mxu0 0
  %4219 = vmatprep.subr.bf16.mxu0 0
  %4220 = vmatpush1.bf16.msra.mxu0 0
  %4221 = vmatprep.subr.bf16.mxu0 0
  %4222 = vmatpush1.bf16.msra.mxu0 0
  %4223 = vmatprep.subr.bf16.mxu0 0
  %4224 = vmatpush1.bf16.msra.mxu0 0
  %4225 = vmatprep.subr.bf16.mxu0 0
  %4226 = vmatpush1.bf16.msra.mxu0 0
  %4227 = vmatprep.subr.bf16.mxu0 0
  %4228 = vmatpush1.bf16.msra.mxu0 0
  %4229 = vmatprep.subr.bf16.mxu0 0
  %4230 = vmatpush1.bf16.msra.mxu0 0
  %4231 = vmatprep.subr.bf16.mxu0 0
  %4232 = vmatpush1.bf16.msra.mxu0 0
  %4233 = vmatprep.subr.bf16.mxu0 0
  %4234 = vmatpush1.bf16.msra.mxu0 0
  %4235 = vmatprep.subr.bf16.mxu0 0
  %4236 = vmatpush1.bf16.msra.mxu0 0
  %4237 = vmatprep.subr.bf16.mxu0 0
  %4238 = vmatpush1.bf16.msra.mxu0 0
  %4239 = vmatprep.subr.bf16.mxu0 0
  %4240 = vmatpush1.bf16.msra.mxu0 0
  %4241 = vmatprep.subr.bf16.mxu0 0
  %4242 = vmatpush1.bf16.msra.mxu0 0
  %4243 = vmatprep.subr.bf16.mxu0 0
  %4244 = vmatpush1.bf16.msra.mxu0 0
  %4245 = vmatprep.mubr.bf16.mxu0 0
  %4246 = vmatmul.mubr.bf16.gmra.mrb[0].mxu0 %v4211
  %v4247 = vpop.f32.mrb[0].mxu0
  %v4248 = vadd.f32 0.0, %v4247
  %v4249 = vpop.f32.mrb[0].mxu0
  %v4250 = vadd.f32 0.0, %v4249
  %v4251 = vpop.f32.mrb[0].mxu0
  %v4252 = vadd.f32 0.0, %v4251
  %v4253 = vpop.f32.mrb[0].mxu0
  %v4254 = vadd.f32 0.0, %v4253
  %4255 = vdwg.mxu0
  %v4256 = vadd.f32 %v4182, %v4248
  %v4257 = vadd.f32 %v4183, %v4250
  %v4258 = vadd.f32 %v4184, %v4252
  %v4259 = vadd.f32 %v4185, %v4254
  %v4260 = vld [vmem:[%s5 + $0x280] sm:$0xff]
  %v4261 = vld [vmem:[%s5 + $0x288] sm:$0xff]
  %v4262 = vld [vmem:[%s5 + $0x290] sm:$0xff]
  %v4263 = vld [vmem:[%s5 + $0x298] sm:$0xff]
  %v4268 = vunpack.c.l.b16 %v4260
  %v4269 = vunpack.c.h.b16 %v4260
  %v4270 = vunpack.c.l.b16 %v4261
  %v4271 = vunpack.c.h.b16 %v4261
  %v4272 = vunpack.c.l.b16 %v4262
  %v4273 = vunpack.c.h.b16 %v4262
  %v4274 = vunpack.c.l.b16 %v4263
  %v4275 = vunpack.c.h.b16 %v4263
  %v4276 = vpack.c.b16 %v4270, %v4268
  %v4277 = vpack.c.b16 %v4271, %v4269
  %v4278 = vpack.c.b16 %v4274, %v4272
  %v4279 = vpack.c.b16 %v4275, %v4273
  %v4285 = vsel %vm701, %v2783, 0
  %4287 = vmatprep.subr.bf16.mxu0 %v4277
  %4288 = vmatpush1.bf16.msra.mxu0 %v4276
  %4289 = vmatprep.subr.bf16.mxu0 %v4279
  %4290 = vmatpush1.bf16.msra.mxu0 %v4278
  %4291 = vmatprep.subr.bf16.mxu0 0
  %4292 = vmatpush1.bf16.msra.mxu0 0
  %4293 = vmatprep.subr.bf16.mxu0 0
  %4294 = vmatpush1.bf16.msra.mxu0 0
  %4295 = vmatprep.subr.bf16.mxu0 0
  %4296 = vmatpush1.bf16.msra.mxu0 0
  %4297 = vmatprep.subr.bf16.mxu0 0
  %4298 = vmatpush1.bf16.msra.mxu0 0
  %4299 = vmatprep.subr.bf16.mxu0 0
  %4300 = vmatpush1.bf16.msra.mxu0 0
  %4301 = vmatprep.subr.bf16.mxu0 0
  %4302 = vmatpush1.bf16.msra.mxu0 0
  %4303 = vmatprep.subr.bf16.mxu0 0
  %4304 = vmatpush1.bf16.msra.mxu0 0
  %4305 = vmatprep.subr.bf16.mxu0 0
  %4306 = vmatpush1.bf16.msra.mxu0 0
  %4307 = vmatprep.subr.bf16.mxu0 0
  %4308 = vmatpush1.bf16.msra.mxu0 0
  %4309 = vmatprep.subr.bf16.mxu0 0
  %4310 = vmatpush1.bf16.msra.mxu0 0
  %4311 = vmatprep.subr.bf16.mxu0 0
  %4312 = vmatpush1.bf16.msra.mxu0 0
  %4313 = vmatprep.subr.bf16.mxu0 0
  %4314 = vmatpush1.bf16.msra.mxu0 0
  %4315 = vmatprep.subr.bf16.mxu0 0
  %4316 = vmatpush1.bf16.msra.mxu0 0
  %4317 = vmatprep.subr.bf16.mxu0 0
  %4318 = vmatpush1.bf16.msra.mxu0 0
  %4319 = vmatprep.mubr.bf16.mxu0 0
  %4320 = vmatmul.mubr.bf16.gmra.mrb[0].mxu0 %v4285
  %v4321 = vpop.f32.mrb[0].mxu0
  %v4322 = vadd.f32 0.0, %v4321
  %v4323 = vpop.f32.mrb[0].mxu0
  %v4324 = vadd.f32 0.0, %v4323
  %v4325 = vpop.f32.mrb[0].mxu0
  %v4326 = vadd.f32 0.0, %v4325
  %v4327 = vpop.f32.mrb[0].mxu0
  %v4328 = vadd.f32 0.0, %v4327
  %4329 = vdwg.mxu0
  %v4330 = vadd.f32 %v4256, %v4322
  %v4331 = vadd.f32 %v4257, %v4324
  %v4332 = vadd.f32 %v4258, %v4326
  %v4333 = vadd.f32 %v4259, %v4328
  %v4334 = vld [vmem:[%s5 + $0x2a0] sm:$0xff]
  %v4335 = vld [vmem:[%s5 + $0x2a8] sm:$0xff]
  %v4336 = vld [vmem:[%s5 + $0x2b0] sm:$0xff]
  %v4337 = vld [vmem:[%s5 + $0x2b8] sm:$0xff]
  %v4342 = vunpack.c.l.b16 %v4334
  %v4343 = vunpack.c.h.b16 %v4334
  %v4344 = vunpack.c.l.b16 %v4335
  %v4345 = vunpack.c.h.b16 %v4335
  %v4346 = vunpack.c.l.b16 %v4336
  %v4347 = vunpack.c.h.b16 %v4336
  %v4348 = vunpack.c.l.b16 %v4337
  %v4349 = vunpack.c.h.b16 %v4337
  %v4350 = vpack.c.b16 %v4344, %v4342
  %v4351 = vpack.c.b16 %v4345, %v4343
  %v4352 = vpack.c.b16 %v4348, %v4346
  %v4353 = vpack.c.b16 %v4349, %v4347
  %v4359 = vsel %vm701, %v2784, 0
  %4361 = vmatprep.subr.bf16.mxu0 %v4351
  %4362 = vmatpush1.bf16.msra.mxu0 %v4350
  %4363 = vmatprep.subr.bf16.mxu0 %v4353
  %4364 = vmatpush1.bf16.msra.mxu0 %v4352
  %4365 = vmatprep.subr.bf16.mxu0 0
  %4366 = vmatpush1.bf16.msra.mxu0 0
  %4367 = vmatprep.subr.bf16.mxu0 0
  %4368 = vmatpush1.bf16.msra.mxu0 0
  %4369 = vmatprep.subr.bf16.mxu0 0
  %4370 = vmatpush1.bf16.msra.mxu0 0
  %4371 = vmatprep.subr.bf16.mxu0 0
  %4372 = vmatpush1.bf16.msra.mxu0 0
  %4373 = vmatprep.subr.bf16.mxu0 0
  %4374 = vmatpush1.bf16.msra.mxu0 0
  %4375 = vmatprep.subr.bf16.mxu0 0
  %4376 = vmatpush1.bf16.msra.mxu0 0
  %4377 = vmatprep.subr.bf16.mxu0 0
  %4378 = vmatpush1.bf16.msra.mxu0 0
  %4379 = vmatprep.subr.bf16.mxu0 0
  %4380 = vmatpush1.bf16.msra.mxu0 0
  %4381 = vmatprep.subr.bf16.mxu0 0
  %4382 = vmatpush1.bf16.msra.mxu0 0
  %4383 = vmatprep.subr.bf16.mxu0 0
  %4384 = vmatpush1.bf16.msra.mxu0 0
  %4385 = vmatprep.subr.bf16.mxu0 0
  %4386 = vmatpush1.bf16.msra.mxu0 0
  %4387 = vmatprep.subr.bf16.mxu0 0
  %4388 = vmatpush1.bf16.msra.mxu0 0
  %4389 = vmatprep.subr.bf16.mxu0 0
  %4390 = vmatpush1.bf16.msra.mxu0 0
  %4391 = vmatprep.subr.bf16.mxu0 0
  %4392 = vmatpush1.bf16.msra.mxu0 0
  %4393 = vmatprep.mubr.bf16.mxu0 0
  %4394 = vmatmul.mubr.bf16.gmra.mrb[0].mxu0 %v4359
  %v4395 = vpop.f32.mrb[0].mxu0
  %v4396 = vadd.f32 0.0, %v4395
  %v4397 = vpop.f32.mrb[0].mxu0
  %v4398 = vadd.f32 0.0, %v4397
  %v4399 = vpop.f32.mrb[0].mxu0
  %v4400 = vadd.f32 0.0, %v4399
  %v4401 = vpop.f32.mrb[0].mxu0
  %v4402 = vadd.f32 0.0, %v4401
  %4403 = vdwg.mxu0
  %v4404 = vadd.f32 %v4330, %v4396
  %v4405 = vadd.f32 %v4331, %v4398
  %v4406 = vadd.f32 %v4332, %v4400
  %v4407 = vadd.f32 %v4333, %v4402
  %v4408 = vld [vmem:[%s5 + $0x2c0] sm:$0xff]
  %v4409 = vld [vmem:[%s5 + $0x2c8] sm:$0xff]
  %v4410 = vld [vmem:[%s5 + $0x2d0] sm:$0xff]
  %v4411 = vld [vmem:[%s5 + $0x2d8] sm:$0xff]
  %v4416 = vunpack.c.l.b16 %v4408
  %v4417 = vunpack.c.h.b16 %v4408
  %v4418 = vunpack.c.l.b16 %v4409
  %v4419 = vunpack.c.h.b16 %v4409
  %v4420 = vunpack.c.l.b16 %v4410
  %v4421 = vunpack.c.h.b16 %v4410
  %v4422 = vunpack.c.l.b16 %v4411
  %v4423 = vunpack.c.h.b16 %v4411
  %v4424 = vpack.c.b16 %v4418, %v4416
  %v4425 = vpack.c.b16 %v4419, %v4417
  %v4426 = vpack.c.b16 %v4422, %v4420
  %v4427 = vpack.c.b16 %v4423, %v4421
  %v4433 = vsel %vm701, %v2785, 0
  %4435 = vmatprep.subr.bf16.mxu0 %v4425
  %4436 = vmatpush1.bf16.msra.mxu0 %v4424
  %4437 = vmatprep.subr.bf16.mxu0 %v4427
  %4438 = vmatpush1.bf16.msra.mxu0 %v4426
  %4439 = vmatprep.subr.bf16.mxu0 0
  %4440 = vmatpush1.bf16.msra.mxu0 0
  %4441 = vmatprep.subr.bf16.mxu0 0
  %4442 = vmatpush1.bf16.msra.mxu0 0
  %4443 = vmatprep.subr.bf16.mxu0 0
  %4444 = vmatpush1.bf16.msra.mxu0 0
  %4445 = vmatprep.subr.bf16.mxu0 0
  %4446 = vmatpush1.bf16.msra.mxu0 0
  %4447 = vmatprep.subr.bf16.mxu0 0
  %4448 = vmatpush1.bf16.msra.mxu0 0
  %4449 = vmatprep.subr.bf16.mxu0 0
  %4450 = vmatpush1.bf16.msra.mxu0 0
  %4451 = vmatprep.subr.bf16.mxu0 0
  %4452 = vmatpush1.bf16.msra.mxu0 0
  %4453 = vmatprep.subr.bf16.mxu0 0
  %4454 = vmatpush1.bf16.msra.mxu0 0
  %4455 = vmatprep.subr.bf16.mxu0 0
  %4456 = vmatpush1.bf16.msra.mxu0 0
  %4457 = vmatprep.subr.bf16.mxu0 0
  %4458 = vmatpush1.bf16.msra.mxu0 0
  %4459 = vmatprep.subr.bf16.mxu0 0
  %4460 = vmatpush1.bf16.msra.mxu0 0
  %4461 = vmatprep.subr.bf16.mxu0 0
  %4462 = vmatpush1.bf16.msra.mxu0 0
  %4463 = vmatprep.subr.bf16.mxu0 0
  %4464 = vmatpush1.bf16.msra.mxu0 0
  %4465 = vmatprep.subr.bf16.mxu0 0
  %4466 = vmatpush1.bf16.msra.mxu0 0
  %4467 = vmatprep.mubr.bf16.mxu0 0
  %4468 = vmatmul.mubr.bf16.gmra.mrb[0].mxu0 %v4433
  %v4469 = vpop.f32.mrb[0].mxu0
  %v4470 = vadd.f32 0.0, %v4469
  %v4471 = vpop.f32.mrb[0].mxu0
  %v4472 = vadd.f32 0.0, %v4471
  %v4473 = vpop.f32.mrb[0].mxu0
  %v4474 = vadd.f32 0.0, %v4473
  %v4475 = vpop.f32.mrb[0].mxu0
  %v4476 = vadd.f32 0.0, %v4475
  %4477 = vdwg.mxu0
  %v4478 = vadd.f32 %v4404, %v4470
  %v4479 = vadd.f32 %v4405, %v4472
  %v4480 = vadd.f32 %v4406, %v4474
  %v4481 = vadd.f32 %v4407, %v4476
  %v4482 = vld [vmem:[%s5 + $0x2e0] sm:$0xff]
  %v4483 = vld [vmem:[%s5 + $0x2e8] sm:$0xff]
  %v4484 = vld [vmem:[%s5 + $0x2f0] sm:$0xff]
  %v4485 = vld [vmem:[%s5 + $0x2f8] sm:$0xff]
  %v4490 = vunpack.c.l.b16 %v4482
  %v4491 = vunpack.c.h.b16 %v4482
  %v4492 = vunpack.c.l.b16 %v4483
  %v4493 = vunpack.c.h.b16 %v4483
  %v4494 = vunpack.c.l.b16 %v4484
  %v4495 = vunpack.c.h.b16 %v4484
  %v4496 = vunpack.c.l.b16 %v4485
  %v4497 = vunpack.c.h.b16 %v4485
  %v4498 = vpack.c.b16 %v4492, %v4490
  %v4499 = vpack.c.b16 %v4493, %v4491
  %v4500 = vpack.c.b16 %v4496, %v4494
  %v4501 = vpack.c.b16 %v4497, %v4495
  %v4507 = vsel %vm701, %v2786, 0
  %4509 = vmatprep.subr.bf16.mxu0 %v4499
  %4510 = vmatpush1.bf16.msra.mxu0 %v4498
  %4511 = vmatprep.subr.bf16.mxu0 %v4501
  %4512 = vmatpush1.bf16.msra.mxu0 %v4500
  %4513 = vmatprep.subr.bf16.mxu0 0
  %4514 = vmatpush1.bf16.msra.mxu0 0
  %4515 = vmatprep.subr.bf16.mxu0 0
  %4516 = vmatpush1.bf16.msra.mxu0 0
  %4517 = vmatprep.subr.bf16.mxu0 0
  %4518 = vmatpush1.bf16.msra.mxu0 0
  %4519 = vmatprep.subr.bf16.mxu0 0
  %4520 = vmatpush1.bf16.msra.mxu0 0
  %4521 = vmatprep.subr.bf16.mxu0 0
  %4522 = vmatpush1.bf16.msra.mxu0 0
  %4523 = vmatprep.subr.bf16.mxu0 0
  %4524 = vmatpush1.bf16.msra.mxu0 0
  %4525 = vmatprep.subr.bf16.mxu0 0
  %4526 = vmatpush1.bf16.msra.mxu0 0
  %4527 = vmatprep.subr.bf16.mxu0 0
  %4528 = vmatpush1.bf16.msra.mxu0 0
  %4529 = vmatprep.subr.bf16.mxu0 0
  %4530 = vmatpush1.bf16.msra.mxu0 0
  %4531 = vmatprep.subr.bf16.mxu0 0
  %4532 = vmatpush1.bf16.msra.mxu0 0
  %4533 = vmatprep.subr.bf16.mxu0 0
  %4534 = vmatpush1.bf16.msra.mxu0 0
  %4535 = vmatprep.subr.bf16.mxu0 0
  %4536 = vmatpush1.bf16.msra.mxu0 0
  %4537 = vmatprep.subr.bf16.mxu0 0
  %4538 = vmatpush1.bf16.msra.mxu0 0
  %4539 = vmatprep.subr.bf16.mxu0 0
  %4540 = vmatpush1.bf16.msra.mxu0 0
  %4541 = vmatprep.mubr.bf16.mxu0 0
  %4542 = vmatmul.mubr.bf16.gmra.mrb[0].mxu0 %v4507
  %v4543 = vpop.f32.mrb[0].mxu0
  %v4544 = vadd.f32 0.0, %v4543
  %v4545 = vpop.f32.mrb[0].mxu0
  %v4546 = vadd.f32 0.0, %v4545
  %v4547 = vpop.f32.mrb[0].mxu0
  %v4548 = vadd.f32 0.0, %v4547
  %v4549 = vpop.f32.mrb[0].mxu0
  %v4550 = vadd.f32 0.0, %v4549
  %4551 = vdwg.mxu0
  %v4552 = vadd.f32 %v4478, %v4544
  %v4553 = vadd.f32 %v4479, %v4546
  %v4554 = vadd.f32 %v4480, %v4548
  %v4555 = vadd.f32 %v4481, %v4550
  %v4556 = vld [vmem:[%s5 + $0x300] sm:$0xff]
  %v4557 = vld [vmem:[%s5 + $0x308] sm:$0xff]
  %v4558 = vld [vmem:[%s5 + $0x310] sm:$0xff]
  %v4559 = vld [vmem:[%s5 + $0x318] sm:$0xff]
  %v4564 = vunpack.c.l.b16 %v4556
  %v4565 = vunpack.c.h.b16 %v4556
  %v4566 = vunpack.c.l.b16 %v4557
  %v4567 = vunpack.c.h.b16 %v4557
  %v4568 = vunpack.c.l.b16 %v4558
  %v4569 = vunpack.c.h.b16 %v4558
  %v4570 = vunpack.c.l.b16 %v4559
  %v4571 = vunpack.c.h.b16 %v4559
  %v4572 = vpack.c.b16 %v4566, %v4564
  %v4573 = vpack.c.b16 %v4567, %v4565
  %v4574 = vpack.c.b16 %v4570, %v4568
  %v4575 = vpack.c.b16 %v4571, %v4569
  %v4581 = vsel %vm701, %v2787, 0
  %4583 = vmatprep.subr.bf16.mxu0 %v4573
  %4584 = vmatpush1.bf16.msra.mxu0 %v4572
  %4585 = vmatprep.subr.bf16.mxu0 %v4575
  %4586 = vmatpush1.bf16.msra.mxu0 %v4574
  %4587 = vmatprep.subr.bf16.mxu0 0
  %4588 = vmatpush1.bf16.msra.mxu0 0
  %4589 = vmatprep.subr.bf16.mxu0 0
  %4590 = vmatpush1.bf16.msra.mxu0 0
  %4591 = vmatprep.subr.bf16.mxu0 0
  %4592 = vmatpush1.bf16.msra.mxu0 0
  %4593 = vmatprep.subr.bf16.mxu0 0
  %4594 = vmatpush1.bf16.msra.mxu0 0
  %4595 = vmatprep.subr.bf16.mxu0 0
  %4596 = vmatpush1.bf16.msra.mxu0 0
  %4597 = vmatprep.subr.bf16.mxu0 0
  %4598 = vmatpush1.bf16.msra.mxu0 0
  %4599 = vmatprep.subr.bf16.mxu0 0
  %4600 = vmatpush1.bf16.msra.mxu0 0
  %4601 = vmatprep.subr.bf16.mxu0 0
  %4602 = vmatpush1.bf16.msra.mxu0 0
  %4603 = vmatprep.subr.bf16.mxu0 0
  %4604 = vmatpush1.bf16.msra.mxu0 0
  %4605 = vmatprep.subr.bf16.mxu0 0
  %4606 = vmatpush1.bf16.msra.mxu0 0
  %4607 = vmatprep.subr.bf16.mxu0 0
  %4608 = vmatpush1.bf16.msra.mxu0 0
  %4609 = vmatprep.subr.bf16.mxu0 0
  %4610 = vmatpush1.bf16.msra.mxu0 0
  %4611 = vmatprep.subr.bf16.mxu0 0
  %4612 = vmatpush1.bf16.msra.mxu0 0
  %4613 = vmatprep.subr.bf16.mxu0 0
  %4614 = vmatpush1.bf16.msra.mxu0 0
  %4615 = vmatprep.mubr.bf16.mxu0 0
  %4616 = vmatmul.mubr.bf16.gmra.mrb[0].mxu0 %v4581
  %v4617 = vpop.f32.mrb[0].mxu0
  %v4618 = vadd.f32 0.0, %v4617
  %v4619 = vpop.f32.mrb[0].mxu0
  %v4620 = vadd.f32 0.0, %v4619
  %v4621 = vpop.f32.mrb[0].mxu0
  %v4622 = vadd.f32 0.0, %v4621
  %v4623 = vpop.f32.mrb[0].mxu0
  %v4624 = vadd.f32 0.0, %v4623
  %4625 = vdwg.mxu0
  %v4626 = vadd.f32 %v4552, %v4618
  %v4627 = vadd.f32 %v4553, %v4620
  %v4628 = vadd.f32 %v4554, %v4622
  %v4629 = vadd.f32 %v4555, %v4624
  %v4630 = vld [vmem:[%s6] sm:$0x3]
  %v4632 = vlaneseq
  %v4633 = vshrl.u32 %v4632, 7
  %v4634 = vsub.s32 0, %v4633
  %v4635 = vrot.slane %v4630, %v4634
  %v4636 = vlaneseq
  %v4637 = vshrl.u32 %v4636, 7
  %v4638 = vsub.s32 1, %v4637
  %v4639 = vrot.slane %v4630, %v4638
  %v4642 = vadd.f32 %v4626, %v4635
  %v4643 = vadd.f32 %v4627, %v4639
  %v4644 = vadd.f32 %v4628, %v4635
  %v4645 = vadd.f32 %v4629, %v4639
  %v4646 = vmax.f32 %v4642, 0.0
  %v4647 = vmax.f32 %v4643, 0.0
  %v4648 = vmax.f32 %v4644, 0.0
  %v4649 = vmax.f32 %v4645, 0.0
  %v4650 = vpack.c.bf16 %v4648, %v4646
  %v4651 = vpack.c.bf16 %v4649, %v4647
  %v4652 = vld [vmem:[%s7] sm:$0xf]
  %v4653 = vld [vmem:[%s7 + $0x4] sm:$0xf]
  %v4654 = vld [vmem:[%s7 + $0x8] sm:$0xf]
  %v4655 = vld [vmem:[%s7 + $0xc] sm:$0xf]
  %v4656 = vld [vmem:[%s7 + $0x10] sm:$0xf]
  %v4657 = vld [vmem:[%s7 + $0x14] sm:$0xf]
  %v4658 = vld [vmem:[%s7 + $0x18] sm:$0xf]
  %v4659 = vld [vmem:[%s7 + $0x1c] sm:$0xf]
  %v4660 = vld [vmem:[%s7 + $0x20] sm:$0xf]
  %v4661 = vld [vmem:[%s7 + $0x24] sm:$0xf]
  %v4662 = vld [vmem:[%s7 + $0x28] sm:$0xf]
  %v4663 = vld [vmem:[%s7 + $0x2c] sm:$0xf]
  %v4664 = vld [vmem:[%s7 + $0x30] sm:$0xf]
  %v4665 = vld [vmem:[%s7 + $0x34] sm:$0xf]
  %v4666 = vld [vmem:[%s7 + $0x38] sm:$0xf]
  %v4667 = vld [vmem:[%s7 + $0x3c] sm:$0xf]
  %v4668 = vld [vmem:[%s7 + $0x40] sm:$0xf]
  %v4669 = vld [vmem:[%s7 + $0x44] sm:$0xf]
  %v4670 = vld [vmem:[%s7 + $0x48] sm:$0xf]
  %v4671 = vld [vmem:[%s7 + $0x4c] sm:$0xf]
  %v4672 = vld [vmem:[%s7 + $0x50] sm:$0xf]
  %v4673 = vld [vmem:[%s7 + $0x54] sm:$0xf]
  %v4674 = vld [vmem:[%s7 + $0x58] sm:$0xf]
  %v4675 = vld [vmem:[%s7 + $0x5c] sm:$0xf]
  %v4676 = vld [vmem:[%s7 + $0x60] sm:$0xf]
  %v4677 = vld [vmem:[%s7 + $0x64] sm:$0xf]
  %v4678 = vld [vmem:[%s7 + $0x68] sm:$0xf]
  %v4679 = vld [vmem:[%s7 + $0x6c] sm:$0xf]
  %v4680 = vld [vmem:[%s7 + $0x70] sm:$0xf]
  %v4681 = vld [vmem:[%s7 + $0x74] sm:$0xf]
  %v4682 = vld [vmem:[%s7 + $0x78] sm:$0xf]
  %v4683 = vld [vmem:[%s7 + $0x7c] sm:$0xf]
  %v4684 = vld [vmem:[%s8] sm:$0x1]
  %v4686 = vlaneseq
  %v4687 = vshrl.u32 %v4686, 7
  %v4688 = vsub.s32 0, %v4687
  %v4689 = vrot.slane %v4684, %v4688
  %v4723 = vunpack.c.l.b16 %v4652
  %v4724 = vunpack.c.l.b16 %v4653
  %v4725 = vunpack.c.l.b16 %v4654
  %v4726 = vunpack.c.l.b16 %v4655
  %v4727 = vunpack.c.l.b16 %v4656
  %v4728 = vunpack.c.l.b16 %v4657
  %v4729 = vunpack.c.l.b16 %v4658
  %v4730 = vunpack.c.l.b16 %v4659
  %v4731 = vunpack.c.l.b16 %v4660
  %v4732 = vunpack.c.l.b16 %v4661
  %v4733 = vunpack.c.l.b16 %v4662
  %v4734 = vunpack.c.l.b16 %v4663
  %v4735 = vunpack.c.l.b16 %v4664
  %v4736 = vunpack.c.l.b16 %v4665
  %v4737 = vunpack.c.l.b16 %v4666
  %v4738 = vunpack.c.l.b16 %v4667
  %v4739 = vunpack.c.l.b16 %v4668
  %v4740 = vunpack.c.l.b16 %v4669
  %v4741 = vunpack.c.l.b16 %v4670
  %v4742 = vunpack.c.l.b16 %v4671
  %v4743 = vunpack.c.l.b16 %v4672
  %v4744 = vunpack.c.l.b16 %v4673
  %v4745 = vunpack.c.l.b16 %v4674
  %v4746 = vunpack.c.l.b16 %v4675
  %v4747 = vunpack.c.l.b16 %v4676
  %v4748 = vunpack.c.l.b16 %v4677
  %v4749 = vunpack.c.l.b16 %v4678
  %v4750 = vunpack.c.l.b16 %v4679
  %v4751 = vunpack.c.l.b16 %v4680
  %v4752 = vunpack.c.l.b16 %v4681
  %v4753 = vunpack.c.l.b16 %v4682
  %v4754 = vunpack.c.l.b16 %v4683
  %v4755 = vpack.c.b16 %v4724, %v4723
  %v4756 = vpack.c.b16 %v4726, %v4725
  %v4757 = vpack.c.b16 %v4728, %v4727
  %v4758 = vpack.c.b16 %v4730, %v4729
  %v4759 = vpack.c.b16 %v4732, %v4731
  %v4760 = vpack.c.b16 %v4734, %v4733
  %v4761 = vpack.c.b16 %v4736, %v4735
  %v4762 = vpack.c.b16 %v4738, %v4737
  %v4763 = vpack.c.b16 %v4740, %v4739
  %v4764 = vpack.c.b16 %v4742, %v4741
  %v4765 = vpack.c.b16 %v4744, %v4743
  %v4766 = vpack.c.b16 %v4746, %v4745
  %v4767 = vpack.c.b16 %v4748, %v4747
  %v4768 = vpack.c.b16 %v4750, %v4749
  %v4769 = vpack.c.b16 %v4752, %v4751
  %v4770 = vpack.c.b16 %v4754, %v4753
  %4787 = vmatprep.subr.bf16.mxu0 0
  %4788 = vmatpush1.bf16.msra.mxu0 %v4755
  %4789 = vmatprep.subr.bf16.mxu0 0
  %4790 = vmatpush1.bf16.msra.mxu0 %v4756
  %4791 = vmatprep.subr.bf16.mxu0 0
  %4792 = vmatpush1.bf16.msra.mxu0 %v4757
  %4793 = vmatprep.subr.bf16.mxu0 0
  %4794 = vmatpush1.bf16.msra.mxu0 %v4758
  %4795 = vmatprep.subr.bf16.mxu0 0
  %4796 = vmatpush1.bf16.msra.mxu0 %v4759
  %4797 = vmatprep.subr.bf16.mxu0 0
  %4798 = vmatpush1.bf16.msra.mxu0 %v4760
  %4799 = vmatprep.subr.bf16.mxu0 0
  %4800 = vmatpush1.bf16.msra.mxu0 %v4761
  %4801 = vmatprep.subr.bf16.mxu0 0
  %4802 = vmatpush1.bf16.msra.mxu0 %v4762
  %4803 = vmatprep.subr.bf16.mxu0 0
  %4804 = vmatpush1.bf16.msra.mxu0 %v4763
  %4805 = vmatprep.subr.bf16.mxu0 0
  %4806 = vmatpush1.bf16.msra.mxu0 %v4764
  %4807 = vmatprep.subr.bf16.mxu0 0
  %4808 = vmatpush1.bf16.msra.mxu0 %v4765
  %4809 = vmatprep.subr.bf16.mxu0 0
  %4810 = vmatpush1.bf16.msra.mxu0 %v4766
  %4811 = vmatprep.subr.bf16.mxu0 0
  %4812 = vmatpush1.bf16.msra.mxu0 %v4767
  %4813 = vmatprep.subr.bf16.mxu0 0
  %4814 = vmatpush1.bf16.msra.mxu0 %v4768
  %4815 = vmatprep.subr.bf16.mxu0 0
  %4816 = vmatpush1.bf16.msra.mxu0 %v4769
  %4817 = vmatprep.subr.bf16.mxu0 0
  %4818 = vmatpush1.bf16.msra.mxu0 %v4770
  %4819 = vmatprep.mubr.bf16.mxu0 %v4651
  %4820 = vmatmul.mubr.bf16.gmra.mrb[0].mxu0 %v4650
  %v4821 = vpop.f32.mrb[0].mxu0
  %v4822 = vadd.f32 %v4689, %v4821
  %v4823 = vpop.f32.mrb[0].mxu0
  %v4824 = vpop.f32.mrb[0].mxu0
  %v4825 = vadd.f32 %v4689, %v4824
  %v4826 = vpop.f32.mrb[0].mxu0
  %4827 = vdwg.mxu0
  %4828 = vst [vmem:[%s9] sm:$0xff] %v4822
  %4829 = vst [vmem:[%s9 + $0x8] sm:$0xff] %v4825
  // Predicated region
  $region38: #{cnn_ddqn_forward.1} parent=0 // pred_check
    _
  $region39: #{cnn_ddqn_forward.1} parent=0 // pred_check_branch
    %4831 = sbr.rel (0) target = $region41
  $region40: #{cnn_ddqn_forward.1} parent=0 // pred_region
    _
  $region41: #{cnn_ddqn_forward.1} parent=0 // pred_fallthru
    _
  // Predicated region
  $region42: #{cnn_ddqn_forward.1} parent=0 // pred_check
    _
  $region43: #{cnn_ddqn_forward.1} parent=0 // pred_check_branch
    %4833 = sbr.rel (0) target = $region45
  $region44: #{cnn_ddqn_forward.1} parent=0 // pred_region
    _
  $region45: #{cnn_ddqn_forward.1} parent=0 // pred_fallthru
    _

</llo_original>
